<compile_context>
chip_gen: v7x
topology: tpu7x:2x2x1
jax: 0.10.0
libtpu: 0.0.40
codegen_flags: <defaults>
</compile_context>

<pallas_src>
import functools
import math

import jax
import jax.numpy as jnp
from jax import lax
from jax.experimental import pallas as pl
from jax.experimental.pallas import tpu as pltpu

DILATIONS = (1, 1, 2, 4, 8)
CHANNELS = (4, 2, 2, 2, 3, 1)        # num_inputs=4, h1=2 (x3), h2=3, final=1
KSIZE = 2
RECEPTIVE_FIELD = sum(DILATIONS) + 1  # 17
LANE = 128


def _layer_offsets():
    """Flat-parameter-vector offsets: per layer, weights then biases."""
    w_off, b_off, off = [], [], 0
    for li in range(len(DILATIONS)):
        cin, cout = CHANNELS[li], CHANNELS[li + 1]
        w_off.append(off)
        off += cout * cin * KSIZE
        b_off.append(off)
        off += cout
    return tuple(w_off), tuple(b_off), off


W_OFF, B_OFF, N_PARAMS = _layer_offsets()


def _needed_positions():
    """Per-layer activation timesteps that actually feed the final output."""
    lengths = [RECEPTIVE_FIELD]
    for d in DILATIONS:
        lengths.append(lengths[-1] - d)          # valid conv, k=2, dilation d
    needed = [None] * (len(DILATIONS) + 1)
    needed[-1] = (lengths[-1] - 1,)              # only the last output step
    for li in range(len(DILATIONS) - 1, -1, -1):
        s = set()
        for t in needed[li + 1]:
            s.add(t)
            s.add(t + DILATIONS[li])
        needed[li] = tuple(sorted(s))
    return tuple(needed), tuple(lengths)


NEEDED, LENGTHS = _needed_positions()


def _dilated_net_kernel(p_ref, x_ref, out_ref, *, rb):
    """p_ref:  (N_PARAMS,) f32 in SMEM (scalar prefetch).
    x_ref:  (Cin*17, tb, 128) in VMEM — batch on (sublane, lane); f32 or bf16.
    out_ref:(tb, 128) f32 in VMEM — lane-dense final output.
    rb:     sub-tile height (sublanes) processed per inner-loop iteration."""
    rf = RECEPTIVE_FIELD
    n_layers = len(DILATIONS)

    # Scalar dedup: every weight/bias is read from SMEM exactly once per grid
    # step and the traced value is reused across all taps and sub-tiles.
    w = [p_ref[i] for i in range(N_PARAMS)]

    tb = out_ref.shape[0]
    n_sub = tb // rb

    def chunk_body(r, carry):
        row0 = pl.multiple_of(r * rb, rb)        # aligned sublane offset

        # Lazy, memoized loads of input slabs (upcast to f32 for compute).
        x_cache = {}

        def xin(ci, t):
            key = (ci, t)
            if key not in x_cache:
                v = x_ref[ci * rf + t, pl.ds(row0, rb), :]
                x_cache[key] = v.astype(jnp.float32)
            return x_cache[key]

        # ---- Layer 0: stream output timesteps in ascending order so each
        # input slab dies right after its two consumers (live-range fix).
        d0 = DILATIONS[0]
        cin0, cout0 = CHANNELS[0], CHANNELS[1]
        acts = {}
        for t in NEEDED[1]:
            for co in range(cout0):
                y = None
                for ci in range(cin0):
                    base = W_OFF[0] + (co * cin0 + ci) * KSIZE
                    term = w[base] * xin(ci, t) + w[base + 1] * xin(ci, t + d0)
                    y = term if y is None else y + term
                y = y + w[B_OFF[0] + co]
                acts[(co, t)] = jnp.maximum(y, 0.0)      # ReLU
            for ci in range(cin0):                       # slab t now dead
                x_cache.pop((ci, t), None)

        # ---- Remaining layers (fully unrolled; every tap is a VPU FMA pair).
        for li in range(1, n_layers):
            cin_n, cout_n, d = CHANNELS[li], CHANNELS[li + 1], DILATIONS[li]
            new_acts = {}
            for t in NEEDED[li + 1]:
                for co in range(cout_n):
                    y = None
                    for ci in range(cin_n):
                        base = W_OFF[li] + (co * cin_n + ci) * KSIZE
                        term = (w[base] * acts[(ci, t)]
                                + w[base + 1] * acts[(ci, t + d)])
                        y = term if y is None else y + term
                    y = y + w[B_OFF[li] + co]
                    if li < n_layers - 1:                # ReLU after all but conv_final
                        y = jnp.maximum(y, 0.0)
                    new_acts[(co, t)] = y
            acts = new_acts

        out_ref[pl.ds(row0, rb), :] = acts[(0, LENGTHS[-1] - 1)]
        return carry

    lax.fori_loop(0, n_sub, chunk_body, 0)


def _tb_cap_default():
    """Chip-dependent batch-tile cap (sublanes): 512 on 128-MiB-VMEM chips
    (v5e/v6e), 256 on v7x (64 MiB) or when the query is unavailable."""
    try:
        info = pltpu.get_tpu_info()
        vmem = int(getattr(info, "vmem_capacity_bytes", 0) or 0)
    except Exception:
        vmem = 0
    if vmem >= 100 * (1 << 20):
        return 512
    return 256


@functools.partial(jax.jit, static_argnames=("pack_dtype", "tb_cap"))
def dilated_net_forward(x, params, pack_dtype=jnp.float32, tb_cap=None):
    """x: (B, num_inputs, W) -> (B, 1), matching DilatedNet.forward."""
    B, c_in, W = x.shape
    assert c_in == CHANNELS[0]
    x = x.astype(jnp.float32)

    # Left-pad to the receptive field, then keep only the last 17 steps —
    # everything earlier cannot influence the (single) emitted output step.
    pad = max(RECEPTIVE_FIELD - W, 0)
    x_pad = jnp.pad(x, ((0, 0), (0, 0), (pad, 0)))
    x_win = x_pad[:, :, -RECEPTIVE_FIELD:]                      # (B, Cin, 17)

    # Pack all layer params into one flat SMEM vector (weights then bias, per layer).
    flat = []
    for (wt, bs) in params:
        flat.append(wt.reshape(-1).astype(jnp.float32))
        flat.append(bs.reshape(-1).astype(jnp.float32))
    flat_params = jnp.concatenate(flat)

    if tb_cap is None:
        tb_cap = _tb_cap_default()

    itemsize = jnp.dtype(pack_dtype).itemsize
    g = 8 if itemsize >= 4 else 16              # sublane granule: f32 (8,128), bf16 (16,128)
    rows = pl.cdiv(B, LANE)

    if rows <= g:
        # Tiny batch: a single minimal tile (cannot split below the granule).
        tb, n_tiles = g, 1
    else:
        # >=2 grid steps (keeps both v7x TensorCores fed via the "parallel"
        # axis), with the tile as large as the chip's VMEM cap allows.
        half_rows = (rows + 1) // 2
        half = ((half_rows + g - 1) // g) * g
        tb = max(g, min(tb_cap, half))
        n_tiles = pl.cdiv(rows, tb)
    rows_pad = n_tiles * tb
    b_pad = rows_pad * LANE

    # Batch-last, lane-dense layout: (Cin*17, rows, 128), batch b = row*128 + lane.
    # allow_input_fusion below lets XLA fuse this repack into the kernel input
    # instead of materializing it as a separate HBM pass.
    x_t = jnp.transpose(x_win, (1, 2, 0)).reshape(c_in * RECEPTIVE_FIELD, B)
    x_t = jnp.pad(x_t, ((0, 0), (0, b_pad - B)))
    x_blk = x_t.reshape(c_in * RECEPTIVE_FIELD, rows_pad, LANE).astype(pack_dtype)

    # Explicit VMEM budget: double-buffered input + output blocks + headroom.
    in_block_bytes = c_in * RECEPTIVE_FIELD * tb * LANE * itemsize
    out_block_bytes = tb * LANE * 4
    vmem_limit = int(2 * (in_block_bytes + out_block_bytes) + (24 << 20))
    vmem_limit = max(vmem_limit, 32 << 20)

    # Advisory cost estimate so XLA schedules surrounding ops around the kernel.
    macs_per_item = sum(
        CHANNELS[li + 1] * CHANNELS[li] * KSIZE * len(NEEDED[li + 1])
        for li in range(len(DILATIONS)))
    cost = pl.CostEstimate(
        flops=int(2 * macs_per_item * b_pad),
        transcendentals=0,
        bytes_accessed=int(x_blk.size * itemsize + b_pad * 4 + flat_params.size * 4))

    kernel = functools.partial(_dilated_net_kernel, rb=g)

    out = pl.pallas_call(
        kernel,
        out_shape=jax.ShapeDtypeStruct((rows_pad, LANE), jnp.float32),
        grid_spec=pltpu.PrefetchScalarGridSpec(
            num_scalar_prefetch=1,               # flat_params -> SMEM
            grid=(n_tiles,),                     # batch-tile grid (pipelined, depth-2)
            in_specs=[pl.BlockSpec((c_in * RECEPTIVE_FIELD, tb, LANE),
                                   lambda i, p: (0, i, 0))],
            out_specs=pl.BlockSpec((tb, LANE), lambda i, p: (i, 0)),
        ),
        compiler_params=pltpu.CompilerParams(
            dimension_semantics=("parallel",),   # dual-TC split on v7x
            vmem_limit_bytes=vmem_limit,
            allow_input_fusion=[False, True],    # [flat_params, x_blk]
        ),
        cost_estimate=cost,
    )(flat_params, x_blk)

    return out.reshape(b_pad)[:B].reshape(B, 1)


def init_params(key):
    """Deterministic Conv1d-style init (uniform(-1/sqrt(fan_in), 1/sqrt(fan_in)))."""
    params = []
    for li in range(5):
        cin, cout = CHANNELS[li], CHANNELS[li + 1]
        key, kw, kb = jax.random.split(key, 3)
        bound = 1.0 / math.sqrt(cin * KSIZE)
        w = jax.random.uniform(kw, (cout, cin, KSIZE), jnp.float32, -bound, bound)
        b = jax.random.uniform(kb, (cout,), jnp.float32, -bound, bound)
        params.append((w, b))
    return params


def reference_forward(x, params):
    """Pure-JAX reference matching the PyTorch forward exactly."""
    pad = max(RECEPTIVE_FIELD - x.shape[2], 0)
    h = jnp.pad(x.astype(jnp.float32), ((0, 0), (0, 0), (pad, 0)))
    for li, (w, b) in enumerate(params):
        h = jax.lax.conv_general_dilated(
            h, w, window_strides=(1,), padding="VALID",
            rhs_dilation=(DILATIONS[li],),
            dimension_numbers=("NCH", "OIH", "NCH"))
        h = h + b[None, :, None]
        if li < 4:
            h = jnp.maximum(h, 0.0)
    return h[:, :, -1]


if __name__ == "__main__":
    key = jax.random.PRNGKey(0)
    key, kx = jax.random.split(key)

    # Small case: W=16 < receptive_field=17 -> exercises the left pad.
    B, C_IN, W = 2, 4, 16
    x = jax.random.normal(kx, (B, C_IN, W), dtype=jnp.float32)
    params = init_params(key)

    out = jax.block_until_ready(dilated_net_forward(x, params))
    ref = reference_forward(x, params)
    assert out.shape == (B, 1), out.shape
    assert jnp.allclose(out, ref, atol=1e-5, rtol=1e-5), (out, ref)

    # Larger case: W>17 slicing + >=2 grid steps (pipelined batch tiles,
    # "parallel" axis usable by both v7x TensorCores).
    key, kx2 = jax.random.split(key)
    B2, W2 = 2048, 40
    x2 = jax.random.normal(kx2, (B2, C_IN, W2), dtype=jnp.float32)
    out2 = jax.block_until_ready(dilated_net_forward(x2, params))
    ref2 = reference_forward(x2, params)
    assert out2.shape == (B2, 1), out2.shape
    assert jnp.allclose(out2, ref2, atol=1e-5, rtol=1e-5)

    # Optional bf16-packed input path (halves kernel HBM bytes; compute stays
    # f32).  Tolerance is loosened because the input is quantized to bf16.
    out3 = jax.block_until_ready(
        dilated_net_forward(x2, params, pack_dtype=jnp.bfloat16))
    assert out3.shape == (B2, 1), out3.shape
    assert jnp.allclose(out3, ref2, atol=1e-1, rtol=1e-1)

    print("KERNEL_OK")
</pallas_src>

<mosaic_0001>
module attributes {stable_mosaic.version = 11 : i64} {
  func.func @_dilated_net_kernel(%arg0: i32, %arg1: memref<60xf32, #tpu.memory_space<smem>>, %arg2: memref<68x8x128xf32, #tpu.memory_space<vmem>>, %arg3: memref<8x128xf32, #tpu.memory_space<vmem>>) attributes {dimension_semantics = [#tpu.dimension_semantics<parallel>], iteration_bounds = array<i64: 1>, scalar_prefetch = 1 : i64, scratch_operands = 0 : i64, tpu.core_type = #tpu.core_type<tc>, window_params = [{transform_indices = @transform_0, window_bounds = array<i64: 68, 8, 128>}, {transform_indices = @transform_1, window_bounds = array<i64: 8, 128>}]} {
    %c0 = arith.constant 0 : index
    %0 = memref.load %arg1[%c0] : memref<60xf32, #tpu.memory_space<smem>>
    %c1 = arith.constant 1 : index
    %1 = memref.load %arg1[%c1] : memref<60xf32, #tpu.memory_space<smem>>
    %c2 = arith.constant 2 : index
    %2 = memref.load %arg1[%c2] : memref<60xf32, #tpu.memory_space<smem>>
    %c3 = arith.constant 3 : index
    %3 = memref.load %arg1[%c3] : memref<60xf32, #tpu.memory_space<smem>>
    %c4 = arith.constant 4 : index
    %4 = memref.load %arg1[%c4] : memref<60xf32, #tpu.memory_space<smem>>
    %c5 = arith.constant 5 : index
    %5 = memref.load %arg1[%c5] : memref<60xf32, #tpu.memory_space<smem>>
    %c6 = arith.constant 6 : index
    %6 = memref.load %arg1[%c6] : memref<60xf32, #tpu.memory_space<smem>>
    %c7 = arith.constant 7 : index
    %7 = memref.load %arg1[%c7] : memref<60xf32, #tpu.memory_space<smem>>
    %c8 = arith.constant 8 : index
    %8 = memref.load %arg1[%c8] : memref<60xf32, #tpu.memory_space<smem>>
    %c9 = arith.constant 9 : index
    %9 = memref.load %arg1[%c9] : memref<60xf32, #tpu.memory_space<smem>>
    %c10 = arith.constant 10 : index
    %10 = memref.load %arg1[%c10] : memref<60xf32, #tpu.memory_space<smem>>
    %c11 = arith.constant 11 : index
    %11 = memref.load %arg1[%c11] : memref<60xf32, #tpu.memory_space<smem>>
    %c12 = arith.constant 12 : index
    %12 = memref.load %arg1[%c12] : memref<60xf32, #tpu.memory_space<smem>>
    %c13 = arith.constant 13 : index
    %13 = memref.load %arg1[%c13] : memref<60xf32, #tpu.memory_space<smem>>
    %c14 = arith.constant 14 : index
    %14 = memref.load %arg1[%c14] : memref<60xf32, #tpu.memory_space<smem>>
    %c15 = arith.constant 15 : index
    %15 = memref.load %arg1[%c15] : memref<60xf32, #tpu.memory_space<smem>>
    %c16 = arith.constant 16 : index
    %16 = memref.load %arg1[%c16] : memref<60xf32, #tpu.memory_space<smem>>
    %c17 = arith.constant 17 : index
    %17 = memref.load %arg1[%c17] : memref<60xf32, #tpu.memory_space<smem>>
    %c18 = arith.constant 18 : index
    %18 = memref.load %arg1[%c18] : memref<60xf32, #tpu.memory_space<smem>>
    %c19 = arith.constant 19 : index
    %19 = memref.load %arg1[%c19] : memref<60xf32, #tpu.memory_space<smem>>
    %c20 = arith.constant 20 : index
    %20 = memref.load %arg1[%c20] : memref<60xf32, #tpu.memory_space<smem>>
    %c21 = arith.constant 21 : index
    %21 = memref.load %arg1[%c21] : memref<60xf32, #tpu.memory_space<smem>>
    %c22 = arith.constant 22 : index
    %22 = memref.load %arg1[%c22] : memref<60xf32, #tpu.memory_space<smem>>
    %c23 = arith.constant 23 : index
    %23 = memref.load %arg1[%c23] : memref<60xf32, #tpu.memory_space<smem>>
    %c24 = arith.constant 24 : index
    %24 = memref.load %arg1[%c24] : memref<60xf32, #tpu.memory_space<smem>>
    %c25 = arith.constant 25 : index
    %25 = memref.load %arg1[%c25] : memref<60xf32, #tpu.memory_space<smem>>
    %c26 = arith.constant 26 : index
    %26 = memref.load %arg1[%c26] : memref<60xf32, #tpu.memory_space<smem>>
    %c27 = arith.constant 27 : index
    %27 = memref.load %arg1[%c27] : memref<60xf32, #tpu.memory_space<smem>>
    %c28 = arith.constant 28 : index
    %28 = memref.load %arg1[%c28] : memref<60xf32, #tpu.memory_space<smem>>
    %c29 = arith.constant 29 : index
    %29 = memref.load %arg1[%c29] : memref<60xf32, #tpu.memory_space<smem>>
    %c30 = arith.constant 30 : index
    %30 = memref.load %arg1[%c30] : memref<60xf32, #tpu.memory_space<smem>>
    %c31 = arith.constant 31 : index
    %31 = memref.load %arg1[%c31] : memref<60xf32, #tpu.memory_space<smem>>
    %c32 = arith.constant 32 : index
    %32 = memref.load %arg1[%c32] : memref<60xf32, #tpu.memory_space<smem>>
    %c33 = arith.constant 33 : index
    %33 = memref.load %arg1[%c33] : memref<60xf32, #tpu.memory_space<smem>>
    %c34 = arith.constant 34 : index
    %34 = memref.load %arg1[%c34] : memref<60xf32, #tpu.memory_space<smem>>
    %c35 = arith.constant 35 : index
    %35 = memref.load %arg1[%c35] : memref<60xf32, #tpu.memory_space<smem>>
    %c36 = arith.constant 36 : index
    %36 = memref.load %arg1[%c36] : memref<60xf32, #tpu.memory_space<smem>>
    %c37 = arith.constant 37 : index
    %37 = memref.load %arg1[%c37] : memref<60xf32, #tpu.memory_space<smem>>
    %c38 = arith.constant 38 : index
    %38 = memref.load %arg1[%c38] : memref<60xf32, #tpu.memory_space<smem>>
    %c39 = arith.constant 39 : index
    %39 = memref.load %arg1[%c39] : memref<60xf32, #tpu.memory_space<smem>>
    %c40 = arith.constant 40 : index
    %40 = memref.load %arg1[%c40] : memref<60xf32, #tpu.memory_space<smem>>
    %c41 = arith.constant 41 : index
    %41 = memref.load %arg1[%c41] : memref<60xf32, #tpu.memory_space<smem>>
    %c42 = arith.constant 42 : index
    %42 = memref.load %arg1[%c42] : memref<60xf32, #tpu.memory_space<smem>>
    %c43 = arith.constant 43 : index
    %43 = memref.load %arg1[%c43] : memref<60xf32, #tpu.memory_space<smem>>
    %c44 = arith.constant 44 : index
    %44 = memref.load %arg1[%c44] : memref<60xf32, #tpu.memory_space<smem>>
    %c45 = arith.constant 45 : index
    %45 = memref.load %arg1[%c45] : memref<60xf32, #tpu.memory_space<smem>>
    %c46 = arith.constant 46 : index
    %46 = memref.load %arg1[%c46] : memref<60xf32, #tpu.memory_space<smem>>
    %c47 = arith.constant 47 : index
    %47 = memref.load %arg1[%c47] : memref<60xf32, #tpu.memory_space<smem>>
    %c48 = arith.constant 48 : index
    %48 = memref.load %arg1[%c48] : memref<60xf32, #tpu.memory_space<smem>>
    %c49 = arith.constant 49 : index
    %49 = memref.load %arg1[%c49] : memref<60xf32, #tpu.memory_space<smem>>
    %c50 = arith.constant 50 : index
    %50 = memref.load %arg1[%c50] : memref<60xf32, #tpu.memory_space<smem>>
    %c51 = arith.constant 51 : index
    %51 = memref.load %arg1[%c51] : memref<60xf32, #tpu.memory_space<smem>>
    %c52 = arith.constant 52 : index
    %52 = memref.load %arg1[%c52] : memref<60xf32, #tpu.memory_space<smem>>
    %c53 = arith.constant 53 : index
    %53 = memref.load %arg1[%c53] : memref<60xf32, #tpu.memory_space<smem>>
    %c54 = arith.constant 54 : index
    %54 = memref.load %arg1[%c54] : memref<60xf32, #tpu.memory_space<smem>>
    %c55 = arith.constant 55 : index
    %55 = memref.load %arg1[%c55] : memref<60xf32, #tpu.memory_space<smem>>
    %c56 = arith.constant 56 : index
    %56 = memref.load %arg1[%c56] : memref<60xf32, #tpu.memory_space<smem>>
    %c57 = arith.constant 57 : index
    %57 = memref.load %arg1[%c57] : memref<60xf32, #tpu.memory_space<smem>>
    %c58 = arith.constant 58 : index
    %58 = memref.load %arg1[%c58] : memref<60xf32, #tpu.memory_space<smem>>
    %c59 = arith.constant 59 : index
    %59 = memref.load %arg1[%c59] : memref<60xf32, #tpu.memory_space<smem>>
    %c0_i32 = arith.constant 0 : i32
    %c8_i32 = arith.constant 8 : i32
    %60 = arith.muli %c0_i32, %c8_i32 : i32
    %61 = tpu.assume_multiple %60, 8 : i32
    %c0_0 = arith.constant 0 : index
    %62 = arith.index_cast %61 : i32 to index
    %c0_1 = arith.constant 0 : index
    %63 = vector.load %arg2[%c0_0, %62, %c0_1] : memref<68x8x128xf32, #tpu.memory_space<vmem>>, vector<1x8x128xf32>
    %64 = vector.shape_cast %63 : vector<1x8x128xf32> to vector<8x128xf32>
    %65 = vector.broadcast %0 : f32 to vector<8x128xf32>
    %66 = arith.mulf %65, %64 : vector<8x128xf32>
    %c1_2 = arith.constant 1 : index
    %67 = arith.index_cast %61 : i32 to index
    %c0_3 = arith.constant 0 : index
    %68 = vector.load %arg2[%c1_2, %67, %c0_3] : memref<68x8x128xf32, #tpu.memory_space<vmem>>, vector<1x8x128xf32>
    %69 = vector.shape_cast %68 : vector<1x8x128xf32> to vector<8x128xf32>
    %70 = vector.broadcast %1 : f32 to vector<8x128xf32>
    %71 = arith.mulf %70, %69 : vector<8x128xf32>
    %72 = arith.addf %66, %71 : vector<8x128xf32>
    %c17_4 = arith.constant 17 : index
    %73 = arith.index_cast %61 : i32 to index
    %c0_5 = arith.constant 0 : index
    %74 = vector.load %arg2[%c17_4, %73, %c0_5] : memref<68x8x128xf32, #tpu.memory_space<vmem>>, vector<1x8x128xf32>
    %75 = vector.shape_cast %74 : vector<1x8x128xf32> to vector<8x128xf32>
    %76 = vector.broadcast %2 : f32 to vector<8x128xf32>
    %77 = arith.mulf %76, %75 : vector<8x128xf32>
    %c18_6 = arith.constant 18 : index
    %78 = arith.index_cast %61 : i32 to index
    %c0_7 = arith.constant 0 : index
    %79 = vector.load %arg2[%c18_6, %78, %c0_7] : memref<68x8x128xf32, #tpu.memory_space<vmem>>, vector<1x8x128xf32>
    %80 = vector.shape_cast %79 : vector<1x8x128xf32> to vector<8x128xf32>
    %81 = vector.broadcast %3 : f32 to vector<8x128xf32>
    %82 = arith.mulf %81, %80 : vector<8x128xf32>
    %83 = arith.addf %77, %82 : vector<8x128xf32>
    %84 = arith.addf %72, %83 : vector<8x128xf32>
    %c34_8 = arith.constant 34 : index
    %85 = arith.index_cast %61 : i32 to index
    %c0_9 = arith.constant 0 : index
    %86 = vector.load %arg2[%c34_8, %85, %c0_9] : memref<68x8x128xf32, #tpu.memory_space<vmem>>, vector<1x8x128xf32>
    %87 = vector.shape_cast %86 : vector<1x8x128xf32> to vector<8x128xf32>
    %88 = vector.broadcast %4 : f32 to vector<8x128xf32>
    %89 = arith.mulf %88, %87 : vector<8x128xf32>
    %c35_10 = arith.constant 35 : index
    %90 = arith.index_cast %61 : i32 to index
    %c0_11 = arith.constant 0 : index
    %91 = vector.load %arg2[%c35_10, %90, %c0_11] : memref<68x8x128xf32, #tpu.memory_space<vmem>>, vector<1x8x128xf32>
    %92 = vector.shape_cast %91 : vector<1x8x128xf32> to vector<8x128xf32>
    %93 = vector.broadcast %5 : f32 to vector<8x128xf32>
    %94 = arith.mulf %93, %92 : vector<8x128xf32>
    %95 = arith.addf %89, %94 : vector<8x128xf32>
    %96 = arith.addf %84, %95 : vector<8x128xf32>
    %c51_12 = arith.constant 51 : index
    %97 = arith.index_cast %61 : i32 to index
    %c0_13 = arith.constant 0 : index
    %98 = vector.load %arg2[%c51_12, %97, %c0_13] : memref<68x8x128xf32, #tpu.memory_space<vmem>>, vector<1x8x128xf32>
    %99 = vector.shape_cast %98 : vector<1x8x128xf32> to vector<8x128xf32>
    %100 = vector.broadcast %6 : f32 to vector<8x128xf32>
    %101 = arith.mulf %100, %99 : vector<8x128xf32>
    %c52_14 = arith.constant 52 : index
    %102 = arith.index_cast %61 : i32 to index
    %c0_15 = arith.constant 0 : index
    %103 = vector.load %arg2[%c52_14, %102, %c0_15] : memref<68x8x128xf32, #tpu.memory_space<vmem>>, vector<1x8x128xf32>
    %104 = vector.shape_cast %103 : vector<1x8x128xf32> to vector<8x128xf32>
    %105 = vector.broadcast %7 : f32 to vector<8x128xf32>
    %106 = arith.mulf %105, %104 : vector<8x128xf32>
    %107 = arith.addf %101, %106 : vector<8x128xf32>
    %108 = arith.addf %96, %107 : vector<8x128xf32>
    %109 = vector.broadcast %16 : f32 to vector<8x128xf32>
    %110 = arith.addf %108, %109 : vector<8x128xf32>
    %cst = arith.constant 0.000000e+00 : f32
    %111 = vector.broadcast %cst : f32 to vector<8x128xf32>
    %112 = arith.maximumf %110, %111 : vector<8x128xf32>
    %113 = vector.broadcast %8 : f32 to vector<8x128xf32>
    %114 = arith.mulf %113, %64 : vector<8x128xf32>
    %115 = vector.broadcast %9 : f32 to vector<8x128xf32>
    %116 = arith.mulf %115, %69 : vector<8x128xf32>
    %117 = arith.addf %114, %116 : vector<8x128xf32>
    %118 = vector.broadcast %10 : f32 to vector<8x128xf32>
    %119 = arith.mulf %118, %75 : vector<8x128xf32>
    %120 = vector.broadcast %11 : f32 to vector<8x128xf32>
    %121 = arith.mulf %120, %80 : vector<8x128xf32>
    %122 = arith.addf %119, %121 : vector<8x128xf32>
    %123 = arith.addf %117, %122 : vector<8x128xf32>
    %124 = vector.broadcast %12 : f32 to vector<8x128xf32>
    %125 = arith.mulf %124, %87 : vector<8x128xf32>
    %126 = vector.broadcast %13 : f32 to vector<8x128xf32>
    %127 = arith.mulf %126, %92 : vector<8x128xf32>
    %128 = arith.addf %125, %127 : vector<8x128xf32>
    %129 = arith.addf %123, %128 : vector<8x128xf32>
    %130 = vector.broadcast %14 : f32 to vector<8x128xf32>
    %131 = arith.mulf %130, %99 : vector<8x128xf32>
    %132 = vector.broadcast %15 : f32 to vector<8x128xf32>
    %133 = arith.mulf %132, %104 : vector<8x128xf32>
    %134 = arith.addf %131, %133 : vector<8x128xf32>
    %135 = arith.addf %129, %134 : vector<8x128xf32>
    %136 = vector.broadcast %17 : f32 to vector<8x128xf32>
    %137 = arith.addf %135, %136 : vector<8x128xf32>
    %cst_16 = arith.constant 0.000000e+00 : f32
    %138 = vector.broadcast %cst_16 : f32 to vector<8x128xf32>
    %139 = arith.maximumf %137, %138 : vector<8x128xf32>
    %140 = vector.broadcast %0 : f32 to vector<8x128xf32>
    %141 = arith.mulf %140, %69 : vector<8x128xf32>
    %c2_17 = arith.constant 2 : index
    %142 = arith.index_cast %61 : i32 to index
    %c0_18 = arith.constant 0 : index
    %143 = vector.load %arg2[%c2_17, %142, %c0_18] : memref<68x8x128xf32, #tpu.memory_space<vmem>>, vector<1x8x128xf32>
    %144 = vector.shape_cast %143 : vector<1x8x128xf32> to vector<8x128xf32>
    %145 = vector.broadcast %1 : f32 to vector<8x128xf32>
    %146 = arith.mulf %145, %144 : vector<8x128xf32>
    %147 = arith.addf %141, %146 : vector<8x128xf32>
    %148 = vector.broadcast %2 : f32 to vector<8x128xf32>
    %149 = arith.mulf %148, %80 : vector<8x128xf32>
    %c19_19 = arith.constant 19 : index
    %150 = arith.index_cast %61 : i32 to index
    %c0_20 = arith.constant 0 : index
    %151 = vector.load %arg2[%c19_19, %150, %c0_20] : memref<68x8x128xf32, #tpu.memory_space<vmem>>, vector<1x8x128xf32>
    %152 = vector.shape_cast %151 : vector<1x8x128xf32> to vector<8x128xf32>
    %153 = vector.broadcast %3 : f32 to vector<8x128xf32>
    %154 = arith.mulf %153, %152 : vector<8x128xf32>
    %155 = arith.addf %149, %154 : vector<8x128xf32>
    %156 = arith.addf %147, %155 : vector<8x128xf32>
    %157 = vector.broadcast %4 : f32 to vector<8x128xf32>
    %158 = arith.mulf %157, %92 : vector<8x128xf32>
    %c36_21 = arith.constant 36 : index
    %159 = arith.index_cast %61 : i32 to index
    %c0_22 = arith.constant 0 : index
    %160 = vector.load %arg2[%c36_21, %159, %c0_22] : memref<68x8x128xf32, #tpu.memory_space<vmem>>, vector<1x8x128xf32>
    %161 = vector.shape_cast %160 : vector<1x8x128xf32> to vector<8x128xf32>
    %162 = vector.broadcast %5 : f32 to vector<8x128xf32>
    %163 = arith.mulf %162, %161 : vector<8x128xf32>
    %164 = arith.addf %158, %163 : vector<8x128xf32>
    %165 = arith.addf %156, %164 : vector<8x128xf32>
    %166 = vector.broadcast %6 : f32 to vector<8x128xf32>
    %167 = arith.mulf %166, %104 : vector<8x128xf32>
    %c53_23 = arith.constant 53 : index
    %168 = arith.index_cast %61 : i32 to index
    %c0_24 = arith.constant 0 : index
    %169 = vector.load %arg2[%c53_23, %168, %c0_24] : memref<68x8x128xf32, #tpu.memory_space<vmem>>, vector<1x8x128xf32>
    %170 = vector.shape_cast %169 : vector<1x8x128xf32> to vector<8x128xf32>
    %171 = vector.broadcast %7 : f32 to vector<8x128xf32>
    %172 = arith.mulf %171, %170 : vector<8x128xf32>
    %173 = arith.addf %167, %172 : vector<8x128xf32>
    %174 = arith.addf %165, %173 : vector<8x128xf32>
    %175 = vector.broadcast %16 : f32 to vector<8x128xf32>
    %176 = arith.addf %174, %175 : vector<8x128xf32>
    %cst_25 = arith.constant 0.000000e+00 : f32
    %177 = vector.broadcast %cst_25 : f32 to vector<8x128xf32>
    %178 = arith.maximumf %176, %177 : vector<8x128xf32>
    %179 = vector.broadcast %8 : f32 to vector<8x128xf32>
    %180 = arith.mulf %179, %69 : vector<8x128xf32>
    %181 = vector.broadcast %9 : f32 to vector<8x128xf32>
    %182 = arith.mulf %181, %144 : vector<8x128xf32>
    %183 = arith.addf %180, %182 : vector<8x128xf32>
    %184 = vector.broadcast %10 : f32 to vector<8x128xf32>
    %185 = arith.mulf %184, %80 : vector<8x128xf32>
    %186 = vector.broadcast %11 : f32 to vector<8x128xf32>
    %187 = arith.mulf %186, %152 : vector<8x128xf32>
    %188 = arith.addf %185, %187 : vector<8x128xf32>
    %189 = arith.addf %183, %188 : vector<8x128xf32>
    %190 = vector.broadcast %12 : f32 to vector<8x128xf32>
    %191 = arith.mulf %190, %92 : vector<8x128xf32>
    %192 = vector.broadcast %13 : f32 to vector<8x128xf32>
    %193 = arith.mulf %192, %161 : vector<8x128xf32>
    %194 = arith.addf %191, %193 : vector<8x128xf32>
    %195 = arith.addf %189, %194 : vector<8x128xf32>
    %196 = vector.broadcast %14 : f32 to vector<8x128xf32>
    %197 = arith.mulf %196, %104 : vector<8x128xf32>
    %198 = vector.broadcast %15 : f32 to vector<8x128xf32>
    %199 = arith.mulf %198, %170 : vector<8x128xf32>
    %200 = arith.addf %197, %199 : vector<8x128xf32>
    %201 = arith.addf %195, %200 : vector<8x128xf32>
    %202 = vector.broadcast %17 : f32 to vector<8x128xf32>
    %203 = arith.addf %201, %202 : vector<8x128xf32>
    %cst_26 = arith.constant 0.000000e+00 : f32
    %204 = vector.broadcast %cst_26 : f32 to vector<8x128xf32>
    %205 = arith.maximumf %203, %204 : vector<8x128xf32>
    %206 = vector.broadcast %0 : f32 to vector<8x128xf32>
    %207 = arith.mulf %206, %144 : vector<8x128xf32>
    %c3_27 = arith.constant 3 : index
    %208 = arith.index_cast %61 : i32 to index
    %c0_28 = arith.constant 0 : index
    %209 = vector.load %arg2[%c3_27, %208, %c0_28] : memref<68x8x128xf32, #tpu.memory_space<vmem>>, vector<1x8x128xf32>
    %210 = vector.shape_cast %209 : vector<1x8x128xf32> to vector<8x128xf32>
    %211 = vector.broadcast %1 : f32 to vector<8x128xf32>
    %212 = arith.mulf %211, %210 : vector<8x128xf32>
    %213 = arith.addf %207, %212 : vector<8x128xf32>
    %214 = vector.broadcast %2 : f32 to vector<8x128xf32>
    %215 = arith.mulf %214, %152 : vector<8x128xf32>
    %c20_29 = arith.constant 20 : index
    %216 = arith.index_cast %61 : i32 to index
    %c0_30 = arith.constant 0 : index
    %217 = vector.load %arg2[%c20_29, %216, %c0_30] : memref<68x8x128xf32, #tpu.memory_space<vmem>>, vector<1x8x128xf32>
    %218 = vector.shape_cast %217 : vector<1x8x128xf32> to vector<8x128xf32>
    %219 = vector.broadcast %3 : f32 to vector<8x128xf32>
    %220 = arith.mulf %219, %218 : vector<8x128xf32>
    %221 = arith.addf %215, %220 : vector<8x128xf32>
    %222 = arith.addf %213, %221 : vector<8x128xf32>
    %223 = vector.broadcast %4 : f32 to vector<8x128xf32>
    %224 = arith.mulf %223, %161 : vector<8x128xf32>
    %c37_31 = arith.constant 37 : index
    %225 = arith.index_cast %61 : i32 to index
    %c0_32 = arith.constant 0 : index
    %226 = vector.load %arg2[%c37_31, %225, %c0_32] : memref<68x8x128xf32, #tpu.memory_space<vmem>>, vector<1x8x128xf32>
    %227 = vector.shape_cast %226 : vector<1x8x128xf32> to vector<8x128xf32>
    %228 = vector.broadcast %5 : f32 to vector<8x128xf32>
    %229 = arith.mulf %228, %227 : vector<8x128xf32>
    %230 = arith.addf %224, %229 : vector<8x128xf32>
    %231 = arith.addf %222, %230 : vector<8x128xf32>
    %232 = vector.broadcast %6 : f32 to vector<8x128xf32>
    %233 = arith.mulf %232, %170 : vector<8x128xf32>
    %c54_33 = arith.constant 54 : index
    %234 = arith.index_cast %61 : i32 to index
    %c0_34 = arith.constant 0 : index
    %235 = vector.load %arg2[%c54_33, %234, %c0_34] : memref<68x8x128xf32, #tpu.memory_space<vmem>>, vector<1x8x128xf32>
    %236 = vector.shape_cast %235 : vector<1x8x128xf32> to vector<8x128xf32>
    %237 = vector.broadcast %7 : f32 to vector<8x128xf32>
    %238 = arith.mulf %237, %236 : vector<8x128xf32>
    %239 = arith.addf %233, %238 : vector<8x128xf32>
    %240 = arith.addf %231, %239 : vector<8x128xf32>
    %241 = vector.broadcast %16 : f32 to vector<8x128xf32>
    %242 = arith.addf %240, %241 : vector<8x128xf32>
    %cst_35 = arith.constant 0.000000e+00 : f32
    %243 = vector.broadcast %cst_35 : f32 to vector<8x128xf32>
    %244 = arith.maximumf %242, %243 : vector<8x128xf32>
    %245 = vector.broadcast %8 : f32 to vector<8x128xf32>
    %246 = arith.mulf %245, %144 : vector<8x128xf32>
    %247 = vector.broadcast %9 : f32 to vector<8x128xf32>
    %248 = arith.mulf %247, %210 : vector<8x128xf32>
    %249 = arith.addf %246, %248 : vector<8x128xf32>
    %250 = vector.broadcast %10 : f32 to vector<8x128xf32>
    %251 = arith.mulf %250, %152 : vector<8x128xf32>
    %252 = vector.broadcast %11 : f32 to vector<8x128xf32>
    %253 = arith.mulf %252, %218 : vector<8x128xf32>
    %254 = arith.addf %251, %253 : vector<8x128xf32>
    %255 = arith.addf %249, %254 : vector<8x128xf32>
    %256 = vector.broadcast %12 : f32 to vector<8x128xf32>
    %257 = arith.mulf %256, %161 : vector<8x128xf32>
    %258 = vector.broadcast %13 : f32 to vector<8x128xf32>
    %259 = arith.mulf %258, %227 : vector<8x128xf32>
    %260 = arith.addf %257, %259 : vector<8x128xf32>
    %261 = arith.addf %255, %260 : vector<8x128xf32>
    %262 = vector.broadcast %14 : f32 to vector<8x128xf32>
    %263 = arith.mulf %262, %170 : vector<8x128xf32>
    %264 = vector.broadcast %15 : f32 to vector<8x128xf32>
    %265 = arith.mulf %264, %236 : vector<8x128xf32>
    %266 = arith.addf %263, %265 : vector<8x128xf32>
    %267 = arith.addf %261, %266 : vector<8x128xf32>
    %268 = vector.broadcast %17 : f32 to vector<8x128xf32>
    %269 = arith.addf %267, %268 : vector<8x128xf32>
    %cst_36 = arith.constant 0.000000e+00 : f32
    %270 = vector.broadcast %cst_36 : f32 to vector<8x128xf32>
    %271 = arith.maximumf %269, %270 : vector<8x128xf32>
    %272 = vector.broadcast %0 : f32 to vector<8x128xf32>
    %273 = arith.mulf %272, %210 : vector<8x128xf32>
    %c4_37 = arith.constant 4 : index
    %274 = arith.index_cast %61 : i32 to index
    %c0_38 = arith.constant 0 : index
    %275 = vector.load %arg2[%c4_37, %274, %c0_38] : memref<68x8x128xf32, #tpu.memory_space<vmem>>, vector<1x8x128xf32>
    %276 = vector.shape_cast %275 : vector<1x8x128xf32> to vector<8x128xf32>
    %277 = vector.broadcast %1 : f32 to vector<8x128xf32>
    %278 = arith.mulf %277, %276 : vector<8x128xf32>
    %279 = arith.addf %273, %278 : vector<8x128xf32>
    %280 = vector.broadcast %2 : f32 to vector<8x128xf32>
    %281 = arith.mulf %280, %218 : vector<8x128xf32>
    %c21_39 = arith.constant 21 : index
    %282 = arith.index_cast %61 : i32 to index
    %c0_40 = arith.constant 0 : index
    %283 = vector.load %arg2[%c21_39, %282, %c0_40] : memref<68x8x128xf32, #tpu.memory_space<vmem>>, vector<1x8x128xf32>
    %284 = vector.shape_cast %283 : vector<1x8x128xf32> to vector<8x128xf32>
    %285 = vector.broadcast %3 : f32 to vector<8x128xf32>
    %286 = arith.mulf %285, %284 : vector<8x128xf32>
    %287 = arith.addf %281, %286 : vector<8x128xf32>
    %288 = arith.addf %279, %287 : vector<8x128xf32>
    %289 = vector.broadcast %4 : f32 to vector<8x128xf32>
    %290 = arith.mulf %289, %227 : vector<8x128xf32>
    %c38_41 = arith.constant 38 : index
    %291 = arith.index_cast %61 : i32 to index
    %c0_42 = arith.constant 0 : index
    %292 = vector.load %arg2[%c38_41, %291, %c0_42] : memref<68x8x128xf32, #tpu.memory_space<vmem>>, vector<1x8x128xf32>
    %293 = vector.shape_cast %292 : vector<1x8x128xf32> to vector<8x128xf32>
    %294 = vector.broadcast %5 : f32 to vector<8x128xf32>
    %295 = arith.mulf %294, %293 : vector<8x128xf32>
    %296 = arith.addf %290, %295 : vector<8x128xf32>
    %297 = arith.addf %288, %296 : vector<8x128xf32>
    %298 = vector.broadcast %6 : f32 to vector<8x128xf32>
    %299 = arith.mulf %298, %236 : vector<8x128xf32>
    %c55_43 = arith.constant 55 : index
    %300 = arith.index_cast %61 : i32 to index
    %c0_44 = arith.constant 0 : index
    %301 = vector.load %arg2[%c55_43, %300, %c0_44] : memref<68x8x128xf32, #tpu.memory_space<vmem>>, vector<1x8x128xf32>
    %302 = vector.shape_cast %301 : vector<1x8x128xf32> to vector<8x128xf32>
    %303 = vector.broadcast %7 : f32 to vector<8x128xf32>
    %304 = arith.mulf %303, %302 : vector<8x128xf32>
    %305 = arith.addf %299, %304 : vector<8x128xf32>
    %306 = arith.addf %297, %305 : vector<8x128xf32>
    %307 = vector.broadcast %16 : f32 to vector<8x128xf32>
    %308 = arith.addf %306, %307 : vector<8x128xf32>
    %cst_45 = arith.constant 0.000000e+00 : f32
    %309 = vector.broadcast %cst_45 : f32 to vector<8x128xf32>
    %310 = arith.maximumf %308, %309 : vector<8x128xf32>
    %311 = vector.broadcast %8 : f32 to vector<8x128xf32>
    %312 = arith.mulf %311, %210 : vector<8x128xf32>
    %313 = vector.broadcast %9 : f32 to vector<8x128xf32>
    %314 = arith.mulf %313, %276 : vector<8x128xf32>
    %315 = arith.addf %312, %314 : vector<8x128xf32>
    %316 = vector.broadcast %10 : f32 to vector<8x128xf32>
    %317 = arith.mulf %316, %218 : vector<8x128xf32>
    %318 = vector.broadcast %11 : f32 to vector<8x128xf32>
    %319 = arith.mulf %318, %284 : vector<8x128xf32>
    %320 = arith.addf %317, %319 : vector<8x128xf32>
    %321 = arith.addf %315, %320 : vector<8x128xf32>
    %322 = vector.broadcast %12 : f32 to vector<8x128xf32>
    %323 = arith.mulf %322, %227 : vector<8x128xf32>
    %324 = vector.broadcast %13 : f32 to vector<8x128xf32>
    %325 = arith.mulf %324, %293 : vector<8x128xf32>
    %326 = arith.addf %323, %325 : vector<8x128xf32>
    %327 = arith.addf %321, %326 : vector<8x128xf32>
    %328 = vector.broadcast %14 : f32 to vector<8x128xf32>
    %329 = arith.mulf %328, %236 : vector<8x128xf32>
    %330 = vector.broadcast %15 : f32 to vector<8x128xf32>
    %331 = arith.mulf %330, %302 : vector<8x128xf32>
    %332 = arith.addf %329, %331 : vector<8x128xf32>
    %333 = arith.addf %327, %332 : vector<8x128xf32>
    %334 = vector.broadcast %17 : f32 to vector<8x128xf32>
    %335 = arith.addf %333, %334 : vector<8x128xf32>
    %cst_46 = arith.constant 0.000000e+00 : f32
    %336 = vector.broadcast %cst_46 : f32 to vector<8x128xf32>
    %337 = arith.maximumf %335, %336 : vector<8x128xf32>
    %338 = vector.broadcast %0 : f32 to vector<8x128xf32>
    %339 = arith.mulf %338, %276 : vector<8x128xf32>
    %c5_47 = arith.constant 5 : index
    %340 = arith.index_cast %61 : i32 to index
    %c0_48 = arith.constant 0 : index
    %341 = vector.load %arg2[%c5_47, %340, %c0_48] : memref<68x8x128xf32, #tpu.memory_space<vmem>>, vector<1x8x128xf32>
    %342 = vector.shape_cast %341 : vector<1x8x128xf32> to vector<8x128xf32>
    %343 = vector.broadcast %1 : f32 to vector<8x128xf32>
    %344 = arith.mulf %343, %342 : vector<8x128xf32>
    %345 = arith.addf %339, %344 : vector<8x128xf32>
    %346 = vector.broadcast %2 : f32 to vector<8x128xf32>
    %347 = arith.mulf %346, %284 : vector<8x128xf32>
    %c22_49 = arith.constant 22 : index
    %348 = arith.index_cast %61 : i32 to index
    %c0_50 = arith.constant 0 : index
    %349 = vector.load %arg2[%c22_49, %348, %c0_50] : memref<68x8x128xf32, #tpu.memory_space<vmem>>, vector<1x8x128xf32>
    %350 = vector.shape_cast %349 : vector<1x8x128xf32> to vector<8x128xf32>
    %351 = vector.broadcast %3 : f32 to vector<8x128xf32>
    %352 = arith.mulf %351, %350 : vector<8x128xf32>
    %353 = arith.addf %347, %352 : vector<8x128xf32>
    %354 = arith.addf %345, %353 : vector<8x128xf32>
    %355 = vector.broadcast %4 : f32 to vector<8x128xf32>
    %356 = arith.mulf %355, %293 : vector<8x128xf32>
    %c39_51 = arith.constant 39 : index
    %357 = arith.index_cast %61 : i32 to index
    %c0_52 = arith.constant 0 : index
    %358 = vector.load %arg2[%c39_51, %357, %c0_52] : memref<68x8x128xf32, #tpu.memory_space<vmem>>, vector<1x8x128xf32>
    %359 = vector.shape_cast %358 : vector<1x8x128xf32> to vector<8x128xf32>
    %360 = vector.broadcast %5 : f32 to vector<8x128xf32>
    %361 = arith.mulf %360, %359 : vector<8x128xf32>
    %362 = arith.addf %356, %361 : vector<8x128xf32>
    %363 = arith.addf %354, %362 : vector<8x128xf32>
    %364 = vector.broadcast %6 : f32 to vector<8x128xf32>
    %365 = arith.mulf %364, %302 : vector<8x128xf32>
    %c56_53 = arith.constant 56 : index
    %366 = arith.index_cast %61 : i32 to index
    %c0_54 = arith.constant 0 : index
    %367 = vector.load %arg2[%c56_53, %366, %c0_54] : memref<68x8x128xf32, #tpu.memory_space<vmem>>, vector<1x8x128xf32>
    %368 = vector.shape_cast %367 : vector<1x8x128xf32> to vector<8x128xf32>
    %369 = vector.broadcast %7 : f32 to vector<8x128xf32>
    %370 = arith.mulf %369, %368 : vector<8x128xf32>
    %371 = arith.addf %365, %370 : vector<8x128xf32>
    %372 = arith.addf %363, %371 : vector<8x128xf32>
    %373 = vector.broadcast %16 : f32 to vector<8x128xf32>
    %374 = arith.addf %372, %373 : vector<8x128xf32>
    %cst_55 = arith.constant 0.000000e+00 : f32
    %375 = vector.broadcast %cst_55 : f32 to vector<8x128xf32>
    %376 = arith.maximumf %374, %375 : vector<8x128xf32>
    %377 = vector.broadcast %8 : f32 to vector<8x128xf32>
    %378 = arith.mulf %377, %276 : vector<8x128xf32>
    %379 = vector.broadcast %9 : f32 to vector<8x128xf32>
    %380 = arith.mulf %379, %342 : vector<8x128xf32>
    %381 = arith.addf %378, %380 : vector<8x128xf32>
    %382 = vector.broadcast %10 : f32 to vector<8x128xf32>
    %383 = arith.mulf %382, %284 : vector<8x128xf32>
    %384 = vector.broadcast %11 : f32 to vector<8x128xf32>
    %385 = arith.mulf %384, %350 : vector<8x128xf32>
    %386 = arith.addf %383, %385 : vector<8x128xf32>
    %387 = arith.addf %381, %386 : vector<8x128xf32>
    %388 = vector.broadcast %12 : f32 to vector<8x128xf32>
    %389 = arith.mulf %388, %293 : vector<8x128xf32>
    %390 = vector.broadcast %13 : f32 to vector<8x128xf32>
    %391 = arith.mulf %390, %359 : vector<8x128xf32>
    %392 = arith.addf %389, %391 : vector<8x128xf32>
    %393 = arith.addf %387, %392 : vector<8x128xf32>
    %394 = vector.broadcast %14 : f32 to vector<8x128xf32>
    %395 = arith.mulf %394, %302 : vector<8x128xf32>
    %396 = vector.broadcast %15 : f32 to vector<8x128xf32>
    %397 = arith.mulf %396, %368 : vector<8x128xf32>
    %398 = arith.addf %395, %397 : vector<8x128xf32>
    %399 = arith.addf %393, %398 : vector<8x128xf32>
    %400 = vector.broadcast %17 : f32 to vector<8x128xf32>
    %401 = arith.addf %399, %400 : vector<8x128xf32>
    %cst_56 = arith.constant 0.000000e+00 : f32
    %402 = vector.broadcast %cst_56 : f32 to vector<8x128xf32>
    %403 = arith.maximumf %401, %402 : vector<8x128xf32>
    %404 = vector.broadcast %0 : f32 to vector<8x128xf32>
    %405 = arith.mulf %404, %342 : vector<8x128xf32>
    %c6_57 = arith.constant 6 : index
    %406 = arith.index_cast %61 : i32 to index
    %c0_58 = arith.constant 0 : index
    %407 = vector.load %arg2[%c6_57, %406, %c0_58] : memref<68x8x128xf32, #tpu.memory_space<vmem>>, vector<1x8x128xf32>
    %408 = vector.shape_cast %407 : vector<1x8x128xf32> to vector<8x128xf32>
    %409 = vector.broadcast %1 : f32 to vector<8x128xf32>
    %410 = arith.mulf %409, %408 : vector<8x128xf32>
    %411 = arith.addf %405, %410 : vector<8x128xf32>
    %412 = vector.broadcast %2 : f32 to vector<8x128xf32>
    %413 = arith.mulf %412, %350 : vector<8x128xf32>
    %c23_59 = arith.constant 23 : index
    %414 = arith.index_cast %61 : i32 to index
    %c0_60 = arith.constant 0 : index
    %415 = vector.load %arg2[%c23_59, %414, %c0_60] : memref<68x8x128xf32, #tpu.memory_space<vmem>>, vector<1x8x128xf32>
    %416 = vector.shape_cast %415 : vector<1x8x128xf32> to vector<8x128xf32>
    %417 = vector.broadcast %3 : f32 to vector<8x128xf32>
    %418 = arith.mulf %417, %416 : vector<8x128xf32>
    %419 = arith.addf %413, %418 : vector<8x128xf32>
    %420 = arith.addf %411, %419 : vector<8x128xf32>
    %421 = vector.broadcast %4 : f32 to vector<8x128xf32>
    %422 = arith.mulf %421, %359 : vector<8x128xf32>
    %c40_61 = arith.constant 40 : index
    %423 = arith.index_cast %61 : i32 to index
    %c0_62 = arith.constant 0 : index
    %424 = vector.load %arg2[%c40_61, %423, %c0_62] : memref<68x8x128xf32, #tpu.memory_space<vmem>>, vector<1x8x128xf32>
    %425 = vector.shape_cast %424 : vector<1x8x128xf32> to vector<8x128xf32>
    %426 = vector.broadcast %5 : f32 to vector<8x128xf32>
    %427 = arith.mulf %426, %425 : vector<8x128xf32>
    %428 = arith.addf %422, %427 : vector<8x128xf32>
    %429 = arith.addf %420, %428 : vector<8x128xf32>
    %430 = vector.broadcast %6 : f32 to vector<8x128xf32>
    %431 = arith.mulf %430, %368 : vector<8x128xf32>
    %c57_63 = arith.constant 57 : index
    %432 = arith.index_cast %61 : i32 to index
    %c0_64 = arith.constant 0 : index
    %433 = vector.load %arg2[%c57_63, %432, %c0_64] : memref<68x8x128xf32, #tpu.memory_space<vmem>>, vector<1x8x128xf32>
    %434 = vector.shape_cast %433 : vector<1x8x128xf32> to vector<8x128xf32>
    %435 = vector.broadcast %7 : f32 to vector<8x128xf32>
    %436 = arith.mulf %435, %434 : vector<8x128xf32>
    %437 = arith.addf %431, %436 : vector<8x128xf32>
    %438 = arith.addf %429, %437 : vector<8x128xf32>
    %439 = vector.broadcast %16 : f32 to vector<8x128xf32>
    %440 = arith.addf %438, %439 : vector<8x128xf32>
    %cst_65 = arith.constant 0.000000e+00 : f32
    %441 = vector.broadcast %cst_65 : f32 to vector<8x128xf32>
    %442 = arith.maximumf %440, %441 : vector<8x128xf32>
    %443 = vector.broadcast %8 : f32 to vector<8x128xf32>
    %444 = arith.mulf %443, %342 : vector<8x128xf32>
    %445 = vector.broadcast %9 : f32 to vector<8x128xf32>
    %446 = arith.mulf %445, %408 : vector<8x128xf32>
    %447 = arith.addf %444, %446 : vector<8x128xf32>
    %448 = vector.broadcast %10 : f32 to vector<8x128xf32>
    %449 = arith.mulf %448, %350 : vector<8x128xf32>
    %450 = vector.broadcast %11 : f32 to vector<8x128xf32>
    %451 = arith.mulf %450, %416 : vector<8x128xf32>
    %452 = arith.addf %449, %451 : vector<8x128xf32>
    %453 = arith.addf %447, %452 : vector<8x128xf32>
    %454 = vector.broadcast %12 : f32 to vector<8x128xf32>
    %455 = arith.mulf %454, %359 : vector<8x128xf32>
    %456 = vector.broadcast %13 : f32 to vector<8x128xf32>
    %457 = arith.mulf %456, %425 : vector<8x128xf32>
    %458 = arith.addf %455, %457 : vector<8x128xf32>
    %459 = arith.addf %453, %458 : vector<8x128xf32>
    %460 = vector.broadcast %14 : f32 to vector<8x128xf32>
    %461 = arith.mulf %460, %368 : vector<8x128xf32>
    %462 = vector.broadcast %15 : f32 to vector<8x128xf32>
    %463 = arith.mulf %462, %434 : vector<8x128xf32>
    %464 = arith.addf %461, %463 : vector<8x128xf32>
    %465 = arith.addf %459, %464 : vector<8x128xf32>
    %466 = vector.broadcast %17 : f32 to vector<8x128xf32>
    %467 = arith.addf %465, %466 : vector<8x128xf32>
    %cst_66 = arith.constant 0.000000e+00 : f32
    %468 = vector.broadcast %cst_66 : f32 to vector<8x128xf32>
    %469 = arith.maximumf %467, %468 : vector<8x128xf32>
    %470 = vector.broadcast %0 : f32 to vector<8x128xf32>
    %471 = arith.mulf %470, %408 : vector<8x128xf32>
    %c7_67 = arith.constant 7 : index
    %472 = arith.index_cast %61 : i32 to index
    %c0_68 = arith.constant 0 : index
    %473 = vector.load %arg2[%c7_67, %472, %c0_68] : memref<68x8x128xf32, #tpu.memory_space<vmem>>, vector<1x8x128xf32>
    %474 = vector.shape_cast %473 : vector<1x8x128xf32> to vector<8x128xf32>
    %475 = vector.broadcast %1 : f32 to vector<8x128xf32>
    %476 = arith.mulf %475, %474 : vector<8x128xf32>
    %477 = arith.addf %471, %476 : vector<8x128xf32>
    %478 = vector.broadcast %2 : f32 to vector<8x128xf32>
    %479 = arith.mulf %478, %416 : vector<8x128xf32>
    %c24_69 = arith.constant 24 : index
    %480 = arith.index_cast %61 : i32 to index
    %c0_70 = arith.constant 0 : index
    %481 = vector.load %arg2[%c24_69, %480, %c0_70] : memref<68x8x128xf32, #tpu.memory_space<vmem>>, vector<1x8x128xf32>
    %482 = vector.shape_cast %481 : vector<1x8x128xf32> to vector<8x128xf32>
    %483 = vector.broadcast %3 : f32 to vector<8x128xf32>
    %484 = arith.mulf %483, %482 : vector<8x128xf32>
    %485 = arith.addf %479, %484 : vector<8x128xf32>
    %486 = arith.addf %477, %485 : vector<8x128xf32>
    %487 = vector.broadcast %4 : f32 to vector<8x128xf32>
    %488 = arith.mulf %487, %425 : vector<8x128xf32>
    %c41_71 = arith.constant 41 : index
    %489 = arith.index_cast %61 : i32 to index
    %c0_72 = arith.constant 0 : index
    %490 = vector.load %arg2[%c41_71, %489, %c0_72] : memref<68x8x128xf32, #tpu.memory_space<vmem>>, vector<1x8x128xf32>
    %491 = vector.shape_cast %490 : vector<1x8x128xf32> to vector<8x128xf32>
    %492 = vector.broadcast %5 : f32 to vector<8x128xf32>
    %493 = arith.mulf %492, %491 : vector<8x128xf32>
    %494 = arith.addf %488, %493 : vector<8x128xf32>
    %495 = arith.addf %486, %494 : vector<8x128xf32>
    %496 = vector.broadcast %6 : f32 to vector<8x128xf32>
    %497 = arith.mulf %496, %434 : vector<8x128xf32>
    %c58_73 = arith.constant 58 : index
    %498 = arith.index_cast %61 : i32 to index
    %c0_74 = arith.constant 0 : index
    %499 = vector.load %arg2[%c58_73, %498, %c0_74] : memref<68x8x128xf32, #tpu.memory_space<vmem>>, vector<1x8x128xf32>
    %500 = vector.shape_cast %499 : vector<1x8x128xf32> to vector<8x128xf32>
    %501 = vector.broadcast %7 : f32 to vector<8x128xf32>
    %502 = arith.mulf %501, %500 : vector<8x128xf32>
    %503 = arith.addf %497, %502 : vector<8x128xf32>
    %504 = arith.addf %495, %503 : vector<8x128xf32>
    %505 = vector.broadcast %16 : f32 to vector<8x128xf32>
    %506 = arith.addf %504, %505 : vector<8x128xf32>
    %cst_75 = arith.constant 0.000000e+00 : f32
    %507 = vector.broadcast %cst_75 : f32 to vector<8x128xf32>
    %508 = arith.maximumf %506, %507 : vector<8x128xf32>
    %509 = vector.broadcast %8 : f32 to vector<8x128xf32>
    %510 = arith.mulf %509, %408 : vector<8x128xf32>
    %511 = vector.broadcast %9 : f32 to vector<8x128xf32>
    %512 = arith.mulf %511, %474 : vector<8x128xf32>
    %513 = arith.addf %510, %512 : vector<8x128xf32>
    %514 = vector.broadcast %10 : f32 to vector<8x128xf32>
    %515 = arith.mulf %514, %416 : vector<8x128xf32>
    %516 = vector.broadcast %11 : f32 to vector<8x128xf32>
    %517 = arith.mulf %516, %482 : vector<8x128xf32>
    %518 = arith.addf %515, %517 : vector<8x128xf32>
    %519 = arith.addf %513, %518 : vector<8x128xf32>
    %520 = vector.broadcast %12 : f32 to vector<8x128xf32>
    %521 = arith.mulf %520, %425 : vector<8x128xf32>
    %522 = vector.broadcast %13 : f32 to vector<8x128xf32>
    %523 = arith.mulf %522, %491 : vector<8x128xf32>
    %524 = arith.addf %521, %523 : vector<8x128xf32>
    %525 = arith.addf %519, %524 : vector<8x128xf32>
    %526 = vector.broadcast %14 : f32 to vector<8x128xf32>
    %527 = arith.mulf %526, %434 : vector<8x128xf32>
    %528 = vector.broadcast %15 : f32 to vector<8x128xf32>
    %529 = arith.mulf %528, %500 : vector<8x128xf32>
    %530 = arith.addf %527, %529 : vector<8x128xf32>
    %531 = arith.addf %525, %530 : vector<8x128xf32>
    %532 = vector.broadcast %17 : f32 to vector<8x128xf32>
    %533 = arith.addf %531, %532 : vector<8x128xf32>
    %cst_76 = arith.constant 0.000000e+00 : f32
    %534 = vector.broadcast %cst_76 : f32 to vector<8x128xf32>
    %535 = arith.maximumf %533, %534 : vector<8x128xf32>
    %536 = vector.broadcast %0 : f32 to vector<8x128xf32>
    %537 = arith.mulf %536, %474 : vector<8x128xf32>
    %c8_77 = arith.constant 8 : index
    %538 = arith.index_cast %61 : i32 to index
    %c0_78 = arith.constant 0 : index
    %539 = vector.load %arg2[%c8_77, %538, %c0_78] : memref<68x8x128xf32, #tpu.memory_space<vmem>>, vector<1x8x128xf32>
    %540 = vector.shape_cast %539 : vector<1x8x128xf32> to vector<8x128xf32>
    %541 = vector.broadcast %1 : f32 to vector<8x128xf32>
    %542 = arith.mulf %541, %540 : vector<8x128xf32>
    %543 = arith.addf %537, %542 : vector<8x128xf32>
    %544 = vector.broadcast %2 : f32 to vector<8x128xf32>
    %545 = arith.mulf %544, %482 : vector<8x128xf32>
    %c25_79 = arith.constant 25 : index
    %546 = arith.index_cast %61 : i32 to index
    %c0_80 = arith.constant 0 : index
    %547 = vector.load %arg2[%c25_79, %546, %c0_80] : memref<68x8x128xf32, #tpu.memory_space<vmem>>, vector<1x8x128xf32>
    %548 = vector.shape_cast %547 : vector<1x8x128xf32> to vector<8x128xf32>
    %549 = vector.broadcast %3 : f32 to vector<8x128xf32>
    %550 = arith.mulf %549, %548 : vector<8x128xf32>
    %551 = arith.addf %545, %550 : vector<8x128xf32>
    %552 = arith.addf %543, %551 : vector<8x128xf32>
    %553 = vector.broadcast %4 : f32 to vector<8x128xf32>
    %554 = arith.mulf %553, %491 : vector<8x128xf32>
    %c42_81 = arith.constant 42 : index
    %555 = arith.index_cast %61 : i32 to index
    %c0_82 = arith.constant 0 : index
    %556 = vector.load %arg2[%c42_81, %555, %c0_82] : memref<68x8x128xf32, #tpu.memory_space<vmem>>, vector<1x8x128xf32>
    %557 = vector.shape_cast %556 : vector<1x8x128xf32> to vector<8x128xf32>
    %558 = vector.broadcast %5 : f32 to vector<8x128xf32>
    %559 = arith.mulf %558, %557 : vector<8x128xf32>
    %560 = arith.addf %554, %559 : vector<8x128xf32>
    %561 = arith.addf %552, %560 : vector<8x128xf32>
    %562 = vector.broadcast %6 : f32 to vector<8x128xf32>
    %563 = arith.mulf %562, %500 : vector<8x128xf32>
    %c59_83 = arith.constant 59 : index
    %564 = arith.index_cast %61 : i32 to index
    %c0_84 = arith.constant 0 : index
    %565 = vector.load %arg2[%c59_83, %564, %c0_84] : memref<68x8x128xf32, #tpu.memory_space<vmem>>, vector<1x8x128xf32>
    %566 = vector.shape_cast %565 : vector<1x8x128xf32> to vector<8x128xf32>
    %567 = vector.broadcast %7 : f32 to vector<8x128xf32>
    %568 = arith.mulf %567, %566 : vector<8x128xf32>
    %569 = arith.addf %563, %568 : vector<8x128xf32>
    %570 = arith.addf %561, %569 : vector<8x128xf32>
    %571 = vector.broadcast %16 : f32 to vector<8x128xf32>
    %572 = arith.addf %570, %571 : vector<8x128xf32>
    %cst_85 = arith.constant 0.000000e+00 : f32
    %573 = vector.broadcast %cst_85 : f32 to vector<8x128xf32>
    %574 = arith.maximumf %572, %573 : vector<8x128xf32>
    %575 = vector.broadcast %8 : f32 to vector<8x128xf32>
    %576 = arith.mulf %575, %474 : vector<8x128xf32>
    %577 = vector.broadcast %9 : f32 to vector<8x128xf32>
    %578 = arith.mulf %577, %540 : vector<8x128xf32>
    %579 = arith.addf %576, %578 : vector<8x128xf32>
    %580 = vector.broadcast %10 : f32 to vector<8x128xf32>
    %581 = arith.mulf %580, %482 : vector<8x128xf32>
    %582 = vector.broadcast %11 : f32 to vector<8x128xf32>
    %583 = arith.mulf %582, %548 : vector<8x128xf32>
    %584 = arith.addf %581, %583 : vector<8x128xf32>
    %585 = arith.addf %579, %584 : vector<8x128xf32>
    %586 = vector.broadcast %12 : f32 to vector<8x128xf32>
    %587 = arith.mulf %586, %491 : vector<8x128xf32>
    %588 = vector.broadcast %13 : f32 to vector<8x128xf32>
    %589 = arith.mulf %588, %557 : vector<8x128xf32>
    %590 = arith.addf %587, %589 : vector<8x128xf32>
    %591 = arith.addf %585, %590 : vector<8x128xf32>
    %592 = vector.broadcast %14 : f32 to vector<8x128xf32>
    %593 = arith.mulf %592, %500 : vector<8x128xf32>
    %594 = vector.broadcast %15 : f32 to vector<8x128xf32>
    %595 = arith.mulf %594, %566 : vector<8x128xf32>
    %596 = arith.addf %593, %595 : vector<8x128xf32>
    %597 = arith.addf %591, %596 : vector<8x128xf32>
    %598 = vector.broadcast %17 : f32 to vector<8x128xf32>
    %599 = arith.addf %597, %598 : vector<8x128xf32>
    %cst_86 = arith.constant 0.000000e+00 : f32
    %600 = vector.broadcast %cst_86 : f32 to vector<8x128xf32>
    %601 = arith.maximumf %599, %600 : vector<8x128xf32>
    %602 = vector.broadcast %0 : f32 to vector<8x128xf32>
    %603 = arith.mulf %602, %540 : vector<8x128xf32>
    %c9_87 = arith.constant 9 : index
    %604 = arith.index_cast %61 : i32 to index
    %c0_88 = arith.constant 0 : index
    %605 = vector.load %arg2[%c9_87, %604, %c0_88] : memref<68x8x128xf32, #tpu.memory_space<vmem>>, vector<1x8x128xf32>
    %606 = vector.shape_cast %605 : vector<1x8x128xf32> to vector<8x128xf32>
    %607 = vector.broadcast %1 : f32 to vector<8x128xf32>
    %608 = arith.mulf %607, %606 : vector<8x128xf32>
    %609 = arith.addf %603, %608 : vector<8x128xf32>
    %610 = vector.broadcast %2 : f32 to vector<8x128xf32>
    %611 = arith.mulf %610, %548 : vector<8x128xf32>
    %c26_89 = arith.constant 26 : index
    %612 = arith.index_cast %61 : i32 to index
    %c0_90 = arith.constant 0 : index
    %613 = vector.load %arg2[%c26_89, %612, %c0_90] : memref<68x8x128xf32, #tpu.memory_space<vmem>>, vector<1x8x128xf32>
    %614 = vector.shape_cast %613 : vector<1x8x128xf32> to vector<8x128xf32>
    %615 = vector.broadcast %3 : f32 to vector<8x128xf32>
    %616 = arith.mulf %615, %614 : vector<8x128xf32>
    %617 = arith.addf %611, %616 : vector<8x128xf32>
    %618 = arith.addf %609, %617 : vector<8x128xf32>
    %619 = vector.broadcast %4 : f32 to vector<8x128xf32>
    %620 = arith.mulf %619, %557 : vector<8x128xf32>
    %c43_91 = arith.constant 43 : index
    %621 = arith.index_cast %61 : i32 to index
    %c0_92 = arith.constant 0 : index
    %622 = vector.load %arg2[%c43_91, %621, %c0_92] : memref<68x8x128xf32, #tpu.memory_space<vmem>>, vector<1x8x128xf32>
    %623 = vector.shape_cast %622 : vector<1x8x128xf32> to vector<8x128xf32>
    %624 = vector.broadcast %5 : f32 to vector<8x128xf32>
    %625 = arith.mulf %624, %623 : vector<8x128xf32>
    %626 = arith.addf %620, %625 : vector<8x128xf32>
    %627 = arith.addf %618, %626 : vector<8x128xf32>
    %628 = vector.broadcast %6 : f32 to vector<8x128xf32>
    %629 = arith.mulf %628, %566 : vector<8x128xf32>
    %c60 = arith.constant 60 : index
    %630 = arith.index_cast %61 : i32 to index
    %c0_93 = arith.constant 0 : index
    %631 = vector.load %arg2[%c60, %630, %c0_93] : memref<68x8x128xf32, #tpu.memory_space<vmem>>, vector<1x8x128xf32>
    %632 = vector.shape_cast %631 : vector<1x8x128xf32> to vector<8x128xf32>
    %633 = vector.broadcast %7 : f32 to vector<8x128xf32>
    %634 = arith.mulf %633, %632 : vector<8x128xf32>
    %635 = arith.addf %629, %634 : vector<8x128xf32>
    %636 = arith.addf %627, %635 : vector<8x128xf32>
    %637 = vector.broadcast %16 : f32 to vector<8x128xf32>
    %638 = arith.addf %636, %637 : vector<8x128xf32>
    %cst_94 = arith.constant 0.000000e+00 : f32
    %639 = vector.broadcast %cst_94 : f32 to vector<8x128xf32>
    %640 = arith.maximumf %638, %639 : vector<8x128xf32>
    %641 = vector.broadcast %8 : f32 to vector<8x128xf32>
    %642 = arith.mulf %641, %540 : vector<8x128xf32>
    %643 = vector.broadcast %9 : f32 to vector<8x128xf32>
    %644 = arith.mulf %643, %606 : vector<8x128xf32>
    %645 = arith.addf %642, %644 : vector<8x128xf32>
    %646 = vector.broadcast %10 : f32 to vector<8x128xf32>
    %647 = arith.mulf %646, %548 : vector<8x128xf32>
    %648 = vector.broadcast %11 : f32 to vector<8x128xf32>
    %649 = arith.mulf %648, %614 : vector<8x128xf32>
    %650 = arith.addf %647, %649 : vector<8x128xf32>
    %651 = arith.addf %645, %650 : vector<8x128xf32>
    %652 = vector.broadcast %12 : f32 to vector<8x128xf32>
    %653 = arith.mulf %652, %557 : vector<8x128xf32>
    %654 = vector.broadcast %13 : f32 to vector<8x128xf32>
    %655 = arith.mulf %654, %623 : vector<8x128xf32>
    %656 = arith.addf %653, %655 : vector<8x128xf32>
    %657 = arith.addf %651, %656 : vector<8x128xf32>
    %658 = vector.broadcast %14 : f32 to vector<8x128xf32>
    %659 = arith.mulf %658, %566 : vector<8x128xf32>
    %660 = vector.broadcast %15 : f32 to vector<8x128xf32>
    %661 = arith.mulf %660, %632 : vector<8x128xf32>
    %662 = arith.addf %659, %661 : vector<8x128xf32>
    %663 = arith.addf %657, %662 : vector<8x128xf32>
    %664 = vector.broadcast %17 : f32 to vector<8x128xf32>
    %665 = arith.addf %663, %664 : vector<8x128xf32>
    %cst_95 = arith.constant 0.000000e+00 : f32
    %666 = vector.broadcast %cst_95 : f32 to vector<8x128xf32>
    %667 = arith.maximumf %665, %666 : vector<8x128xf32>
    %668 = vector.broadcast %0 : f32 to vector<8x128xf32>
    %669 = arith.mulf %668, %606 : vector<8x128xf32>
    %c10_96 = arith.constant 10 : index
    %670 = arith.index_cast %61 : i32 to index
    %c0_97 = arith.constant 0 : index
    %671 = vector.load %arg2[%c10_96, %670, %c0_97] : memref<68x8x128xf32, #tpu.memory_space<vmem>>, vector<1x8x128xf32>
    %672 = vector.shape_cast %671 : vector<1x8x128xf32> to vector<8x128xf32>
    %673 = vector.broadcast %1 : f32 to vector<8x128xf32>
    %674 = arith.mulf %673, %672 : vector<8x128xf32>
    %675 = arith.addf %669, %674 : vector<8x128xf32>
    %676 = vector.broadcast %2 : f32 to vector<8x128xf32>
    %677 = arith.mulf %676, %614 : vector<8x128xf32>
    %c27_98 = arith.constant 27 : index
    %678 = arith.index_cast %61 : i32 to index
    %c0_99 = arith.constant 0 : index
    %679 = vector.load %arg2[%c27_98, %678, %c0_99] : memref<68x8x128xf32, #tpu.memory_space<vmem>>, vector<1x8x128xf32>
    %680 = vector.shape_cast %679 : vector<1x8x128xf32> to vector<8x128xf32>
    %681 = vector.broadcast %3 : f32 to vector<8x128xf32>
    %682 = arith.mulf %681, %680 : vector<8x128xf32>
    %683 = arith.addf %677, %682 : vector<8x128xf32>
    %684 = arith.addf %675, %683 : vector<8x128xf32>
    %685 = vector.broadcast %4 : f32 to vector<8x128xf32>
    %686 = arith.mulf %685, %623 : vector<8x128xf32>
    %c44_100 = arith.constant 44 : index
    %687 = arith.index_cast %61 : i32 to index
    %c0_101 = arith.constant 0 : index
    %688 = vector.load %arg2[%c44_100, %687, %c0_101] : memref<68x8x128xf32, #tpu.memory_space<vmem>>, vector<1x8x128xf32>
    %689 = vector.shape_cast %688 : vector<1x8x128xf32> to vector<8x128xf32>
    %690 = vector.broadcast %5 : f32 to vector<8x128xf32>
    %691 = arith.mulf %690, %689 : vector<8x128xf32>
    %692 = arith.addf %686, %691 : vector<8x128xf32>
    %693 = arith.addf %684, %692 : vector<8x128xf32>
    %694 = vector.broadcast %6 : f32 to vector<8x128xf32>
    %695 = arith.mulf %694, %632 : vector<8x128xf32>
    %c61 = arith.constant 61 : index
    %696 = arith.index_cast %61 : i32 to index
    %c0_102 = arith.constant 0 : index
    %697 = vector.load %arg2[%c61, %696, %c0_102] : memref<68x8x128xf32, #tpu.memory_space<vmem>>, vector<1x8x128xf32>
    %698 = vector.shape_cast %697 : vector<1x8x128xf32> to vector<8x128xf32>
    %699 = vector.broadcast %7 : f32 to vector<8x128xf32>
    %700 = arith.mulf %699, %698 : vector<8x128xf32>
    %701 = arith.addf %695, %700 : vector<8x128xf32>
    %702 = arith.addf %693, %701 : vector<8x128xf32>
    %703 = vector.broadcast %16 : f32 to vector<8x128xf32>
    %704 = arith.addf %702, %703 : vector<8x128xf32>
    %cst_103 = arith.constant 0.000000e+00 : f32
    %705 = vector.broadcast %cst_103 : f32 to vector<8x128xf32>
    %706 = arith.maximumf %704, %705 : vector<8x128xf32>
    %707 = vector.broadcast %8 : f32 to vector<8x128xf32>
    %708 = arith.mulf %707, %606 : vector<8x128xf32>
    %709 = vector.broadcast %9 : f32 to vector<8x128xf32>
    %710 = arith.mulf %709, %672 : vector<8x128xf32>
    %711 = arith.addf %708, %710 : vector<8x128xf32>
    %712 = vector.broadcast %10 : f32 to vector<8x128xf32>
    %713 = arith.mulf %712, %614 : vector<8x128xf32>
    %714 = vector.broadcast %11 : f32 to vector<8x128xf32>
    %715 = arith.mulf %714, %680 : vector<8x128xf32>
    %716 = arith.addf %713, %715 : vector<8x128xf32>
    %717 = arith.addf %711, %716 : vector<8x128xf32>
    %718 = vector.broadcast %12 : f32 to vector<8x128xf32>
    %719 = arith.mulf %718, %623 : vector<8x128xf32>
    %720 = vector.broadcast %13 : f32 to vector<8x128xf32>
    %721 = arith.mulf %720, %689 : vector<8x128xf32>
    %722 = arith.addf %719, %721 : vector<8x128xf32>
    %723 = arith.addf %717, %722 : vector<8x128xf32>
    %724 = vector.broadcast %14 : f32 to vector<8x128xf32>
    %725 = arith.mulf %724, %632 : vector<8x128xf32>
    %726 = vector.broadcast %15 : f32 to vector<8x128xf32>
    %727 = arith.mulf %726, %698 : vector<8x128xf32>
    %728 = arith.addf %725, %727 : vector<8x128xf32>
    %729 = arith.addf %723, %728 : vector<8x128xf32>
    %730 = vector.broadcast %17 : f32 to vector<8x128xf32>
    %731 = arith.addf %729, %730 : vector<8x128xf32>
    %cst_104 = arith.constant 0.000000e+00 : f32
    %732 = vector.broadcast %cst_104 : f32 to vector<8x128xf32>
    %733 = arith.maximumf %731, %732 : vector<8x128xf32>
    %734 = vector.broadcast %0 : f32 to vector<8x128xf32>
    %735 = arith.mulf %734, %672 : vector<8x128xf32>
    %c11_105 = arith.constant 11 : index
    %736 = arith.index_cast %61 : i32 to index
    %c0_106 = arith.constant 0 : index
    %737 = vector.load %arg2[%c11_105, %736, %c0_106] : memref<68x8x128xf32, #tpu.memory_space<vmem>>, vector<1x8x128xf32>
    %738 = vector.shape_cast %737 : vector<1x8x128xf32> to vector<8x128xf32>
    %739 = vector.broadcast %1 : f32 to vector<8x128xf32>
    %740 = arith.mulf %739, %738 : vector<8x128xf32>
    %741 = arith.addf %735, %740 : vector<8x128xf32>
    %742 = vector.broadcast %2 : f32 to vector<8x128xf32>
    %743 = arith.mulf %742, %680 : vector<8x128xf32>
    %c28_107 = arith.constant 28 : index
    %744 = arith.index_cast %61 : i32 to index
    %c0_108 = arith.constant 0 : index
    %745 = vector.load %arg2[%c28_107, %744, %c0_108] : memref<68x8x128xf32, #tpu.memory_space<vmem>>, vector<1x8x128xf32>
    %746 = vector.shape_cast %745 : vector<1x8x128xf32> to vector<8x128xf32>
    %747 = vector.broadcast %3 : f32 to vector<8x128xf32>
    %748 = arith.mulf %747, %746 : vector<8x128xf32>
    %749 = arith.addf %743, %748 : vector<8x128xf32>
    %750 = arith.addf %741, %749 : vector<8x128xf32>
    %751 = vector.broadcast %4 : f32 to vector<8x128xf32>
    %752 = arith.mulf %751, %689 : vector<8x128xf32>
    %c45_109 = arith.constant 45 : index
    %753 = arith.index_cast %61 : i32 to index
    %c0_110 = arith.constant 0 : index
    %754 = vector.load %arg2[%c45_109, %753, %c0_110] : memref<68x8x128xf32, #tpu.memory_space<vmem>>, vector<1x8x128xf32>
    %755 = vector.shape_cast %754 : vector<1x8x128xf32> to vector<8x128xf32>
    %756 = vector.broadcast %5 : f32 to vector<8x128xf32>
    %757 = arith.mulf %756, %755 : vector<8x128xf32>
    %758 = arith.addf %752, %757 : vector<8x128xf32>
    %759 = arith.addf %750, %758 : vector<8x128xf32>
    %760 = vector.broadcast %6 : f32 to vector<8x128xf32>
    %761 = arith.mulf %760, %698 : vector<8x128xf32>
    %c62 = arith.constant 62 : index
    %762 = arith.index_cast %61 : i32 to index
    %c0_111 = arith.constant 0 : index
    %763 = vector.load %arg2[%c62, %762, %c0_111] : memref<68x8x128xf32, #tpu.memory_space<vmem>>, vector<1x8x128xf32>
    %764 = vector.shape_cast %763 : vector<1x8x128xf32> to vector<8x128xf32>
    %765 = vector.broadcast %7 : f32 to vector<8x128xf32>
    %766 = arith.mulf %765, %764 : vector<8x128xf32>
    %767 = arith.addf %761, %766 : vector<8x128xf32>
    %768 = arith.addf %759, %767 : vector<8x128xf32>
    %769 = vector.broadcast %16 : f32 to vector<8x128xf32>
    %770 = arith.addf %768, %769 : vector<8x128xf32>
    %cst_112 = arith.constant 0.000000e+00 : f32
    %771 = vector.broadcast %cst_112 : f32 to vector<8x128xf32>
    %772 = arith.maximumf %770, %771 : vector<8x128xf32>
    %773 = vector.broadcast %8 : f32 to vector<8x128xf32>
    %774 = arith.mulf %773, %672 : vector<8x128xf32>
    %775 = vector.broadcast %9 : f32 to vector<8x128xf32>
    %776 = arith.mulf %775, %738 : vector<8x128xf32>
    %777 = arith.addf %774, %776 : vector<8x128xf32>
    %778 = vector.broadcast %10 : f32 to vector<8x128xf32>
    %779 = arith.mulf %778, %680 : vector<8x128xf32>
    %780 = vector.broadcast %11 : f32 to vector<8x128xf32>
    %781 = arith.mulf %780, %746 : vector<8x128xf32>
    %782 = arith.addf %779, %781 : vector<8x128xf32>
    %783 = arith.addf %777, %782 : vector<8x128xf32>
    %784 = vector.broadcast %12 : f32 to vector<8x128xf32>
    %785 = arith.mulf %784, %689 : vector<8x128xf32>
    %786 = vector.broadcast %13 : f32 to vector<8x128xf32>
    %787 = arith.mulf %786, %755 : vector<8x128xf32>
    %788 = arith.addf %785, %787 : vector<8x128xf32>
    %789 = arith.addf %783, %788 : vector<8x128xf32>
    %790 = vector.broadcast %14 : f32 to vector<8x128xf32>
    %791 = arith.mulf %790, %698 : vector<8x128xf32>
    %792 = vector.broadcast %15 : f32 to vector<8x128xf32>
    %793 = arith.mulf %792, %764 : vector<8x128xf32>
    %794 = arith.addf %791, %793 : vector<8x128xf32>
    %795 = arith.addf %789, %794 : vector<8x128xf32>
    %796 = vector.broadcast %17 : f32 to vector<8x128xf32>
    %797 = arith.addf %795, %796 : vector<8x128xf32>
    %cst_113 = arith.constant 0.000000e+00 : f32
    %798 = vector.broadcast %cst_113 : f32 to vector<8x128xf32>
    %799 = arith.maximumf %797, %798 : vector<8x128xf32>
    %800 = vector.broadcast %0 : f32 to vector<8x128xf32>
    %801 = arith.mulf %800, %738 : vector<8x128xf32>
    %c12_114 = arith.constant 12 : index
    %802 = arith.index_cast %61 : i32 to index
    %c0_115 = arith.constant 0 : index
    %803 = vector.load %arg2[%c12_114, %802, %c0_115] : memref<68x8x128xf32, #tpu.memory_space<vmem>>, vector<1x8x128xf32>
    %804 = vector.shape_cast %803 : vector<1x8x128xf32> to vector<8x128xf32>
    %805 = vector.broadcast %1 : f32 to vector<8x128xf32>
    %806 = arith.mulf %805, %804 : vector<8x128xf32>
    %807 = arith.addf %801, %806 : vector<8x128xf32>
    %808 = vector.broadcast %2 : f32 to vector<8x128xf32>
    %809 = arith.mulf %808, %746 : vector<8x128xf32>
    %c29_116 = arith.constant 29 : index
    %810 = arith.index_cast %61 : i32 to index
    %c0_117 = arith.constant 0 : index
    %811 = vector.load %arg2[%c29_116, %810, %c0_117] : memref<68x8x128xf32, #tpu.memory_space<vmem>>, vector<1x8x128xf32>
    %812 = vector.shape_cast %811 : vector<1x8x128xf32> to vector<8x128xf32>
    %813 = vector.broadcast %3 : f32 to vector<8x128xf32>
    %814 = arith.mulf %813, %812 : vector<8x128xf32>
    %815 = arith.addf %809, %814 : vector<8x128xf32>
    %816 = arith.addf %807, %815 : vector<8x128xf32>
    %817 = vector.broadcast %4 : f32 to vector<8x128xf32>
    %818 = arith.mulf %817, %755 : vector<8x128xf32>
    %c46_118 = arith.constant 46 : index
    %819 = arith.index_cast %61 : i32 to index
    %c0_119 = arith.constant 0 : index
    %820 = vector.load %arg2[%c46_118, %819, %c0_119] : memref<68x8x128xf32, #tpu.memory_space<vmem>>, vector<1x8x128xf32>
    %821 = vector.shape_cast %820 : vector<1x8x128xf32> to vector<8x128xf32>
    %822 = vector.broadcast %5 : f32 to vector<8x128xf32>
    %823 = arith.mulf %822, %821 : vector<8x128xf32>
    %824 = arith.addf %818, %823 : vector<8x128xf32>
    %825 = arith.addf %816, %824 : vector<8x128xf32>
    %826 = vector.broadcast %6 : f32 to vector<8x128xf32>
    %827 = arith.mulf %826, %764 : vector<8x128xf32>
    %c63 = arith.constant 63 : index
    %828 = arith.index_cast %61 : i32 to index
    %c0_120 = arith.constant 0 : index
    %829 = vector.load %arg2[%c63, %828, %c0_120] : memref<68x8x128xf32, #tpu.memory_space<vmem>>, vector<1x8x128xf32>
    %830 = vector.shape_cast %829 : vector<1x8x128xf32> to vector<8x128xf32>
    %831 = vector.broadcast %7 : f32 to vector<8x128xf32>
    %832 = arith.mulf %831, %830 : vector<8x128xf32>
    %833 = arith.addf %827, %832 : vector<8x128xf32>
    %834 = arith.addf %825, %833 : vector<8x128xf32>
    %835 = vector.broadcast %16 : f32 to vector<8x128xf32>
    %836 = arith.addf %834, %835 : vector<8x128xf32>
    %cst_121 = arith.constant 0.000000e+00 : f32
    %837 = vector.broadcast %cst_121 : f32 to vector<8x128xf32>
    %838 = arith.maximumf %836, %837 : vector<8x128xf32>
    %839 = vector.broadcast %8 : f32 to vector<8x128xf32>
    %840 = arith.mulf %839, %738 : vector<8x128xf32>
    %841 = vector.broadcast %9 : f32 to vector<8x128xf32>
    %842 = arith.mulf %841, %804 : vector<8x128xf32>
    %843 = arith.addf %840, %842 : vector<8x128xf32>
    %844 = vector.broadcast %10 : f32 to vector<8x128xf32>
    %845 = arith.mulf %844, %746 : vector<8x128xf32>
    %846 = vector.broadcast %11 : f32 to vector<8x128xf32>
    %847 = arith.mulf %846, %812 : vector<8x128xf32>
    %848 = arith.addf %845, %847 : vector<8x128xf32>
    %849 = arith.addf %843, %848 : vector<8x128xf32>
    %850 = vector.broadcast %12 : f32 to vector<8x128xf32>
    %851 = arith.mulf %850, %755 : vector<8x128xf32>
    %852 = vector.broadcast %13 : f32 to vector<8x128xf32>
    %853 = arith.mulf %852, %821 : vector<8x128xf32>
    %854 = arith.addf %851, %853 : vector<8x128xf32>
    %855 = arith.addf %849, %854 : vector<8x128xf32>
    %856 = vector.broadcast %14 : f32 to vector<8x128xf32>
    %857 = arith.mulf %856, %764 : vector<8x128xf32>
    %858 = vector.broadcast %15 : f32 to vector<8x128xf32>
    %859 = arith.mulf %858, %830 : vector<8x128xf32>
    %860 = arith.addf %857, %859 : vector<8x128xf32>
    %861 = arith.addf %855, %860 : vector<8x128xf32>
    %862 = vector.broadcast %17 : f32 to vector<8x128xf32>
    %863 = arith.addf %861, %862 : vector<8x128xf32>
    %cst_122 = arith.constant 0.000000e+00 : f32
    %864 = vector.broadcast %cst_122 : f32 to vector<8x128xf32>
    %865 = arith.maximumf %863, %864 : vector<8x128xf32>
    %866 = vector.broadcast %0 : f32 to vector<8x128xf32>
    %867 = arith.mulf %866, %804 : vector<8x128xf32>
    %c13_123 = arith.constant 13 : index
    %868 = arith.index_cast %61 : i32 to index
    %c0_124 = arith.constant 0 : index
    %869 = vector.load %arg2[%c13_123, %868, %c0_124] : memref<68x8x128xf32, #tpu.memory_space<vmem>>, vector<1x8x128xf32>
    %870 = vector.shape_cast %869 : vector<1x8x128xf32> to vector<8x128xf32>
    %871 = vector.broadcast %1 : f32 to vector<8x128xf32>
    %872 = arith.mulf %871, %870 : vector<8x128xf32>
    %873 = arith.addf %867, %872 : vector<8x128xf32>
    %874 = vector.broadcast %2 : f32 to vector<8x128xf32>
    %875 = arith.mulf %874, %812 : vector<8x128xf32>
    %c30_125 = arith.constant 30 : index
    %876 = arith.index_cast %61 : i32 to index
    %c0_126 = arith.constant 0 : index
    %877 = vector.load %arg2[%c30_125, %876, %c0_126] : memref<68x8x128xf32, #tpu.memory_space<vmem>>, vector<1x8x128xf32>
    %878 = vector.shape_cast %877 : vector<1x8x128xf32> to vector<8x128xf32>
    %879 = vector.broadcast %3 : f32 to vector<8x128xf32>
    %880 = arith.mulf %879, %878 : vector<8x128xf32>
    %881 = arith.addf %875, %880 : vector<8x128xf32>
    %882 = arith.addf %873, %881 : vector<8x128xf32>
    %883 = vector.broadcast %4 : f32 to vector<8x128xf32>
    %884 = arith.mulf %883, %821 : vector<8x128xf32>
    %c47_127 = arith.constant 47 : index
    %885 = arith.index_cast %61 : i32 to index
    %c0_128 = arith.constant 0 : index
    %886 = vector.load %arg2[%c47_127, %885, %c0_128] : memref<68x8x128xf32, #tpu.memory_space<vmem>>, vector<1x8x128xf32>
    %887 = vector.shape_cast %886 : vector<1x8x128xf32> to vector<8x128xf32>
    %888 = vector.broadcast %5 : f32 to vector<8x128xf32>
    %889 = arith.mulf %888, %887 : vector<8x128xf32>
    %890 = arith.addf %884, %889 : vector<8x128xf32>
    %891 = arith.addf %882, %890 : vector<8x128xf32>
    %892 = vector.broadcast %6 : f32 to vector<8x128xf32>
    %893 = arith.mulf %892, %830 : vector<8x128xf32>
    %c64 = arith.constant 64 : index
    %894 = arith.index_cast %61 : i32 to index
    %c0_129 = arith.constant 0 : index
    %895 = vector.load %arg2[%c64, %894, %c0_129] : memref<68x8x128xf32, #tpu.memory_space<vmem>>, vector<1x8x128xf32>
    %896 = vector.shape_cast %895 : vector<1x8x128xf32> to vector<8x128xf32>
    %897 = vector.broadcast %7 : f32 to vector<8x128xf32>
    %898 = arith.mulf %897, %896 : vector<8x128xf32>
    %899 = arith.addf %893, %898 : vector<8x128xf32>
    %900 = arith.addf %891, %899 : vector<8x128xf32>
    %901 = vector.broadcast %16 : f32 to vector<8x128xf32>
    %902 = arith.addf %900, %901 : vector<8x128xf32>
    %cst_130 = arith.constant 0.000000e+00 : f32
    %903 = vector.broadcast %cst_130 : f32 to vector<8x128xf32>
    %904 = arith.maximumf %902, %903 : vector<8x128xf32>
    %905 = vector.broadcast %8 : f32 to vector<8x128xf32>
    %906 = arith.mulf %905, %804 : vector<8x128xf32>
    %907 = vector.broadcast %9 : f32 to vector<8x128xf32>
    %908 = arith.mulf %907, %870 : vector<8x128xf32>
    %909 = arith.addf %906, %908 : vector<8x128xf32>
    %910 = vector.broadcast %10 : f32 to vector<8x128xf32>
    %911 = arith.mulf %910, %812 : vector<8x128xf32>
    %912 = vector.broadcast %11 : f32 to vector<8x128xf32>
    %913 = arith.mulf %912, %878 : vector<8x128xf32>
    %914 = arith.addf %911, %913 : vector<8x128xf32>
    %915 = arith.addf %909, %914 : vector<8x128xf32>
    %916 = vector.broadcast %12 : f32 to vector<8x128xf32>
    %917 = arith.mulf %916, %821 : vector<8x128xf32>
    %918 = vector.broadcast %13 : f32 to vector<8x128xf32>
    %919 = arith.mulf %918, %887 : vector<8x128xf32>
    %920 = arith.addf %917, %919 : vector<8x128xf32>
    %921 = arith.addf %915, %920 : vector<8x128xf32>
    %922 = vector.broadcast %14 : f32 to vector<8x128xf32>
    %923 = arith.mulf %922, %830 : vector<8x128xf32>
    %924 = vector.broadcast %15 : f32 to vector<8x128xf32>
    %925 = arith.mulf %924, %896 : vector<8x128xf32>
    %926 = arith.addf %923, %925 : vector<8x128xf32>
    %927 = arith.addf %921, %926 : vector<8x128xf32>
    %928 = vector.broadcast %17 : f32 to vector<8x128xf32>
    %929 = arith.addf %927, %928 : vector<8x128xf32>
    %cst_131 = arith.constant 0.000000e+00 : f32
    %930 = vector.broadcast %cst_131 : f32 to vector<8x128xf32>
    %931 = arith.maximumf %929, %930 : vector<8x128xf32>
    %932 = vector.broadcast %0 : f32 to vector<8x128xf32>
    %933 = arith.mulf %932, %870 : vector<8x128xf32>
    %c14_132 = arith.constant 14 : index
    %934 = arith.index_cast %61 : i32 to index
    %c0_133 = arith.constant 0 : index
    %935 = vector.load %arg2[%c14_132, %934, %c0_133] : memref<68x8x128xf32, #tpu.memory_space<vmem>>, vector<1x8x128xf32>
    %936 = vector.shape_cast %935 : vector<1x8x128xf32> to vector<8x128xf32>
    %937 = vector.broadcast %1 : f32 to vector<8x128xf32>
    %938 = arith.mulf %937, %936 : vector<8x128xf32>
    %939 = arith.addf %933, %938 : vector<8x128xf32>
    %940 = vector.broadcast %2 : f32 to vector<8x128xf32>
    %941 = arith.mulf %940, %878 : vector<8x128xf32>
    %c31_134 = arith.constant 31 : index
    %942 = arith.index_cast %61 : i32 to index
    %c0_135 = arith.constant 0 : index
    %943 = vector.load %arg2[%c31_134, %942, %c0_135] : memref<68x8x128xf32, #tpu.memory_space<vmem>>, vector<1x8x128xf32>
    %944 = vector.shape_cast %943 : vector<1x8x128xf32> to vector<8x128xf32>
    %945 = vector.broadcast %3 : f32 to vector<8x128xf32>
    %946 = arith.mulf %945, %944 : vector<8x128xf32>
    %947 = arith.addf %941, %946 : vector<8x128xf32>
    %948 = arith.addf %939, %947 : vector<8x128xf32>
    %949 = vector.broadcast %4 : f32 to vector<8x128xf32>
    %950 = arith.mulf %949, %887 : vector<8x128xf32>
    %c48_136 = arith.constant 48 : index
    %951 = arith.index_cast %61 : i32 to index
    %c0_137 = arith.constant 0 : index
    %952 = vector.load %arg2[%c48_136, %951, %c0_137] : memref<68x8x128xf32, #tpu.memory_space<vmem>>, vector<1x8x128xf32>
    %953 = vector.shape_cast %952 : vector<1x8x128xf32> to vector<8x128xf32>
    %954 = vector.broadcast %5 : f32 to vector<8x128xf32>
    %955 = arith.mulf %954, %953 : vector<8x128xf32>
    %956 = arith.addf %950, %955 : vector<8x128xf32>
    %957 = arith.addf %948, %956 : vector<8x128xf32>
    %958 = vector.broadcast %6 : f32 to vector<8x128xf32>
    %959 = arith.mulf %958, %896 : vector<8x128xf32>
    %c65 = arith.constant 65 : index
    %960 = arith.index_cast %61 : i32 to index
    %c0_138 = arith.constant 0 : index
    %961 = vector.load %arg2[%c65, %960, %c0_138] : memref<68x8x128xf32, #tpu.memory_space<vmem>>, vector<1x8x128xf32>
    %962 = vector.shape_cast %961 : vector<1x8x128xf32> to vector<8x128xf32>
    %963 = vector.broadcast %7 : f32 to vector<8x128xf32>
    %964 = arith.mulf %963, %962 : vector<8x128xf32>
    %965 = arith.addf %959, %964 : vector<8x128xf32>
    %966 = arith.addf %957, %965 : vector<8x128xf32>
    %967 = vector.broadcast %16 : f32 to vector<8x128xf32>
    %968 = arith.addf %966, %967 : vector<8x128xf32>
    %cst_139 = arith.constant 0.000000e+00 : f32
    %969 = vector.broadcast %cst_139 : f32 to vector<8x128xf32>
    %970 = arith.maximumf %968, %969 : vector<8x128xf32>
    %971 = vector.broadcast %8 : f32 to vector<8x128xf32>
    %972 = arith.mulf %971, %870 : vector<8x128xf32>
    %973 = vector.broadcast %9 : f32 to vector<8x128xf32>
    %974 = arith.mulf %973, %936 : vector<8x128xf32>
    %975 = arith.addf %972, %974 : vector<8x128xf32>
    %976 = vector.broadcast %10 : f32 to vector<8x128xf32>
    %977 = arith.mulf %976, %878 : vector<8x128xf32>
    %978 = vector.broadcast %11 : f32 to vector<8x128xf32>
    %979 = arith.mulf %978, %944 : vector<8x128xf32>
    %980 = arith.addf %977, %979 : vector<8x128xf32>
    %981 = arith.addf %975, %980 : vector<8x128xf32>
    %982 = vector.broadcast %12 : f32 to vector<8x128xf32>
    %983 = arith.mulf %982, %887 : vector<8x128xf32>
    %984 = vector.broadcast %13 : f32 to vector<8x128xf32>
    %985 = arith.mulf %984, %953 : vector<8x128xf32>
    %986 = arith.addf %983, %985 : vector<8x128xf32>
    %987 = arith.addf %981, %986 : vector<8x128xf32>
    %988 = vector.broadcast %14 : f32 to vector<8x128xf32>
    %989 = arith.mulf %988, %896 : vector<8x128xf32>
    %990 = vector.broadcast %15 : f32 to vector<8x128xf32>
    %991 = arith.mulf %990, %962 : vector<8x128xf32>
    %992 = arith.addf %989, %991 : vector<8x128xf32>
    %993 = arith.addf %987, %992 : vector<8x128xf32>
    %994 = vector.broadcast %17 : f32 to vector<8x128xf32>
    %995 = arith.addf %993, %994 : vector<8x128xf32>
    %cst_140 = arith.constant 0.000000e+00 : f32
    %996 = vector.broadcast %cst_140 : f32 to vector<8x128xf32>
    %997 = arith.maximumf %995, %996 : vector<8x128xf32>
    %998 = vector.broadcast %0 : f32 to vector<8x128xf32>
    %999 = arith.mulf %998, %936 : vector<8x128xf32>
    %c15_141 = arith.constant 15 : index
    %1000 = arith.index_cast %61 : i32 to index
    %c0_142 = arith.constant 0 : index
    %1001 = vector.load %arg2[%c15_141, %1000, %c0_142] : memref<68x8x128xf32, #tpu.memory_space<vmem>>, vector<1x8x128xf32>
    %1002 = vector.shape_cast %1001 : vector<1x8x128xf32> to vector<8x128xf32>
    %1003 = vector.broadcast %1 : f32 to vector<8x128xf32>
    %1004 = arith.mulf %1003, %1002 : vector<8x128xf32>
    %1005 = arith.addf %999, %1004 : vector<8x128xf32>
    %1006 = vector.broadcast %2 : f32 to vector<8x128xf32>
    %1007 = arith.mulf %1006, %944 : vector<8x128xf32>
    %c32_143 = arith.constant 32 : index
    %1008 = arith.index_cast %61 : i32 to index
    %c0_144 = arith.constant 0 : index
    %1009 = vector.load %arg2[%c32_143, %1008, %c0_144] : memref<68x8x128xf32, #tpu.memory_space<vmem>>, vector<1x8x128xf32>
    %1010 = vector.shape_cast %1009 : vector<1x8x128xf32> to vector<8x128xf32>
    %1011 = vector.broadcast %3 : f32 to vector<8x128xf32>
    %1012 = arith.mulf %1011, %1010 : vector<8x128xf32>
    %1013 = arith.addf %1007, %1012 : vector<8x128xf32>
    %1014 = arith.addf %1005, %1013 : vector<8x128xf32>
    %1015 = vector.broadcast %4 : f32 to vector<8x128xf32>
    %1016 = arith.mulf %1015, %953 : vector<8x128xf32>
    %c49_145 = arith.constant 49 : index
    %1017 = arith.index_cast %61 : i32 to index
    %c0_146 = arith.constant 0 : index
    %1018 = vector.load %arg2[%c49_145, %1017, %c0_146] : memref<68x8x128xf32, #tpu.memory_space<vmem>>, vector<1x8x128xf32>
    %1019 = vector.shape_cast %1018 : vector<1x8x128xf32> to vector<8x128xf32>
    %1020 = vector.broadcast %5 : f32 to vector<8x128xf32>
    %1021 = arith.mulf %1020, %1019 : vector<8x128xf32>
    %1022 = arith.addf %1016, %1021 : vector<8x128xf32>
    %1023 = arith.addf %1014, %1022 : vector<8x128xf32>
    %1024 = vector.broadcast %6 : f32 to vector<8x128xf32>
    %1025 = arith.mulf %1024, %962 : vector<8x128xf32>
    %c66 = arith.constant 66 : index
    %1026 = arith.index_cast %61 : i32 to index
    %c0_147 = arith.constant 0 : index
    %1027 = vector.load %arg2[%c66, %1026, %c0_147] : memref<68x8x128xf32, #tpu.memory_space<vmem>>, vector<1x8x128xf32>
    %1028 = vector.shape_cast %1027 : vector<1x8x128xf32> to vector<8x128xf32>
    %1029 = vector.broadcast %7 : f32 to vector<8x128xf32>
    %1030 = arith.mulf %1029, %1028 : vector<8x128xf32>
    %1031 = arith.addf %1025, %1030 : vector<8x128xf32>
    %1032 = arith.addf %1023, %1031 : vector<8x128xf32>
    %1033 = vector.broadcast %16 : f32 to vector<8x128xf32>
    %1034 = arith.addf %1032, %1033 : vector<8x128xf32>
    %cst_148 = arith.constant 0.000000e+00 : f32
    %1035 = vector.broadcast %cst_148 : f32 to vector<8x128xf32>
    %1036 = arith.maximumf %1034, %1035 : vector<8x128xf32>
    %1037 = vector.broadcast %8 : f32 to vector<8x128xf32>
    %1038 = arith.mulf %1037, %936 : vector<8x128xf32>
    %1039 = vector.broadcast %9 : f32 to vector<8x128xf32>
    %1040 = arith.mulf %1039, %1002 : vector<8x128xf32>
    %1041 = arith.addf %1038, %1040 : vector<8x128xf32>
    %1042 = vector.broadcast %10 : f32 to vector<8x128xf32>
    %1043 = arith.mulf %1042, %944 : vector<8x128xf32>
    %1044 = vector.broadcast %11 : f32 to vector<8x128xf32>
    %1045 = arith.mulf %1044, %1010 : vector<8x128xf32>
    %1046 = arith.addf %1043, %1045 : vector<8x128xf32>
    %1047 = arith.addf %1041, %1046 : vector<8x128xf32>
    %1048 = vector.broadcast %12 : f32 to vector<8x128xf32>
    %1049 = arith.mulf %1048, %953 : vector<8x128xf32>
    %1050 = vector.broadcast %13 : f32 to vector<8x128xf32>
    %1051 = arith.mulf %1050, %1019 : vector<8x128xf32>
    %1052 = arith.addf %1049, %1051 : vector<8x128xf32>
    %1053 = arith.addf %1047, %1052 : vector<8x128xf32>
    %1054 = vector.broadcast %14 : f32 to vector<8x128xf32>
    %1055 = arith.mulf %1054, %962 : vector<8x128xf32>
    %1056 = vector.broadcast %15 : f32 to vector<8x128xf32>
    %1057 = arith.mulf %1056, %1028 : vector<8x128xf32>
    %1058 = arith.addf %1055, %1057 : vector<8x128xf32>
    %1059 = arith.addf %1053, %1058 : vector<8x128xf32>
    %1060 = vector.broadcast %17 : f32 to vector<8x128xf32>
    %1061 = arith.addf %1059, %1060 : vector<8x128xf32>
    %cst_149 = arith.constant 0.000000e+00 : f32
    %1062 = vector.broadcast %cst_149 : f32 to vector<8x128xf32>
    %1063 = arith.maximumf %1061, %1062 : vector<8x128xf32>
    %1064 = vector.broadcast %0 : f32 to vector<8x128xf32>
    %1065 = arith.mulf %1064, %1002 : vector<8x128xf32>
    %c16_150 = arith.constant 16 : index
    %1066 = arith.index_cast %61 : i32 to index
    %c0_151 = arith.constant 0 : index
    %1067 = vector.load %arg2[%c16_150, %1066, %c0_151] : memref<68x8x128xf32, #tpu.memory_space<vmem>>, vector<1x8x128xf32>
    %1068 = vector.shape_cast %1067 : vector<1x8x128xf32> to vector<8x128xf32>
    %1069 = vector.broadcast %1 : f32 to vector<8x128xf32>
    %1070 = arith.mulf %1069, %1068 : vector<8x128xf32>
    %1071 = arith.addf %1065, %1070 : vector<8x128xf32>
    %1072 = vector.broadcast %2 : f32 to vector<8x128xf32>
    %1073 = arith.mulf %1072, %1010 : vector<8x128xf32>
    %c33_152 = arith.constant 33 : index
    %1074 = arith.index_cast %61 : i32 to index
    %c0_153 = arith.constant 0 : index
    %1075 = vector.load %arg2[%c33_152, %1074, %c0_153] : memref<68x8x128xf32, #tpu.memory_space<vmem>>, vector<1x8x128xf32>
    %1076 = vector.shape_cast %1075 : vector<1x8x128xf32> to vector<8x128xf32>
    %1077 = vector.broadcast %3 : f32 to vector<8x128xf32>
    %1078 = arith.mulf %1077, %1076 : vector<8x128xf32>
    %1079 = arith.addf %1073, %1078 : vector<8x128xf32>
    %1080 = arith.addf %1071, %1079 : vector<8x128xf32>
    %1081 = vector.broadcast %4 : f32 to vector<8x128xf32>
    %1082 = arith.mulf %1081, %1019 : vector<8x128xf32>
    %c50_154 = arith.constant 50 : index
    %1083 = arith.index_cast %61 : i32 to index
    %c0_155 = arith.constant 0 : index
    %1084 = vector.load %arg2[%c50_154, %1083, %c0_155] : memref<68x8x128xf32, #tpu.memory_space<vmem>>, vector<1x8x128xf32>
    %1085 = vector.shape_cast %1084 : vector<1x8x128xf32> to vector<8x128xf32>
    %1086 = vector.broadcast %5 : f32 to vector<8x128xf32>
    %1087 = arith.mulf %1086, %1085 : vector<8x128xf32>
    %1088 = arith.addf %1082, %1087 : vector<8x128xf32>
    %1089 = arith.addf %1080, %1088 : vector<8x128xf32>
    %1090 = vector.broadcast %6 : f32 to vector<8x128xf32>
    %1091 = arith.mulf %1090, %1028 : vector<8x128xf32>
    %c67 = arith.constant 67 : index
    %1092 = arith.index_cast %61 : i32 to index
    %c0_156 = arith.constant 0 : index
    %1093 = vector.load %arg2[%c67, %1092, %c0_156] : memref<68x8x128xf32, #tpu.memory_space<vmem>>, vector<1x8x128xf32>
    %1094 = vector.shape_cast %1093 : vector<1x8x128xf32> to vector<8x128xf32>
    %1095 = vector.broadcast %7 : f32 to vector<8x128xf32>
    %1096 = arith.mulf %1095, %1094 : vector<8x128xf32>
    %1097 = arith.addf %1091, %1096 : vector<8x128xf32>
    %1098 = arith.addf %1089, %1097 : vector<8x128xf32>
    %1099 = vector.broadcast %16 : f32 to vector<8x128xf32>
    %1100 = arith.addf %1098, %1099 : vector<8x128xf32>
    %cst_157 = arith.constant 0.000000e+00 : f32
    %1101 = vector.broadcast %cst_157 : f32 to vector<8x128xf32>
    %1102 = arith.maximumf %1100, %1101 : vector<8x128xf32>
    %1103 = vector.broadcast %8 : f32 to vector<8x128xf32>
    %1104 = arith.mulf %1103, %1002 : vector<8x128xf32>
    %1105 = vector.broadcast %9 : f32 to vector<8x128xf32>
    %1106 = arith.mulf %1105, %1068 : vector<8x128xf32>
    %1107 = arith.addf %1104, %1106 : vector<8x128xf32>
    %1108 = vector.broadcast %10 : f32 to vector<8x128xf32>
    %1109 = arith.mulf %1108, %1010 : vector<8x128xf32>
    %1110 = vector.broadcast %11 : f32 to vector<8x128xf32>
    %1111 = arith.mulf %1110, %1076 : vector<8x128xf32>
    %1112 = arith.addf %1109, %1111 : vector<8x128xf32>
    %1113 = arith.addf %1107, %1112 : vector<8x128xf32>
    %1114 = vector.broadcast %12 : f32 to vector<8x128xf32>
    %1115 = arith.mulf %1114, %1019 : vector<8x128xf32>
    %1116 = vector.broadcast %13 : f32 to vector<8x128xf32>
    %1117 = arith.mulf %1116, %1085 : vector<8x128xf32>
    %1118 = arith.addf %1115, %1117 : vector<8x128xf32>
    %1119 = arith.addf %1113, %1118 : vector<8x128xf32>
    %1120 = vector.broadcast %14 : f32 to vector<8x128xf32>
    %1121 = arith.mulf %1120, %1028 : vector<8x128xf32>
    %1122 = vector.broadcast %15 : f32 to vector<8x128xf32>
    %1123 = arith.mulf %1122, %1094 : vector<8x128xf32>
    %1124 = arith.addf %1121, %1123 : vector<8x128xf32>
    %1125 = arith.addf %1119, %1124 : vector<8x128xf32>
    %1126 = vector.broadcast %17 : f32 to vector<8x128xf32>
    %1127 = arith.addf %1125, %1126 : vector<8x128xf32>
    %cst_158 = arith.constant 0.000000e+00 : f32
    %1128 = vector.broadcast %cst_158 : f32 to vector<8x128xf32>
    %1129 = arith.maximumf %1127, %1128 : vector<8x128xf32>
    %1130 = vector.broadcast %18 : f32 to vector<8x128xf32>
    %1131 = arith.mulf %1130, %112 : vector<8x128xf32>
    %1132 = vector.broadcast %19 : f32 to vector<8x128xf32>
    %1133 = arith.mulf %1132, %178 : vector<8x128xf32>
    %1134 = arith.addf %1131, %1133 : vector<8x128xf32>
    %1135 = vector.broadcast %20 : f32 to vector<8x128xf32>
    %1136 = arith.mulf %1135, %139 : vector<8x128xf32>
    %1137 = vector.broadcast %21 : f32 to vector<8x128xf32>
    %1138 = arith.mulf %1137, %205 : vector<8x128xf32>
    %1139 = arith.addf %1136, %1138 : vector<8x128xf32>
    %1140 = arith.addf %1134, %1139 : vector<8x128xf32>
    %1141 = vector.broadcast %26 : f32 to vector<8x128xf32>
    %1142 = arith.addf %1140, %1141 : vector<8x128xf32>
    %cst_159 = arith.constant 0.000000e+00 : f32
    %1143 = vector.broadcast %cst_159 : f32 to vector<8x128xf32>
    %1144 = arith.maximumf %1142, %1143 : vector<8x128xf32>
    %1145 = vector.broadcast %22 : f32 to vector<8x128xf32>
    %1146 = arith.mulf %1145, %112 : vector<8x128xf32>
    %1147 = vector.broadcast %23 : f32 to vector<8x128xf32>
    %1148 = arith.mulf %1147, %178 : vector<8x128xf32>
    %1149 = arith.addf %1146, %1148 : vector<8x128xf32>
    %1150 = vector.broadcast %24 : f32 to vector<8x128xf32>
    %1151 = arith.mulf %1150, %139 : vector<8x128xf32>
    %1152 = vector.broadcast %25 : f32 to vector<8x128xf32>
    %1153 = arith.mulf %1152, %205 : vector<8x128xf32>
    %1154 = arith.addf %1151, %1153 : vector<8x128xf32>
    %1155 = arith.addf %1149, %1154 : vector<8x128xf32>
    %1156 = vector.broadcast %27 : f32 to vector<8x128xf32>
    %1157 = arith.addf %1155, %1156 : vector<8x128xf32>
    %cst_160 = arith.constant 0.000000e+00 : f32
    %1158 = vector.broadcast %cst_160 : f32 to vector<8x128xf32>
    %1159 = arith.maximumf %1157, %1158 : vector<8x128xf32>
    %1160 = vector.broadcast %18 : f32 to vector<8x128xf32>
    %1161 = arith.mulf %1160, %244 : vector<8x128xf32>
    %1162 = vector.broadcast %19 : f32 to vector<8x128xf32>
    %1163 = arith.mulf %1162, %310 : vector<8x128xf32>
    %1164 = arith.addf %1161, %1163 : vector<8x128xf32>
    %1165 = vector.broadcast %20 : f32 to vector<8x128xf32>
    %1166 = arith.mulf %1165, %271 : vector<8x128xf32>
    %1167 = vector.broadcast %21 : f32 to vector<8x128xf32>
    %1168 = arith.mulf %1167, %337 : vector<8x128xf32>
    %1169 = arith.addf %1166, %1168 : vector<8x128xf32>
    %1170 = arith.addf %1164, %1169 : vector<8x128xf32>
    %1171 = vector.broadcast %26 : f32 to vector<8x128xf32>
    %1172 = arith.addf %1170, %1171 : vector<8x128xf32>
    %cst_161 = arith.constant 0.000000e+00 : f32
    %1173 = vector.broadcast %cst_161 : f32 to vector<8x128xf32>
    %1174 = arith.maximumf %1172, %1173 : vector<8x128xf32>
    %1175 = vector.broadcast %22 : f32 to vector<8x128xf32>
    %1176 = arith.mulf %1175, %244 : vector<8x128xf32>
    %1177 = vector.broadcast %23 : f32 to vector<8x128xf32>
    %1178 = arith.mulf %1177, %310 : vector<8x128xf32>
    %1179 = arith.addf %1176, %1178 : vector<8x128xf32>
    %1180 = vector.broadcast %24 : f32 to vector<8x128xf32>
    %1181 = arith.mulf %1180, %271 : vector<8x128xf32>
    %1182 = vector.broadcast %25 : f32 to vector<8x128xf32>
    %1183 = arith.mulf %1182, %337 : vector<8x128xf32>
    %1184 = arith.addf %1181, %1183 : vector<8x128xf32>
    %1185 = arith.addf %1179, %1184 : vector<8x128xf32>
    %1186 = vector.broadcast %27 : f32 to vector<8x128xf32>
    %1187 = arith.addf %1185, %1186 : vector<8x128xf32>
    %cst_162 = arith.constant 0.000000e+00 : f32
    %1188 = vector.broadcast %cst_162 : f32 to vector<8x128xf32>
    %1189 = arith.maximumf %1187, %1188 : vector<8x128xf32>
    %1190 = vector.broadcast %18 : f32 to vector<8x128xf32>
    %1191 = arith.mulf %1190, %376 : vector<8x128xf32>
    %1192 = vector.broadcast %19 : f32 to vector<8x128xf32>
    %1193 = arith.mulf %1192, %442 : vector<8x128xf32>
    %1194 = arith.addf %1191, %1193 : vector<8x128xf32>
    %1195 = vector.broadcast %20 : f32 to vector<8x128xf32>
    %1196 = arith.mulf %1195, %403 : vector<8x128xf32>
    %1197 = vector.broadcast %21 : f32 to vector<8x128xf32>
    %1198 = arith.mulf %1197, %469 : vector<8x128xf32>
    %1199 = arith.addf %1196, %1198 : vector<8x128xf32>
    %1200 = arith.addf %1194, %1199 : vector<8x128xf32>
    %1201 = vector.broadcast %26 : f32 to vector<8x128xf32>
    %1202 = arith.addf %1200, %1201 : vector<8x128xf32>
    %cst_163 = arith.constant 0.000000e+00 : f32
    %1203 = vector.broadcast %cst_163 : f32 to vector<8x128xf32>
    %1204 = arith.maximumf %1202, %1203 : vector<8x128xf32>
    %1205 = vector.broadcast %22 : f32 to vector<8x128xf32>
    %1206 = arith.mulf %1205, %376 : vector<8x128xf32>
    %1207 = vector.broadcast %23 : f32 to vector<8x128xf32>
    %1208 = arith.mulf %1207, %442 : vector<8x128xf32>
    %1209 = arith.addf %1206, %1208 : vector<8x128xf32>
    %1210 = vector.broadcast %24 : f32 to vector<8x128xf32>
    %1211 = arith.mulf %1210, %403 : vector<8x128xf32>
    %1212 = vector.broadcast %25 : f32 to vector<8x128xf32>
    %1213 = arith.mulf %1212, %469 : vector<8x128xf32>
    %1214 = arith.addf %1211, %1213 : vector<8x128xf32>
    %1215 = arith.addf %1209, %1214 : vector<8x128xf32>
    %1216 = vector.broadcast %27 : f32 to vector<8x128xf32>
    %1217 = arith.addf %1215, %1216 : vector<8x128xf32>
    %cst_164 = arith.constant 0.000000e+00 : f32
    %1218 = vector.broadcast %cst_164 : f32 to vector<8x128xf32>
    %1219 = arith.maximumf %1217, %1218 : vector<8x128xf32>
    %1220 = vector.broadcast %18 : f32 to vector<8x128xf32>
    %1221 = arith.mulf %1220, %508 : vector<8x128xf32>
    %1222 = vector.broadcast %19 : f32 to vector<8x128xf32>
    %1223 = arith.mulf %1222, %574 : vector<8x128xf32>
    %1224 = arith.addf %1221, %1223 : vector<8x128xf32>
    %1225 = vector.broadcast %20 : f32 to vector<8x128xf32>
    %1226 = arith.mulf %1225, %535 : vector<8x128xf32>
    %1227 = vector.broadcast %21 : f32 to vector<8x128xf32>
    %1228 = arith.mulf %1227, %601 : vector<8x128xf32>
    %1229 = arith.addf %1226, %1228 : vector<8x128xf32>
    %1230 = arith.addf %1224, %1229 : vector<8x128xf32>
    %1231 = vector.broadcast %26 : f32 to vector<8x128xf32>
    %1232 = arith.addf %1230, %1231 : vector<8x128xf32>
    %cst_165 = arith.constant 0.000000e+00 : f32
    %1233 = vector.broadcast %cst_165 : f32 to vector<8x128xf32>
    %1234 = arith.maximumf %1232, %1233 : vector<8x128xf32>
    %1235 = vector.broadcast %22 : f32 to vector<8x128xf32>
    %1236 = arith.mulf %1235, %508 : vector<8x128xf32>
    %1237 = vector.broadcast %23 : f32 to vector<8x128xf32>
    %1238 = arith.mulf %1237, %574 : vector<8x128xf32>
    %1239 = arith.addf %1236, %1238 : vector<8x128xf32>
    %1240 = vector.broadcast %24 : f32 to vector<8x128xf32>
    %1241 = arith.mulf %1240, %535 : vector<8x128xf32>
    %1242 = vector.broadcast %25 : f32 to vector<8x128xf32>
    %1243 = arith.mulf %1242, %601 : vector<8x128xf32>
    %1244 = arith.addf %1241, %1243 : vector<8x128xf32>
    %1245 = arith.addf %1239, %1244 : vector<8x128xf32>
    %1246 = vector.broadcast %27 : f32 to vector<8x128xf32>
    %1247 = arith.addf %1245, %1246 : vector<8x128xf32>
    %cst_166 = arith.constant 0.000000e+00 : f32
    %1248 = vector.broadcast %cst_166 : f32 to vector<8x128xf32>
    %1249 = arith.maximumf %1247, %1248 : vector<8x128xf32>
    %1250 = vector.broadcast %18 : f32 to vector<8x128xf32>
    %1251 = arith.mulf %1250, %640 : vector<8x128xf32>
    %1252 = vector.broadcast %19 : f32 to vector<8x128xf32>
    %1253 = arith.mulf %1252, %706 : vector<8x128xf32>
    %1254 = arith.addf %1251, %1253 : vector<8x128xf32>
    %1255 = vector.broadcast %20 : f32 to vector<8x128xf32>
    %1256 = arith.mulf %1255, %667 : vector<8x128xf32>
    %1257 = vector.broadcast %21 : f32 to vector<8x128xf32>
    %1258 = arith.mulf %1257, %733 : vector<8x128xf32>
    %1259 = arith.addf %1256, %1258 : vector<8x128xf32>
    %1260 = arith.addf %1254, %1259 : vector<8x128xf32>
    %1261 = vector.broadcast %26 : f32 to vector<8x128xf32>
    %1262 = arith.addf %1260, %1261 : vector<8x128xf32>
    %cst_167 = arith.constant 0.000000e+00 : f32
    %1263 = vector.broadcast %cst_167 : f32 to vector<8x128xf32>
    %1264 = arith.maximumf %1262, %1263 : vector<8x128xf32>
    %1265 = vector.broadcast %22 : f32 to vector<8x128xf32>
    %1266 = arith.mulf %1265, %640 : vector<8x128xf32>
    %1267 = vector.broadcast %23 : f32 to vector<8x128xf32>
    %1268 = arith.mulf %1267, %706 : vector<8x128xf32>
    %1269 = arith.addf %1266, %1268 : vector<8x128xf32>
    %1270 = vector.broadcast %24 : f32 to vector<8x128xf32>
    %1271 = arith.mulf %1270, %667 : vector<8x128xf32>
    %1272 = vector.broadcast %25 : f32 to vector<8x128xf32>
    %1273 = arith.mulf %1272, %733 : vector<8x128xf32>
    %1274 = arith.addf %1271, %1273 : vector<8x128xf32>
    %1275 = arith.addf %1269, %1274 : vector<8x128xf32>
    %1276 = vector.broadcast %27 : f32 to vector<8x128xf32>
    %1277 = arith.addf %1275, %1276 : vector<8x128xf32>
    %cst_168 = arith.constant 0.000000e+00 : f32
    %1278 = vector.broadcast %cst_168 : f32 to vector<8x128xf32>
    %1279 = arith.maximumf %1277, %1278 : vector<8x128xf32>
    %1280 = vector.broadcast %18 : f32 to vector<8x128xf32>
    %1281 = arith.mulf %1280, %772 : vector<8x128xf32>
    %1282 = vector.broadcast %19 : f32 to vector<8x128xf32>
    %1283 = arith.mulf %1282, %838 : vector<8x128xf32>
    %1284 = arith.addf %1281, %1283 : vector<8x128xf32>
    %1285 = vector.broadcast %20 : f32 to vector<8x128xf32>
    %1286 = arith.mulf %1285, %799 : vector<8x128xf32>
    %1287 = vector.broadcast %21 : f32 to vector<8x128xf32>
    %1288 = arith.mulf %1287, %865 : vector<8x128xf32>
    %1289 = arith.addf %1286, %1288 : vector<8x128xf32>
    %1290 = arith.addf %1284, %1289 : vector<8x128xf32>
    %1291 = vector.broadcast %26 : f32 to vector<8x128xf32>
    %1292 = arith.addf %1290, %1291 : vector<8x128xf32>
    %cst_169 = arith.constant 0.000000e+00 : f32
    %1293 = vector.broadcast %cst_169 : f32 to vector<8x128xf32>
    %1294 = arith.maximumf %1292, %1293 : vector<8x128xf32>
    %1295 = vector.broadcast %22 : f32 to vector<8x128xf32>
    %1296 = arith.mulf %1295, %772 : vector<8x128xf32>
    %1297 = vector.broadcast %23 : f32 to vector<8x128xf32>
    %1298 = arith.mulf %1297, %838 : vector<8x128xf32>
    %1299 = arith.addf %1296, %1298 : vector<8x128xf32>
    %1300 = vector.broadcast %24 : f32 to vector<8x128xf32>
    %1301 = arith.mulf %1300, %799 : vector<8x128xf32>
    %1302 = vector.broadcast %25 : f32 to vector<8x128xf32>
    %1303 = arith.mulf %1302, %865 : vector<8x128xf32>
    %1304 = arith.addf %1301, %1303 : vector<8x128xf32>
    %1305 = arith.addf %1299, %1304 : vector<8x128xf32>
    %1306 = vector.broadcast %27 : f32 to vector<8x128xf32>
    %1307 = arith.addf %1305, %1306 : vector<8x128xf32>
    %cst_170 = arith.constant 0.000000e+00 : f32
    %1308 = vector.broadcast %cst_170 : f32 to vector<8x128xf32>
    %1309 = arith.maximumf %1307, %1308 : vector<8x128xf32>
    %1310 = vector.broadcast %18 : f32 to vector<8x128xf32>
    %1311 = arith.mulf %1310, %904 : vector<8x128xf32>
    %1312 = vector.broadcast %19 : f32 to vector<8x128xf32>
    %1313 = arith.mulf %1312, %970 : vector<8x128xf32>
    %1314 = arith.addf %1311, %1313 : vector<8x128xf32>
    %1315 = vector.broadcast %20 : f32 to vector<8x128xf32>
    %1316 = arith.mulf %1315, %931 : vector<8x128xf32>
    %1317 = vector.broadcast %21 : f32 to vector<8x128xf32>
    %1318 = arith.mulf %1317, %997 : vector<8x128xf32>
    %1319 = arith.addf %1316, %1318 : vector<8x128xf32>
    %1320 = arith.addf %1314, %1319 : vector<8x128xf32>
    %1321 = vector.broadcast %26 : f32 to vector<8x128xf32>
    %1322 = arith.addf %1320, %1321 : vector<8x128xf32>
    %cst_171 = arith.constant 0.000000e+00 : f32
    %1323 = vector.broadcast %cst_171 : f32 to vector<8x128xf32>
    %1324 = arith.maximumf %1322, %1323 : vector<8x128xf32>
    %1325 = vector.broadcast %22 : f32 to vector<8x128xf32>
    %1326 = arith.mulf %1325, %904 : vector<8x128xf32>
    %1327 = vector.broadcast %23 : f32 to vector<8x128xf32>
    %1328 = arith.mulf %1327, %970 : vector<8x128xf32>
    %1329 = arith.addf %1326, %1328 : vector<8x128xf32>
    %1330 = vector.broadcast %24 : f32 to vector<8x128xf32>
    %1331 = arith.mulf %1330, %931 : vector<8x128xf32>
    %1332 = vector.broadcast %25 : f32 to vector<8x128xf32>
    %1333 = arith.mulf %1332, %997 : vector<8x128xf32>
    %1334 = arith.addf %1331, %1333 : vector<8x128xf32>
    %1335 = arith.addf %1329, %1334 : vector<8x128xf32>
    %1336 = vector.broadcast %27 : f32 to vector<8x128xf32>
    %1337 = arith.addf %1335, %1336 : vector<8x128xf32>
    %cst_172 = arith.constant 0.000000e+00 : f32
    %1338 = vector.broadcast %cst_172 : f32 to vector<8x128xf32>
    %1339 = arith.maximumf %1337, %1338 : vector<8x128xf32>
    %1340 = vector.broadcast %18 : f32 to vector<8x128xf32>
    %1341 = arith.mulf %1340, %1036 : vector<8x128xf32>
    %1342 = vector.broadcast %19 : f32 to vector<8x128xf32>
    %1343 = arith.mulf %1342, %1102 : vector<8x128xf32>
    %1344 = arith.addf %1341, %1343 : vector<8x128xf32>
    %1345 = vector.broadcast %20 : f32 to vector<8x128xf32>
    %1346 = arith.mulf %1345, %1063 : vector<8x128xf32>
    %1347 = vector.broadcast %21 : f32 to vector<8x128xf32>
    %1348 = arith.mulf %1347, %1129 : vector<8x128xf32>
    %1349 = arith.addf %1346, %1348 : vector<8x128xf32>
    %1350 = arith.addf %1344, %1349 : vector<8x128xf32>
    %1351 = vector.broadcast %26 : f32 to vector<8x128xf32>
    %1352 = arith.addf %1350, %1351 : vector<8x128xf32>
    %cst_173 = arith.constant 0.000000e+00 : f32
    %1353 = vector.broadcast %cst_173 : f32 to vector<8x128xf32>
    %1354 = arith.maximumf %1352, %1353 : vector<8x128xf32>
    %1355 = vector.broadcast %22 : f32 to vector<8x128xf32>
    %1356 = arith.mulf %1355, %1036 : vector<8x128xf32>
    %1357 = vector.broadcast %23 : f32 to vector<8x128xf32>
    %1358 = arith.mulf %1357, %1102 : vector<8x128xf32>
    %1359 = arith.addf %1356, %1358 : vector<8x128xf32>
    %1360 = vector.broadcast %24 : f32 to vector<8x128xf32>
    %1361 = arith.mulf %1360, %1063 : vector<8x128xf32>
    %1362 = vector.broadcast %25 : f32 to vector<8x128xf32>
    %1363 = arith.mulf %1362, %1129 : vector<8x128xf32>
    %1364 = arith.addf %1361, %1363 : vector<8x128xf32>
    %1365 = arith.addf %1359, %1364 : vector<8x128xf32>
    %1366 = vector.broadcast %27 : f32 to vector<8x128xf32>
    %1367 = arith.addf %1365, %1366 : vector<8x128xf32>
    %cst_174 = arith.constant 0.000000e+00 : f32
    %1368 = vector.broadcast %cst_174 : f32 to vector<8x128xf32>
    %1369 = arith.maximumf %1367, %1368 : vector<8x128xf32>
    %1370 = vector.broadcast %28 : f32 to vector<8x128xf32>
    %1371 = arith.mulf %1370, %1144 : vector<8x128xf32>
    %1372 = vector.broadcast %29 : f32 to vector<8x128xf32>
    %1373 = arith.mulf %1372, %1174 : vector<8x128xf32>
    %1374 = arith.addf %1371, %1373 : vector<8x128xf32>
    %1375 = vector.broadcast %30 : f32 to vector<8x128xf32>
    %1376 = arith.mulf %1375, %1159 : vector<8x128xf32>
    %1377 = vector.broadcast %31 : f32 to vector<8x128xf32>
    %1378 = arith.mulf %1377, %1189 : vector<8x128xf32>
    %1379 = arith.addf %1376, %1378 : vector<8x128xf32>
    %1380 = arith.addf %1374, %1379 : vector<8x128xf32>
    %1381 = vector.broadcast %36 : f32 to vector<8x128xf32>
    %1382 = arith.addf %1380, %1381 : vector<8x128xf32>
    %cst_175 = arith.constant 0.000000e+00 : f32
    %1383 = vector.broadcast %cst_175 : f32 to vector<8x128xf32>
    %1384 = arith.maximumf %1382, %1383 : vector<8x128xf32>
    %1385 = vector.broadcast %32 : f32 to vector<8x128xf32>
    %1386 = arith.mulf %1385, %1144 : vector<8x128xf32>
    %1387 = vector.broadcast %33 : f32 to vector<8x128xf32>
    %1388 = arith.mulf %1387, %1174 : vector<8x128xf32>
    %1389 = arith.addf %1386, %1388 : vector<8x128xf32>
    %1390 = vector.broadcast %34 : f32 to vector<8x128xf32>
    %1391 = arith.mulf %1390, %1159 : vector<8x128xf32>
    %1392 = vector.broadcast %35 : f32 to vector<8x128xf32>
    %1393 = arith.mulf %1392, %1189 : vector<8x128xf32>
    %1394 = arith.addf %1391, %1393 : vector<8x128xf32>
    %1395 = arith.addf %1389, %1394 : vector<8x128xf32>
    %1396 = vector.broadcast %37 : f32 to vector<8x128xf32>
    %1397 = arith.addf %1395, %1396 : vector<8x128xf32>
    %cst_176 = arith.constant 0.000000e+00 : f32
    %1398 = vector.broadcast %cst_176 : f32 to vector<8x128xf32>
    %1399 = arith.maximumf %1397, %1398 : vector<8x128xf32>
    %1400 = vector.broadcast %28 : f32 to vector<8x128xf32>
    %1401 = arith.mulf %1400, %1204 : vector<8x128xf32>
    %1402 = vector.broadcast %29 : f32 to vector<8x128xf32>
    %1403 = arith.mulf %1402, %1234 : vector<8x128xf32>
    %1404 = arith.addf %1401, %1403 : vector<8x128xf32>
    %1405 = vector.broadcast %30 : f32 to vector<8x128xf32>
    %1406 = arith.mulf %1405, %1219 : vector<8x128xf32>
    %1407 = vector.broadcast %31 : f32 to vector<8x128xf32>
    %1408 = arith.mulf %1407, %1249 : vector<8x128xf32>
    %1409 = arith.addf %1406, %1408 : vector<8x128xf32>
    %1410 = arith.addf %1404, %1409 : vector<8x128xf32>
    %1411 = vector.broadcast %36 : f32 to vector<8x128xf32>
    %1412 = arith.addf %1410, %1411 : vector<8x128xf32>
    %cst_177 = arith.constant 0.000000e+00 : f32
    %1413 = vector.broadcast %cst_177 : f32 to vector<8x128xf32>
    %1414 = arith.maximumf %1412, %1413 : vector<8x128xf32>
    %1415 = vector.broadcast %32 : f32 to vector<8x128xf32>
    %1416 = arith.mulf %1415, %1204 : vector<8x128xf32>
    %1417 = vector.broadcast %33 : f32 to vector<8x128xf32>
    %1418 = arith.mulf %1417, %1234 : vector<8x128xf32>
    %1419 = arith.addf %1416, %1418 : vector<8x128xf32>
    %1420 = vector.broadcast %34 : f32 to vector<8x128xf32>
    %1421 = arith.mulf %1420, %1219 : vector<8x128xf32>
    %1422 = vector.broadcast %35 : f32 to vector<8x128xf32>
    %1423 = arith.mulf %1422, %1249 : vector<8x128xf32>
    %1424 = arith.addf %1421, %1423 : vector<8x128xf32>
    %1425 = arith.addf %1419, %1424 : vector<8x128xf32>
    %1426 = vector.broadcast %37 : f32 to vector<8x128xf32>
    %1427 = arith.addf %1425, %1426 : vector<8x128xf32>
    %cst_178 = arith.constant 0.000000e+00 : f32
    %1428 = vector.broadcast %cst_178 : f32 to vector<8x128xf32>
    %1429 = arith.maximumf %1427, %1428 : vector<8x128xf32>
    %1430 = vector.broadcast %28 : f32 to vector<8x128xf32>
    %1431 = arith.mulf %1430, %1264 : vector<8x128xf32>
    %1432 = vector.broadcast %29 : f32 to vector<8x128xf32>
    %1433 = arith.mulf %1432, %1294 : vector<8x128xf32>
    %1434 = arith.addf %1431, %1433 : vector<8x128xf32>
    %1435 = vector.broadcast %30 : f32 to vector<8x128xf32>
    %1436 = arith.mulf %1435, %1279 : vector<8x128xf32>
    %1437 = vector.broadcast %31 : f32 to vector<8x128xf32>
    %1438 = arith.mulf %1437, %1309 : vector<8x128xf32>
    %1439 = arith.addf %1436, %1438 : vector<8x128xf32>
    %1440 = arith.addf %1434, %1439 : vector<8x128xf32>
    %1441 = vector.broadcast %36 : f32 to vector<8x128xf32>
    %1442 = arith.addf %1440, %1441 : vector<8x128xf32>
    %cst_179 = arith.constant 0.000000e+00 : f32
    %1443 = vector.broadcast %cst_179 : f32 to vector<8x128xf32>
    %1444 = arith.maximumf %1442, %1443 : vector<8x128xf32>
    %1445 = vector.broadcast %32 : f32 to vector<8x128xf32>
    %1446 = arith.mulf %1445, %1264 : vector<8x128xf32>
    %1447 = vector.broadcast %33 : f32 to vector<8x128xf32>
    %1448 = arith.mulf %1447, %1294 : vector<8x128xf32>
    %1449 = arith.addf %1446, %1448 : vector<8x128xf32>
    %1450 = vector.broadcast %34 : f32 to vector<8x128xf32>
    %1451 = arith.mulf %1450, %1279 : vector<8x128xf32>
    %1452 = vector.broadcast %35 : f32 to vector<8x128xf32>
    %1453 = arith.mulf %1452, %1309 : vector<8x128xf32>
    %1454 = arith.addf %1451, %1453 : vector<8x128xf32>
    %1455 = arith.addf %1449, %1454 : vector<8x128xf32>
    %1456 = vector.broadcast %37 : f32 to vector<8x128xf32>
    %1457 = arith.addf %1455, %1456 : vector<8x128xf32>
    %cst_180 = arith.constant 0.000000e+00 : f32
    %1458 = vector.broadcast %cst_180 : f32 to vector<8x128xf32>
    %1459 = arith.maximumf %1457, %1458 : vector<8x128xf32>
    %1460 = vector.broadcast %28 : f32 to vector<8x128xf32>
    %1461 = arith.mulf %1460, %1324 : vector<8x128xf32>
    %1462 = vector.broadcast %29 : f32 to vector<8x128xf32>
    %1463 = arith.mulf %1462, %1354 : vector<8x128xf32>
    %1464 = arith.addf %1461, %1463 : vector<8x128xf32>
    %1465 = vector.broadcast %30 : f32 to vector<8x128xf32>
    %1466 = arith.mulf %1465, %1339 : vector<8x128xf32>
    %1467 = vector.broadcast %31 : f32 to vector<8x128xf32>
    %1468 = arith.mulf %1467, %1369 : vector<8x128xf32>
    %1469 = arith.addf %1466, %1468 : vector<8x128xf32>
    %1470 = arith.addf %1464, %1469 : vector<8x128xf32>
    %1471 = vector.broadcast %36 : f32 to vector<8x128xf32>
    %1472 = arith.addf %1470, %1471 : vector<8x128xf32>
    %cst_181 = arith.constant 0.000000e+00 : f32
    %1473 = vector.broadcast %cst_181 : f32 to vector<8x128xf32>
    %1474 = arith.maximumf %1472, %1473 : vector<8x128xf32>
    %1475 = vector.broadcast %32 : f32 to vector<8x128xf32>
    %1476 = arith.mulf %1475, %1324 : vector<8x128xf32>
    %1477 = vector.broadcast %33 : f32 to vector<8x128xf32>
    %1478 = arith.mulf %1477, %1354 : vector<8x128xf32>
    %1479 = arith.addf %1476, %1478 : vector<8x128xf32>
    %1480 = vector.broadcast %34 : f32 to vector<8x128xf32>
    %1481 = arith.mulf %1480, %1339 : vector<8x128xf32>
    %1482 = vector.broadcast %35 : f32 to vector<8x128xf32>
    %1483 = arith.mulf %1482, %1369 : vector<8x128xf32>
    %1484 = arith.addf %1481, %1483 : vector<8x128xf32>
    %1485 = arith.addf %1479, %1484 : vector<8x128xf32>
    %1486 = vector.broadcast %37 : f32 to vector<8x128xf32>
    %1487 = arith.addf %1485, %1486 : vector<8x128xf32>
    %cst_182 = arith.constant 0.000000e+00 : f32
    %1488 = vector.broadcast %cst_182 : f32 to vector<8x128xf32>
    %1489 = arith.maximumf %1487, %1488 : vector<8x128xf32>
    %1490 = vector.broadcast %38 : f32 to vector<8x128xf32>
    %1491 = arith.mulf %1490, %1384 : vector<8x128xf32>
    %1492 = vector.broadcast %39 : f32 to vector<8x128xf32>
    %1493 = arith.mulf %1492, %1414 : vector<8x128xf32>
    %1494 = arith.addf %1491, %1493 : vector<8x128xf32>
    %1495 = vector.broadcast %40 : f32 to vector<8x128xf32>
    %1496 = arith.mulf %1495, %1399 : vector<8x128xf32>
    %1497 = vector.broadcast %41 : f32 to vector<8x128xf32>
    %1498 = arith.mulf %1497, %1429 : vector<8x128xf32>
    %1499 = arith.addf %1496, %1498 : vector<8x128xf32>
    %1500 = arith.addf %1494, %1499 : vector<8x128xf32>
    %1501 = vector.broadcast %50 : f32 to vector<8x128xf32>
    %1502 = arith.addf %1500, %1501 : vector<8x128xf32>
    %cst_183 = arith.constant 0.000000e+00 : f32
    %1503 = vector.broadcast %cst_183 : f32 to vector<8x128xf32>
    %1504 = arith.maximumf %1502, %1503 : vector<8x128xf32>
    %1505 = vector.broadcast %42 : f32 to vector<8x128xf32>
    %1506 = arith.mulf %1505, %1384 : vector<8x128xf32>
    %1507 = vector.broadcast %43 : f32 to vector<8x128xf32>
    %1508 = arith.mulf %1507, %1414 : vector<8x128xf32>
    %1509 = arith.addf %1506, %1508 : vector<8x128xf32>
    %1510 = vector.broadcast %44 : f32 to vector<8x128xf32>
    %1511 = arith.mulf %1510, %1399 : vector<8x128xf32>
    %1512 = vector.broadcast %45 : f32 to vector<8x128xf32>
    %1513 = arith.mulf %1512, %1429 : vector<8x128xf32>
    %1514 = arith.addf %1511, %1513 : vector<8x128xf32>
    %1515 = arith.addf %1509, %1514 : vector<8x128xf32>
    %1516 = vector.broadcast %51 : f32 to vector<8x128xf32>
    %1517 = arith.addf %1515, %1516 : vector<8x128xf32>
    %cst_184 = arith.constant 0.000000e+00 : f32
    %1518 = vector.broadcast %cst_184 : f32 to vector<8x128xf32>
    %1519 = arith.maximumf %1517, %1518 : vector<8x128xf32>
    %1520 = vector.broadcast %46 : f32 to vector<8x128xf32>
    %1521 = arith.mulf %1520, %1384 : vector<8x128xf32>
    %1522 = vector.broadcast %47 : f32 to vector<8x128xf32>
    %1523 = arith.mulf %1522, %1414 : vector<8x128xf32>
    %1524 = arith.addf %1521, %1523 : vector<8x128xf32>
    %1525 = vector.broadcast %48 : f32 to vector<8x128xf32>
    %1526 = arith.mulf %1525, %1399 : vector<8x128xf32>
    %1527 = vector.broadcast %49 : f32 to vector<8x128xf32>
    %1528 = arith.mulf %1527, %1429 : vector<8x128xf32>
    %1529 = arith.addf %1526, %1528 : vector<8x128xf32>
    %1530 = arith.addf %1524, %1529 : vector<8x128xf32>
    %1531 = vector.broadcast %52 : f32 to vector<8x128xf32>
    %1532 = arith.addf %1530, %1531 : vector<8x128xf32>
    %cst_185 = arith.constant 0.000000e+00 : f32
    %1533 = vector.broadcast %cst_185 : f32 to vector<8x128xf32>
    %1534 = arith.maximumf %1532, %1533 : vector<8x128xf32>
    %1535 = vector.broadcast %38 : f32 to vector<8x128xf32>
    %1536 = arith.mulf %1535, %1444 : vector<8x128xf32>
    %1537 = vector.broadcast %39 : f32 to vector<8x128xf32>
    %1538 = arith.mulf %1537, %1474 : vector<8x128xf32>
    %1539 = arith.addf %1536, %1538 : vector<8x128xf32>
    %1540 = vector.broadcast %40 : f32 to vector<8x128xf32>
    %1541 = arith.mulf %1540, %1459 : vector<8x128xf32>
    %1542 = vector.broadcast %41 : f32 to vector<8x128xf32>
    %1543 = arith.mulf %1542, %1489 : vector<8x128xf32>
    %1544 = arith.addf %1541, %1543 : vector<8x128xf32>
    %1545 = arith.addf %1539, %1544 : vector<8x128xf32>
    %1546 = vector.broadcast %50 : f32 to vector<8x128xf32>
    %1547 = arith.addf %1545, %1546 : vector<8x128xf32>
    %cst_186 = arith.constant 0.000000e+00 : f32
    %1548 = vector.broadcast %cst_186 : f32 to vector<8x128xf32>
    %1549 = arith.maximumf %1547, %1548 : vector<8x128xf32>
    %1550 = vector.broadcast %42 : f32 to vector<8x128xf32>
    %1551 = arith.mulf %1550, %1444 : vector<8x128xf32>
    %1552 = vector.broadcast %43 : f32 to vector<8x128xf32>
    %1553 = arith.mulf %1552, %1474 : vector<8x128xf32>
    %1554 = arith.addf %1551, %1553 : vector<8x128xf32>
    %1555 = vector.broadcast %44 : f32 to vector<8x128xf32>
    %1556 = arith.mulf %1555, %1459 : vector<8x128xf32>
    %1557 = vector.broadcast %45 : f32 to vector<8x128xf32>
    %1558 = arith.mulf %1557, %1489 : vector<8x128xf32>
    %1559 = arith.addf %1556, %1558 : vector<8x128xf32>
    %1560 = arith.addf %1554, %1559 : vector<8x128xf32>
    %1561 = vector.broadcast %51 : f32 to vector<8x128xf32>
    %1562 = arith.addf %1560, %1561 : vector<8x128xf32>
    %cst_187 = arith.constant 0.000000e+00 : f32
    %1563 = vector.broadcast %cst_187 : f32 to vector<8x128xf32>
    %1564 = arith.maximumf %1562, %1563 : vector<8x128xf32>
    %1565 = vector.broadcast %46 : f32 to vector<8x128xf32>
    %1566 = arith.mulf %1565, %1444 : vector<8x128xf32>
    %1567 = vector.broadcast %47 : f32 to vector<8x128xf32>
    %1568 = arith.mulf %1567, %1474 : vector<8x128xf32>
    %1569 = arith.addf %1566, %1568 : vector<8x128xf32>
    %1570 = vector.broadcast %48 : f32 to vector<8x128xf32>
    %1571 = arith.mulf %1570, %1459 : vector<8x128xf32>
    %1572 = vector.broadcast %49 : f32 to vector<8x128xf32>
    %1573 = arith.mulf %1572, %1489 : vector<8x128xf32>
    %1574 = arith.addf %1571, %1573 : vector<8x128xf32>
    %1575 = arith.addf %1569, %1574 : vector<8x128xf32>
    %1576 = vector.broadcast %52 : f32 to vector<8x128xf32>
    %1577 = arith.addf %1575, %1576 : vector<8x128xf32>
    %cst_188 = arith.constant 0.000000e+00 : f32
    %1578 = vector.broadcast %cst_188 : f32 to vector<8x128xf32>
    %1579 = arith.maximumf %1577, %1578 : vector<8x128xf32>
    %1580 = vector.broadcast %53 : f32 to vector<8x128xf32>
    %1581 = arith.mulf %1580, %1504 : vector<8x128xf32>
    %1582 = vector.broadcast %54 : f32 to vector<8x128xf32>
    %1583 = arith.mulf %1582, %1549 : vector<8x128xf32>
    %1584 = arith.addf %1581, %1583 : vector<8x128xf32>
    %1585 = vector.broadcast %55 : f32 to vector<8x128xf32>
    %1586 = arith.mulf %1585, %1519 : vector<8x128xf32>
    %1587 = vector.broadcast %56 : f32 to vector<8x128xf32>
    %1588 = arith.mulf %1587, %1564 : vector<8x128xf32>
    %1589 = arith.addf %1586, %1588 : vector<8x128xf32>
    %1590 = arith.addf %1584, %1589 : vector<8x128xf32>
    %1591 = vector.broadcast %57 : f32 to vector<8x128xf32>
    %1592 = arith.mulf %1591, %1534 : vector<8x128xf32>
    %1593 = vector.broadcast %58 : f32 to vector<8x128xf32>
    %1594 = arith.mulf %1593, %1579 : vector<8x128xf32>
    %1595 = arith.addf %1592, %1594 : vector<8x128xf32>
    %1596 = arith.addf %1590, %1595 : vector<8x128xf32>
    %1597 = vector.broadcast %59 : f32 to vector<8x128xf32>
    %1598 = arith.addf %1596, %1597 : vector<8x128xf32>
    %1599 = arith.index_cast %61 : i32 to index
    %c0_189 = arith.constant 0 : index
    %1600 = vector.load %arg3[%1599, %c0_189] : memref<8x128xf32, #tpu.memory_space<vmem>>, vector<8x128xf32>
    tpu.vector_store %arg3[%1599, %c0_189], %1598 {strides = array<i32>} : memref<8x128xf32, #tpu.memory_space<vmem>>, vector<8x128xf32>,
    %c1_i32 = arith.constant 1 : i32
    return
  }
  func.func @transform_0(%arg0: i32, %arg1: memref<60xf32, #tpu.memory_space<smem>>) -> (i32, i32, i32) {
    %c0_i32 = arith.constant 0 : i32
    %c0_i32_0 = arith.constant 0 : i32
    %c0_i32_1 = arith.constant 0 : i32
    return %c0_i32, %arg0, %c0_i32_0 : i32, i32, i32
  }
  func.func @transform_1(%arg0: i32, %arg1: memref<60xf32, #tpu.memory_space<smem>>) -> (i32, i32) {
    %c0_i32 = arith.constant 0 : i32
    %c0_i32_0 = arith.constant 0 : i32
    return %arg0, %c0_i32 : i32, i32
  }
}

</mosaic_0001>

<llo_original>
// kernel: dilated_net_forward.2
$region0: #{dilated_net_forward.2}
  #allocation0 [shape = 'u32[]', space=smem, size = 0x4, offset = 0x4, fixed_abs, tag = 'smem constant byte address 0x4 - core index']
  #allocation1 [shape = 'u32[144,128]{1,0:T(1,128)}', space=vmem, size = 0x12000, scoped, tag = 'internal scratch']
  #allocation2 [shape = 's32[1]{0}', space=sflag, size = 0x4, scoped, tag = 'scoped memory for dilated_net_forward.2']
  #allocation3 [shape = 'u8[512]{0}', space=smem, size = 0x200, scoped, tag = 'prefetched SMEM operand 0']
  #allocation4 [shape = 'u32[2048]{0}', space=vmem, size = 0x2000, scoped, tag = 'scoped memory for dilated_net_forward.2']
  #allocation5 [shape = 'u32[2048]{0}', space=vmem, size = 0x2000, scoped, tag = 'scoped memory for dilated_net_forward.2']
  #allocation6 [shape = 'u32[2048]{0}', space=vmem, size = 0x2000, scoped, tag = 'scoped memory for dilated_net_forward.2']
  #allocation7 [shape = 'u32[2048]{0}', space=vmem, size = 0x2000, scoped, tag = 'scoped memory for dilated_net_forward.2']
  #allocation8 [shape = 'u32[2048]{0}', space=vmem, size = 0x2000, scoped, tag = 'scoped memory for dilated_net_forward.2']
  %s0 = inlined_call_operand.vmem [shape: f32[60], index: 0, kind: input, shape index: {}]
  %s1 = inlined_call_operand.vmem [shape: f32[72,8,128], index: 1, kind: input, shape index: {}]
  %s2 = inlined_call_operand.vmem [shape: f32[8,128], index: 2, kind: output, shape index: {}]
  %s3 = sld [smem:[#allocation0]]
  $region14: #{dilated_net_forward.2} parent=0
    _
  %s5 = ssub.s32 1, %s3
  %s6 = scalar_select 0, %s5, %s3
  %s7 = sshll.u32 %s0, 4
  %s8 = int_to_ptr.vmem [resolvable:$true] %s7
  %10 = dma.vmem_to_smem %s8, 16, [#allocation3], [#allocation2]
  %11 = dma.done [#allocation2], 16
  %12 = sfence
  $region1: #{dilated_net_forward.2} parent=0
    #allocation9 [shape = 'u8[278528]{0}', space=vmem, size = 0x44000, dematerialized = true, scoped, tag = 'FusionAdapter Buffer %fusion.1 = f32[68,8,128]{2,1,0:T(8,128)} fusion(%param_1.1), kind=kLoop, calls=%fused_computation.1.clone, metadata={op_name="jit(dilated_net_forward)/reshape" stack_frame_id=12}']
    // Predicated region
    $region2: #{dilated_net_forward.2} parent=1 // pred_check
      _
    $region3: #{dilated_net_forward.2} parent=1 // pred_check_branch
      %14 = sbr.rel (0) target = $region5
    $region4: #{dilated_net_forward.2} parent=1 // pred_region
      _
    $region5: #{dilated_net_forward.2} parent=1 // pred_fallthru
      _
    %v15 = vld [vmem:[%s1] sm:$0xff]
    %17 = vst [vmem:[#allocation9] sm:$0xff] %v15
    %s18 = scalar_lea.vmem %s1, 8
    %v19 = vld [vmem:[%s18] sm:$0xff]
    %s20 = scalar_lea.vmem [#allocation9], 8
    %22 = vst [vmem:[%s20] sm:$0xff] %v19
    %s23 = scalar_lea.vmem %s1, 16
    %v24 = vld [vmem:[%s23] sm:$0xff]
    %s25 = scalar_lea.vmem [#allocation9], 16
    %27 = vst [vmem:[%s25] sm:$0xff] %v24
    %s28 = scalar_lea.vmem %s1, 24
    %v29 = vld [vmem:[%s28] sm:$0xff]
    %s30 = scalar_lea.vmem [#allocation9], 24
    %32 = vst [vmem:[%s30] sm:$0xff] %v29
    %s33 = scalar_lea.vmem %s1, 32
    %v34 = vld [vmem:[%s33] sm:$0xff]
    %s35 = scalar_lea.vmem [#allocation9], 32
    %37 = vst [vmem:[%s35] sm:$0xff] %v34
    %s38 = scalar_lea.vmem %s1, 40
    %v39 = vld [vmem:[%s38] sm:$0xff]
    %s40 = scalar_lea.vmem [#allocation9], 40
    %42 = vst [vmem:[%s40] sm:$0xff] %v39
    %s43 = scalar_lea.vmem %s1, 48
    %v44 = vld [vmem:[%s43] sm:$0xff]
    %s45 = scalar_lea.vmem [#allocation9], 48
    %47 = vst [vmem:[%s45] sm:$0xff] %v44
    %s48 = scalar_lea.vmem %s1, 56
    %v49 = vld [vmem:[%s48] sm:$0xff]
    %s50 = scalar_lea.vmem [#allocation9], 56
    %52 = vst [vmem:[%s50] sm:$0xff] %v49
    %s53 = scalar_lea.vmem %s1, 64
    %v54 = vld [vmem:[%s53] sm:$0xff]
    %s55 = scalar_lea.vmem [#allocation9], 64
    %57 = vst [vmem:[%s55] sm:$0xff] %v54
    %s58 = scalar_lea.vmem %s1, 72
    %v59 = vld [vmem:[%s58] sm:$0xff]
    %s60 = scalar_lea.vmem [#allocation9], 72
    %62 = vst [vmem:[%s60] sm:$0xff] %v59
    %s63 = scalar_lea.vmem %s1, 80
    %v64 = vld [vmem:[%s63] sm:$0xff]
    %s65 = scalar_lea.vmem [#allocation9], 80
    %67 = vst [vmem:[%s65] sm:$0xff] %v64
    %s68 = scalar_lea.vmem %s1, 88
    %v69 = vld [vmem:[%s68] sm:$0xff]
    %s70 = scalar_lea.vmem [#allocation9], 88
    %72 = vst [vmem:[%s70] sm:$0xff] %v69
    %s73 = scalar_lea.vmem %s1, 96
    %v74 = vld [vmem:[%s73] sm:$0xff]
    %s75 = scalar_lea.vmem [#allocation9], 96
    %77 = vst [vmem:[%s75] sm:$0xff] %v74
    %s78 = scalar_lea.vmem %s1, 104
    %v79 = vld [vmem:[%s78] sm:$0xff]
    %s80 = scalar_lea.vmem [#allocation9], 104
    %82 = vst [vmem:[%s80] sm:$0xff] %v79
    %s83 = scalar_lea.vmem %s1, 112
    %v84 = vld [vmem:[%s83] sm:$0xff]
    %s85 = scalar_lea.vmem [#allocation9], 112
    %87 = vst [vmem:[%s85] sm:$0xff] %v84
    %s88 = scalar_lea.vmem %s1, 120
    %v89 = vld [vmem:[%s88] sm:$0xff]
    %s90 = scalar_lea.vmem [#allocation9], 120
    %92 = vst [vmem:[%s90] sm:$0xff] %v89
    %s93 = scalar_lea.vmem %s1, 128
    %v94 = vld [vmem:[%s93] sm:$0xff]
    %s95 = scalar_lea.vmem [#allocation9], 128
    %97 = vst [vmem:[%s95] sm:$0xff] %v94
    %s98 = scalar_lea.vmem %s1, 136
    %v99 = vld [vmem:[%s98] sm:$0xff]
    %s100 = scalar_lea.vmem [#allocation9], 136
    %102 = vst [vmem:[%s100] sm:$0xff] %v99
    %s103 = scalar_lea.vmem %s1, 144
    %v104 = vld [vmem:[%s103] sm:$0xff]
    %s105 = scalar_lea.vmem [#allocation9], 144
    %107 = vst [vmem:[%s105] sm:$0xff] %v104
    %s108 = scalar_lea.vmem %s1, 152
    %v109 = vld [vmem:[%s108] sm:$0xff]
    %s110 = scalar_lea.vmem [#allocation9], 152
    %112 = vst [vmem:[%s110] sm:$0xff] %v109
    %s113 = scalar_lea.vmem %s1, 160
    %v114 = vld [vmem:[%s113] sm:$0xff]
    %s115 = scalar_lea.vmem [#allocation9], 160
    %117 = vst [vmem:[%s115] sm:$0xff] %v114
    %s118 = scalar_lea.vmem %s1, 168
    %v119 = vld [vmem:[%s118] sm:$0xff]
    %s120 = scalar_lea.vmem [#allocation9], 168
    %122 = vst [vmem:[%s120] sm:$0xff] %v119
    %s123 = scalar_lea.vmem %s1, 176
    %v124 = vld [vmem:[%s123] sm:$0xff]
    %s125 = scalar_lea.vmem [#allocation9], 176
    %127 = vst [vmem:[%s125] sm:$0xff] %v124
    %s128 = scalar_lea.vmem %s1, 184
    %v129 = vld [vmem:[%s128] sm:$0xff]
    %s130 = scalar_lea.vmem [#allocation9], 184
    %132 = vst [vmem:[%s130] sm:$0xff] %v129
    %s133 = scalar_lea.vmem %s1, 192
    %v134 = vld [vmem:[%s133] sm:$0xff]
    %s135 = scalar_lea.vmem [#allocation9], 192
    %137 = vst [vmem:[%s135] sm:$0xff] %v134
    %s138 = scalar_lea.vmem %s1, 200
    %v139 = vld [vmem:[%s138] sm:$0xff]
    %s140 = scalar_lea.vmem [#allocation9], 200
    %142 = vst [vmem:[%s140] sm:$0xff] %v139
    %s143 = scalar_lea.vmem %s1, 208
    %v144 = vld [vmem:[%s143] sm:$0xff]
    %s145 = scalar_lea.vmem [#allocation9], 208
    %147 = vst [vmem:[%s145] sm:$0xff] %v144
    %s148 = scalar_lea.vmem %s1, 216
    %v149 = vld [vmem:[%s148] sm:$0xff]
    %s150 = scalar_lea.vmem [#allocation9], 216
    %152 = vst [vmem:[%s150] sm:$0xff] %v149
    %s153 = scalar_lea.vmem %s1, 224
    %v154 = vld [vmem:[%s153] sm:$0xff]
    %s155 = scalar_lea.vmem [#allocation9], 224
    %157 = vst [vmem:[%s155] sm:$0xff] %v154
    %s158 = scalar_lea.vmem %s1, 232
    %v159 = vld [vmem:[%s158] sm:$0xff]
    %s160 = scalar_lea.vmem [#allocation9], 232
    %162 = vst [vmem:[%s160] sm:$0xff] %v159
    %s163 = scalar_lea.vmem %s1, 240
    %v164 = vld [vmem:[%s163] sm:$0xff]
    %s165 = scalar_lea.vmem [#allocation9], 240
    %167 = vst [vmem:[%s165] sm:$0xff] %v164
    %s168 = scalar_lea.vmem %s1, 248
    %v169 = vld [vmem:[%s168] sm:$0xff]
    %s170 = scalar_lea.vmem [#allocation9], 248
    %172 = vst [vmem:[%s170] sm:$0xff] %v169
    %s173 = scalar_lea.vmem %s1, 256
    %v174 = vld [vmem:[%s173] sm:$0xff]
    %s175 = scalar_lea.vmem [#allocation9], 256
    %177 = vst [vmem:[%s175] sm:$0xff] %v174
    %s178 = scalar_lea.vmem %s1, 264
    %v179 = vld [vmem:[%s178] sm:$0xff]
    %s180 = scalar_lea.vmem [#allocation9], 264
    %182 = vst [vmem:[%s180] sm:$0xff] %v179
    %s183 = scalar_lea.vmem %s1, 272
    %v184 = vld [vmem:[%s183] sm:$0xff]
    %s185 = scalar_lea.vmem [#allocation9], 272
    %187 = vst [vmem:[%s185] sm:$0xff] %v184
    %s188 = scalar_lea.vmem %s1, 280
    %v189 = vld [vmem:[%s188] sm:$0xff]
    %s190 = scalar_lea.vmem [#allocation9], 280
    %192 = vst [vmem:[%s190] sm:$0xff] %v189
    %s193 = scalar_lea.vmem %s1, 288
    %v194 = vld [vmem:[%s193] sm:$0xff]
    %s195 = scalar_lea.vmem [#allocation9], 288
    %197 = vst [vmem:[%s195] sm:$0xff] %v194
    %s198 = scalar_lea.vmem %s1, 296
    %v199 = vld [vmem:[%s198] sm:$0xff]
    %s200 = scalar_lea.vmem [#allocation9], 296
    %202 = vst [vmem:[%s200] sm:$0xff] %v199
    %s203 = scalar_lea.vmem %s1, 304
    %v204 = vld [vmem:[%s203] sm:$0xff]
    %s205 = scalar_lea.vmem [#allocation9], 304
    %207 = vst [vmem:[%s205] sm:$0xff] %v204
    %s208 = scalar_lea.vmem %s1, 312
    %v209 = vld [vmem:[%s208] sm:$0xff]
    %s210 = scalar_lea.vmem [#allocation9], 312
    %212 = vst [vmem:[%s210] sm:$0xff] %v209
    %s213 = scalar_lea.vmem %s1, 320
    %v214 = vld [vmem:[%s213] sm:$0xff]
    %s215 = scalar_lea.vmem [#allocation9], 320
    %217 = vst [vmem:[%s215] sm:$0xff] %v214
    %s218 = scalar_lea.vmem %s1, 328
    %v219 = vld [vmem:[%s218] sm:$0xff]
    %s220 = scalar_lea.vmem [#allocation9], 328
    %222 = vst [vmem:[%s220] sm:$0xff] %v219
    %s223 = scalar_lea.vmem %s1, 336
    %v224 = vld [vmem:[%s223] sm:$0xff]
    %s225 = scalar_lea.vmem [#allocation9], 336
    %227 = vst [vmem:[%s225] sm:$0xff] %v224
    %s228 = scalar_lea.vmem %s1, 344
    %v229 = vld [vmem:[%s228] sm:$0xff]
    %s230 = scalar_lea.vmem [#allocation9], 344
    %232 = vst [vmem:[%s230] sm:$0xff] %v229
    %s233 = scalar_lea.vmem %s1, 352
    %v234 = vld [vmem:[%s233] sm:$0xff]
    %s235 = scalar_lea.vmem [#allocation9], 352
    %237 = vst [vmem:[%s235] sm:$0xff] %v234
    %s238 = scalar_lea.vmem %s1, 360
    %v239 = vld [vmem:[%s238] sm:$0xff]
    %s240 = scalar_lea.vmem [#allocation9], 360
    %242 = vst [vmem:[%s240] sm:$0xff] %v239
    %s243 = scalar_lea.vmem %s1, 368
    %v244 = vld [vmem:[%s243] sm:$0xff]
    %s245 = scalar_lea.vmem [#allocation9], 368
    %247 = vst [vmem:[%s245] sm:$0xff] %v244
    %s248 = scalar_lea.vmem %s1, 376
    %v249 = vld [vmem:[%s248] sm:$0xff]
    %s250 = scalar_lea.vmem [#allocation9], 376
    %252 = vst [vmem:[%s250] sm:$0xff] %v249
    %s253 = scalar_lea.vmem %s1, 384
    %v254 = vld [vmem:[%s253] sm:$0xff]
    %s255 = scalar_lea.vmem [#allocation9], 384
    %257 = vst [vmem:[%s255] sm:$0xff] %v254
    %s258 = scalar_lea.vmem %s1, 392
    %v259 = vld [vmem:[%s258] sm:$0xff]
    %s260 = scalar_lea.vmem [#allocation9], 392
    %262 = vst [vmem:[%s260] sm:$0xff] %v259
    %s263 = scalar_lea.vmem %s1, 400
    %v264 = vld [vmem:[%s263] sm:$0xff]
    %s265 = scalar_lea.vmem [#allocation9], 400
    %267 = vst [vmem:[%s265] sm:$0xff] %v264
    %s268 = scalar_lea.vmem %s1, 408
    %v269 = vld [vmem:[%s268] sm:$0xff]
    %s270 = scalar_lea.vmem [#allocation9], 408
    %272 = vst [vmem:[%s270] sm:$0xff] %v269
    %s273 = scalar_lea.vmem %s1, 416
    %v274 = vld [vmem:[%s273] sm:$0xff]
    %s275 = scalar_lea.vmem [#allocation9], 416
    %277 = vst [vmem:[%s275] sm:$0xff] %v274
    %s278 = scalar_lea.vmem %s1, 424
    %v279 = vld [vmem:[%s278] sm:$0xff]
    %s280 = scalar_lea.vmem [#allocation9], 424
    %282 = vst [vmem:[%s280] sm:$0xff] %v279
    %s283 = scalar_lea.vmem %s1, 432
    %v284 = vld [vmem:[%s283] sm:$0xff]
    %s285 = scalar_lea.vmem [#allocation9], 432
    %287 = vst [vmem:[%s285] sm:$0xff] %v284
    %s288 = scalar_lea.vmem %s1, 440
    %v289 = vld [vmem:[%s288] sm:$0xff]
    %s290 = scalar_lea.vmem [#allocation9], 440
    %292 = vst [vmem:[%s290] sm:$0xff] %v289
    %s293 = scalar_lea.vmem %s1, 448
    %v294 = vld [vmem:[%s293] sm:$0xff]
    %s295 = scalar_lea.vmem [#allocation9], 448
    %297 = vst [vmem:[%s295] sm:$0xff] %v294
    %s298 = scalar_lea.vmem %s1, 456
    %v299 = vld [vmem:[%s298] sm:$0xff]
    %s300 = scalar_lea.vmem [#allocation9], 456
    %302 = vst [vmem:[%s300] sm:$0xff] %v299
    %s303 = scalar_lea.vmem %s1, 464
    %v304 = vld [vmem:[%s303] sm:$0xff]
    %s305 = scalar_lea.vmem [#allocation9], 464
    %307 = vst [vmem:[%s305] sm:$0xff] %v304
    %s308 = scalar_lea.vmem %s1, 472
    %v309 = vld [vmem:[%s308] sm:$0xff]
    %s310 = scalar_lea.vmem [#allocation9], 472
    %312 = vst [vmem:[%s310] sm:$0xff] %v309
    %s313 = scalar_lea.vmem %s1, 480
    %v314 = vld [vmem:[%s313] sm:$0xff]
    %s315 = scalar_lea.vmem [#allocation9], 480
    %317 = vst [vmem:[%s315] sm:$0xff] %v314
    %s318 = scalar_lea.vmem %s1, 488
    %v319 = vld [vmem:[%s318] sm:$0xff]
    %s320 = scalar_lea.vmem [#allocation9], 488
    %322 = vst [vmem:[%s320] sm:$0xff] %v319
    %s323 = scalar_lea.vmem %s1, 496
    %v324 = vld [vmem:[%s323] sm:$0xff]
    %s325 = scalar_lea.vmem [#allocation9], 496
    %327 = vst [vmem:[%s325] sm:$0xff] %v324
    %s328 = scalar_lea.vmem %s1, 504
    %v329 = vld [vmem:[%s328] sm:$0xff]
    %s330 = scalar_lea.vmem [#allocation9], 504
    %332 = vst [vmem:[%s330] sm:$0xff] %v329
    %s333 = scalar_lea.vmem %s1, 512
    %v334 = vld [vmem:[%s333] sm:$0xff]
    %s335 = scalar_lea.vmem [#allocation9], 512
    %337 = vst [vmem:[%s335] sm:$0xff] %v334
    %s338 = scalar_lea.vmem %s1, 520
    %v339 = vld [vmem:[%s338] sm:$0xff]
    %s340 = scalar_lea.vmem [#allocation9], 520
    %342 = vst [vmem:[%s340] sm:$0xff] %v339
    %s343 = scalar_lea.vmem %s1, 528
    %v344 = vld [vmem:[%s343] sm:$0xff]
    %s345 = scalar_lea.vmem [#allocation9], 528
    %347 = vst [vmem:[%s345] sm:$0xff] %v344
    %s348 = scalar_lea.vmem %s1, 536
    %v349 = vld [vmem:[%s348] sm:$0xff]
    %s350 = scalar_lea.vmem [#allocation9], 536
    %352 = vst [vmem:[%s350] sm:$0xff] %v349
    %s353 = sld [smem:[#allocation3]]
    %s354 = sld [smem:[#allocation3 + $0x1]]
    %s355 = sld [smem:[#allocation3 + $0x2]]
    %s356 = sld [smem:[#allocation3 + $0x3]]
    %s357 = sld [smem:[#allocation3 + $0x4]]
    %s358 = sld [smem:[#allocation3 + $0x5]]
    %s359 = sld [smem:[#allocation3 + $0x6]]
    %s360 = sld [smem:[#allocation3 + $0x7]]
    %s361 = sld [smem:[#allocation3 + $0x8]]
    %s362 = sld [smem:[#allocation3 + $0x9]]
    %s363 = sld [smem:[#allocation3 + $0xa]]
    %s364 = sld [smem:[#allocation3 + $0xb]]
    %s365 = sld [smem:[#allocation3 + $0xc]]
    %s366 = sld [smem:[#allocation3 + $0xd]]
    %s367 = sld [smem:[#allocation3 + $0xe]]
    %s368 = sld [smem:[#allocation3 + $0xf]]
    %s369 = sld [smem:[#allocation3 + $0x10]]
    %s370 = sld [smem:[#allocation3 + $0x11]]
    %s371 = sld [smem:[#allocation3 + $0x12]]
    %s372 = sld [smem:[#allocation3 + $0x13]]
    %s373 = sld [smem:[#allocation3 + $0x14]]
    %s374 = sld [smem:[#allocation3 + $0x15]]
    %s375 = sld [smem:[#allocation3 + $0x16]]
    %s376 = sld [smem:[#allocation3 + $0x17]]
    %s377 = sld [smem:[#allocation3 + $0x18]]
    %s378 = sld [smem:[#allocation3 + $0x19]]
    %s379 = sld [smem:[#allocation3 + $0x1a]]
    %s380 = sld [smem:[#allocation3 + $0x1b]]
    %s381 = sld [smem:[#allocation3 + $0x1c]]
    %s382 = sld [smem:[#allocation3 + $0x1d]]
    %s383 = sld [smem:[#allocation3 + $0x1e]]
    %s384 = sld [smem:[#allocation3 + $0x1f]]
    %s385 = sld [smem:[#allocation3 + $0x20]]
    %s386 = sld [smem:[#allocation3 + $0x21]]
    %s387 = sld [smem:[#allocation3 + $0x22]]
    %s388 = sld [smem:[#allocation3 + $0x23]]
    %s389 = sld [smem:[#allocation3 + $0x24]]
    %s390 = sld [smem:[#allocation3 + $0x25]]
    %s391 = sld [smem:[#allocation3 + $0x26]]
    %s392 = sld [smem:[#allocation3 + $0x27]]
    %s393 = sld [smem:[#allocation3 + $0x28]]
    %s394 = sld [smem:[#allocation3 + $0x29]]
    %s395 = sld [smem:[#allocation3 + $0x2a]]
    %s396 = sld [smem:[#allocation3 + $0x2b]]
    %s397 = sld [smem:[#allocation3 + $0x2c]]
    %s398 = sld [smem:[#allocation3 + $0x2d]]
    %s399 = sld [smem:[#allocation3 + $0x2e]]
    %s400 = sld [smem:[#allocation3 + $0x2f]]
    %s401 = sld [smem:[#allocation3 + $0x30]]
    %s402 = sld [smem:[#allocation3 + $0x31]]
    %s403 = sld [smem:[#allocation3 + $0x32]]
    %s404 = sld [smem:[#allocation3 + $0x33]]
    %s405 = sld [smem:[#allocation3 + $0x34]]
    %s406 = sld [smem:[#allocation3 + $0x35]]
    %s407 = sld [smem:[#allocation3 + $0x36]]
    %s408 = sld [smem:[#allocation3 + $0x37]]
    %s409 = sld [smem:[#allocation3 + $0x38]]
    %s410 = sld [smem:[#allocation3 + $0x39]]
    %s411 = sld [smem:[#allocation3 + $0x3a]]
    %s412 = sld [smem:[#allocation3 + $0x3b]]
    %v413 = vld [vmem:[#allocation9] sm:$0xff]
    %v414 = vstv %s353
    %v415 = vmul.f32 %v414, %v413
    %s416 = sadd.s32 0, 8
    %s417 = scalar_lea.vmem [#allocation9], %s416
    %v418 = vld [vmem:[%s417] sm:$0xff]
    %v419 = vstv %s354
    %v420 = vmul.f32 %v419, %v418
    %v421 = vadd.f32 %v415, %v420
    %s422 = sadd.s32 0, 136
    %s423 = scalar_lea.vmem [#allocation9], %s422
    %v424 = vld [vmem:[%s423] sm:$0xff]
    %v425 = vstv %s355
    %v426 = vmul.f32 %v425, %v424
    %s427 = sadd.s32 0, 144
    %s428 = scalar_lea.vmem [#allocation9], %s427
    %v429 = vld [vmem:[%s428] sm:$0xff]
    %v430 = vstv %s356
    %v431 = vmul.f32 %v430, %v429
    %v432 = vadd.f32 %v426, %v431
    %v433 = vadd.f32 %v421, %v432
    %s434 = sadd.s32 0, 272
    %s435 = scalar_lea.vmem [#allocation9], %s434
    %v436 = vld [vmem:[%s435] sm:$0xff]
    %v437 = vstv %s357
    %v438 = vmul.f32 %v437, %v436
    %s439 = sadd.s32 0, 280
    %s440 = scalar_lea.vmem [#allocation9], %s439
    %v441 = vld [vmem:[%s440] sm:$0xff]
    %v442 = vstv %s358
    %v443 = vmul.f32 %v442, %v441
    %v444 = vadd.f32 %v438, %v443
    %v445 = vadd.f32 %v433, %v444
    %s446 = sadd.s32 0, 408
    %s447 = scalar_lea.vmem [#allocation9], %s446
    %v448 = vld [vmem:[%s447] sm:$0xff]
    %v449 = vstv %s359
    %v450 = vmul.f32 %v449, %v448
    %s451 = sadd.s32 0, 416
    %s452 = scalar_lea.vmem [#allocation9], %s451
    %v453 = vld [vmem:[%s452] sm:$0xff]
    %v454 = vstv %s360
    %v455 = vmul.f32 %v454, %v453
    %v456 = vadd.f32 %v450, %v455
    %v457 = vadd.f32 %v445, %v456
    %v458 = vstv %s369
    %v459 = vadd.f32 %v457, %v458
    %v460 = vmax.f32 %v459, 0.0
    %v461 = vstv %s361
    %v462 = vmul.f32 %v461, %v413
    %v463 = vstv %s362
    %v464 = vmul.f32 %v463, %v418
    %v465 = vadd.f32 %v462, %v464
    %v466 = vstv %s363
    %v467 = vmul.f32 %v466, %v424
    %v468 = vstv %s364
    %v469 = vmul.f32 %v468, %v429
    %v470 = vadd.f32 %v467, %v469
    %v471 = vadd.f32 %v465, %v470
    %v472 = vstv %s365
    %v473 = vmul.f32 %v472, %v436
    %v474 = vstv %s366
    %v475 = vmul.f32 %v474, %v441
    %v476 = vadd.f32 %v473, %v475
    %v477 = vadd.f32 %v471, %v476
    %v478 = vstv %s367
    %v479 = vmul.f32 %v478, %v448
    %v480 = vstv %s368
    %v481 = vmul.f32 %v480, %v453
    %v482 = vadd.f32 %v479, %v481
    %v483 = vadd.f32 %v477, %v482
    %v484 = vstv %s370
    %v485 = vadd.f32 %v483, %v484
    %v486 = vmax.f32 %v485, 0.0
    %v487 = vmul.f32 %v414, %v418
    %s488 = sadd.s32 0, 16
    %s489 = scalar_lea.vmem [#allocation9], %s488
    %v490 = vld [vmem:[%s489] sm:$0xff]
    %v491 = vmul.f32 %v419, %v490
    %v492 = vadd.f32 %v487, %v491
    %v493 = vmul.f32 %v425, %v429
    %s494 = sadd.s32 0, 152
    %s495 = scalar_lea.vmem [#allocation9], %s494
    %v496 = vld [vmem:[%s495] sm:$0xff]
    %v497 = vmul.f32 %v430, %v496
    %v498 = vadd.f32 %v493, %v497
    %v499 = vadd.f32 %v492, %v498
    %v500 = vmul.f32 %v437, %v441
    %s501 = sadd.s32 0, 288
    %s502 = scalar_lea.vmem [#allocation9], %s501
    %v503 = vld [vmem:[%s502] sm:$0xff]
    %v504 = vmul.f32 %v442, %v503
    %v505 = vadd.f32 %v500, %v504
    %v506 = vadd.f32 %v499, %v505
    %v507 = vmul.f32 %v449, %v453
    %s508 = sadd.s32 0, 424
    %s509 = scalar_lea.vmem [#allocation9], %s508
    %v510 = vld [vmem:[%s509] sm:$0xff]
    %v511 = vmul.f32 %v454, %v510
    %v512 = vadd.f32 %v507, %v511
    %v513 = vadd.f32 %v506, %v512
    %v514 = vadd.f32 %v513, %v458
    %v515 = vmax.f32 %v514, 0.0
    %v516 = vmul.f32 %v461, %v418
    %v517 = vmul.f32 %v463, %v490
    %v518 = vadd.f32 %v516, %v517
    %v519 = vmul.f32 %v466, %v429
    %v520 = vmul.f32 %v468, %v496
    %v521 = vadd.f32 %v519, %v520
    %v522 = vadd.f32 %v518, %v521
    %v523 = vmul.f32 %v472, %v441
    %v524 = vmul.f32 %v474, %v503
    %v525 = vadd.f32 %v523, %v524
    %v526 = vadd.f32 %v522, %v525
    %v527 = vmul.f32 %v478, %v453
    %v528 = vmul.f32 %v480, %v510
    %v529 = vadd.f32 %v527, %v528
    %v530 = vadd.f32 %v526, %v529
    %v531 = vadd.f32 %v530, %v484
    %v532 = vmax.f32 %v531, 0.0
    %v533 = vmul.f32 %v414, %v490
    %s534 = sadd.s32 0, 24
    %s535 = scalar_lea.vmem [#allocation9], %s534
    %v536 = vld [vmem:[%s535] sm:$0xff]
    %v537 = vmul.f32 %v419, %v536
    %v538 = vadd.f32 %v533, %v537
    %v539 = vmul.f32 %v425, %v496
    %s540 = sadd.s32 0, 160
    %s541 = scalar_lea.vmem [#allocation9], %s540
    %v542 = vld [vmem:[%s541] sm:$0xff]
    %v543 = vmul.f32 %v430, %v542
    %v544 = vadd.f32 %v539, %v543
    %v545 = vadd.f32 %v538, %v544
    %v546 = vmul.f32 %v437, %v503
    %s547 = sadd.s32 0, 296
    %s548 = scalar_lea.vmem [#allocation9], %s547
    %v549 = vld [vmem:[%s548] sm:$0xff]
    %v550 = vmul.f32 %v442, %v549
    %v551 = vadd.f32 %v546, %v550
    %v552 = vadd.f32 %v545, %v551
    %v553 = vmul.f32 %v449, %v510
    %s554 = sadd.s32 0, 432
    %s555 = scalar_lea.vmem [#allocation9], %s554
    %v556 = vld [vmem:[%s555] sm:$0xff]
    %v557 = vmul.f32 %v454, %v556
    %v558 = vadd.f32 %v553, %v557
    %v559 = vadd.f32 %v552, %v558
    %v560 = vadd.f32 %v559, %v458
    %v561 = vmax.f32 %v560, 0.0
    %v562 = vmul.f32 %v461, %v490
    %v563 = vmul.f32 %v463, %v536
    %v564 = vadd.f32 %v562, %v563
    %v565 = vmul.f32 %v466, %v496
    %v566 = vmul.f32 %v468, %v542
    %v567 = vadd.f32 %v565, %v566
    %v568 = vadd.f32 %v564, %v567
    %v569 = vmul.f32 %v472, %v503
    %v570 = vmul.f32 %v474, %v549
    %v571 = vadd.f32 %v569, %v570
    %v572 = vadd.f32 %v568, %v571
    %v573 = vmul.f32 %v478, %v510
    %v574 = vmul.f32 %v480, %v556
    %v575 = vadd.f32 %v573, %v574
    %v576 = vadd.f32 %v572, %v575
    %v577 = vadd.f32 %v576, %v484
    %v578 = vmax.f32 %v577, 0.0
    %v579 = vmul.f32 %v414, %v536
    %s580 = sadd.s32 0, 32
    %s581 = scalar_lea.vmem [#allocation9], %s580
    %v582 = vld [vmem:[%s581] sm:$0xff]
    %v583 = vmul.f32 %v419, %v582
    %v584 = vadd.f32 %v579, %v583
    %v585 = vmul.f32 %v425, %v542
    %s586 = sadd.s32 0, 168
    %s587 = scalar_lea.vmem [#allocation9], %s586
    %v588 = vld [vmem:[%s587] sm:$0xff]
    %v589 = vmul.f32 %v430, %v588
    %v590 = vadd.f32 %v585, %v589
    %v591 = vadd.f32 %v584, %v590
    %v592 = vmul.f32 %v437, %v549
    %s593 = sadd.s32 0, 304
    %s594 = scalar_lea.vmem [#allocation9], %s593
    %v595 = vld [vmem:[%s594] sm:$0xff]
    %v596 = vmul.f32 %v442, %v595
    %v597 = vadd.f32 %v592, %v596
    %v598 = vadd.f32 %v591, %v597
    %v599 = vmul.f32 %v449, %v556
    %s600 = sadd.s32 0, 440
    %s601 = scalar_lea.vmem [#allocation9], %s600
    %v602 = vld [vmem:[%s601] sm:$0xff]
    %v603 = vmul.f32 %v454, %v602
    %v604 = vadd.f32 %v599, %v603
    %v605 = vadd.f32 %v598, %v604
    %v606 = vadd.f32 %v605, %v458
    %v607 = vmax.f32 %v606, 0.0
    %v608 = vmul.f32 %v461, %v536
    %v609 = vmul.f32 %v463, %v582
    %v610 = vadd.f32 %v608, %v609
    %v611 = vmul.f32 %v466, %v542
    %v612 = vmul.f32 %v468, %v588
    %v613 = vadd.f32 %v611, %v612
    %v614 = vadd.f32 %v610, %v613
    %v615 = vmul.f32 %v472, %v549
    %v616 = vmul.f32 %v474, %v595
    %v617 = vadd.f32 %v615, %v616
    %v618 = vadd.f32 %v614, %v617
    %v619 = vmul.f32 %v478, %v556
    %v620 = vmul.f32 %v480, %v602
    %v621 = vadd.f32 %v619, %v620
    %v622 = vadd.f32 %v618, %v621
    %v623 = vadd.f32 %v622, %v484
    %v624 = vmax.f32 %v623, 0.0
    %v625 = vmul.f32 %v414, %v582
    %s626 = sadd.s32 0, 40
    %s627 = scalar_lea.vmem [#allocation9], %s626
    %v628 = vld [vmem:[%s627] sm:$0xff]
    %v629 = vmul.f32 %v419, %v628
    %v630 = vadd.f32 %v625, %v629
    %v631 = vmul.f32 %v425, %v588
    %s632 = sadd.s32 0, 176
    %s633 = scalar_lea.vmem [#allocation9], %s632
    %v634 = vld [vmem:[%s633] sm:$0xff]
    %v635 = vmul.f32 %v430, %v634
    %v636 = vadd.f32 %v631, %v635
    %v637 = vadd.f32 %v630, %v636
    %v638 = vmul.f32 %v437, %v595
    %s639 = sadd.s32 0, 312
    %s640 = scalar_lea.vmem [#allocation9], %s639
    %v641 = vld [vmem:[%s640] sm:$0xff]
    %v642 = vmul.f32 %v442, %v641
    %v643 = vadd.f32 %v638, %v642
    %v644 = vadd.f32 %v637, %v643
    %v645 = vmul.f32 %v449, %v602
    %s646 = sadd.s32 0, 448
    %s647 = scalar_lea.vmem [#allocation9], %s646
    %v648 = vld [vmem:[%s647] sm:$0xff]
    %v649 = vmul.f32 %v454, %v648
    %v650 = vadd.f32 %v645, %v649
    %v651 = vadd.f32 %v644, %v650
    %v652 = vadd.f32 %v651, %v458
    %v653 = vmax.f32 %v652, 0.0
    %v654 = vmul.f32 %v461, %v582
    %v655 = vmul.f32 %v463, %v628
    %v656 = vadd.f32 %v654, %v655
    %v657 = vmul.f32 %v466, %v588
    %v658 = vmul.f32 %v468, %v634
    %v659 = vadd.f32 %v657, %v658
    %v660 = vadd.f32 %v656, %v659
    %v661 = vmul.f32 %v472, %v595
    %v662 = vmul.f32 %v474, %v641
    %v663 = vadd.f32 %v661, %v662
    %v664 = vadd.f32 %v660, %v663
    %v665 = vmul.f32 %v478, %v602
    %v666 = vmul.f32 %v480, %v648
    %v667 = vadd.f32 %v665, %v666
    %v668 = vadd.f32 %v664, %v667
    %v669 = vadd.f32 %v668, %v484
    %v670 = vmax.f32 %v669, 0.0
    %v671 = vmul.f32 %v414, %v628
    %s672 = sadd.s32 0, 48
    %s673 = scalar_lea.vmem [#allocation9], %s672
    %v674 = vld [vmem:[%s673] sm:$0xff]
    %v675 = vmul.f32 %v419, %v674
    %v676 = vadd.f32 %v671, %v675
    %v677 = vmul.f32 %v425, %v634
    %s678 = sadd.s32 0, 184
    %s679 = scalar_lea.vmem [#allocation9], %s678
    %v680 = vld [vmem:[%s679] sm:$0xff]
    %v681 = vmul.f32 %v430, %v680
    %v682 = vadd.f32 %v677, %v681
    %v683 = vadd.f32 %v676, %v682
    %v684 = vmul.f32 %v437, %v641
    %s685 = sadd.s32 0, 320
    %s686 = scalar_lea.vmem [#allocation9], %s685
    %v687 = vld [vmem:[%s686] sm:$0xff]
    %v688 = vmul.f32 %v442, %v687
    %v689 = vadd.f32 %v684, %v688
    %v690 = vadd.f32 %v683, %v689
    %v691 = vmul.f32 %v449, %v648
    %s692 = sadd.s32 0, 456
    %s693 = scalar_lea.vmem [#allocation9], %s692
    %v694 = vld [vmem:[%s693] sm:$0xff]
    %v695 = vmul.f32 %v454, %v694
    %v696 = vadd.f32 %v691, %v695
    %v697 = vadd.f32 %v690, %v696
    %v698 = vadd.f32 %v697, %v458
    %v699 = vmax.f32 %v698, 0.0
    %v700 = vmul.f32 %v461, %v628
    %v701 = vmul.f32 %v463, %v674
    %v702 = vadd.f32 %v700, %v701
    %v703 = vmul.f32 %v466, %v634
    %v704 = vmul.f32 %v468, %v680
    %v705 = vadd.f32 %v703, %v704
    %v706 = vadd.f32 %v702, %v705
    %v707 = vmul.f32 %v472, %v641
    %v708 = vmul.f32 %v474, %v687
    %v709 = vadd.f32 %v707, %v708
    %v710 = vadd.f32 %v706, %v709
    %v711 = vmul.f32 %v478, %v648
    %v712 = vmul.f32 %v480, %v694
    %v713 = vadd.f32 %v711, %v712
    %v714 = vadd.f32 %v710, %v713
    %v715 = vadd.f32 %v714, %v484
    %v716 = vmax.f32 %v715, 0.0
    %v717 = vmul.f32 %v414, %v674
    %s718 = sadd.s32 0, 56
    %s719 = scalar_lea.vmem [#allocation9], %s718
    %v720 = vld [vmem:[%s719] sm:$0xff]
    %v721 = vmul.f32 %v419, %v720
    %v722 = vadd.f32 %v717, %v721
    %v723 = vmul.f32 %v425, %v680
    %s724 = sadd.s32 0, 192
    %s725 = scalar_lea.vmem [#allocation9], %s724
    %v726 = vld [vmem:[%s725] sm:$0xff]
    %v727 = vmul.f32 %v430, %v726
    %v728 = vadd.f32 %v723, %v727
    %v729 = vadd.f32 %v722, %v728
    %v730 = vmul.f32 %v437, %v687
    %s731 = sadd.s32 0, 328
    %s732 = scalar_lea.vmem [#allocation9], %s731
    %v733 = vld [vmem:[%s732] sm:$0xff]
    %v734 = vmul.f32 %v442, %v733
    %v735 = vadd.f32 %v730, %v734
    %v736 = vadd.f32 %v729, %v735
    %v737 = vmul.f32 %v449, %v694
    %s738 = sadd.s32 0, 464
    %s739 = scalar_lea.vmem [#allocation9], %s738
    %v740 = vld [vmem:[%s739] sm:$0xff]
    %v741 = vmul.f32 %v454, %v740
    %v742 = vadd.f32 %v737, %v741
    %v743 = vadd.f32 %v736, %v742
    %v744 = vadd.f32 %v743, %v458
    %v745 = vmax.f32 %v744, 0.0
    %v746 = vmul.f32 %v461, %v674
    %v747 = vmul.f32 %v463, %v720
    %v748 = vadd.f32 %v746, %v747
    %v749 = vmul.f32 %v466, %v680
    %v750 = vmul.f32 %v468, %v726
    %v751 = vadd.f32 %v749, %v750
    %v752 = vadd.f32 %v748, %v751
    %v753 = vmul.f32 %v472, %v687
    %v754 = vmul.f32 %v474, %v733
    %v755 = vadd.f32 %v753, %v754
    %v756 = vadd.f32 %v752, %v755
    %v757 = vmul.f32 %v478, %v694
    %v758 = vmul.f32 %v480, %v740
    %v759 = vadd.f32 %v757, %v758
    %v760 = vadd.f32 %v756, %v759
    %v761 = vadd.f32 %v760, %v484
    %v762 = vmax.f32 %v761, 0.0
    %v763 = vmul.f32 %v414, %v720
    %s764 = sadd.s32 0, 64
    %s765 = scalar_lea.vmem [#allocation9], %s764
    %v766 = vld [vmem:[%s765] sm:$0xff]
    %v767 = vmul.f32 %v419, %v766
    %v768 = vadd.f32 %v763, %v767
    %v769 = vmul.f32 %v425, %v726
    %s770 = sadd.s32 0, 200
    %s771 = scalar_lea.vmem [#allocation9], %s770
    %v772 = vld [vmem:[%s771] sm:$0xff]
    %v773 = vmul.f32 %v430, %v772
    %v774 = vadd.f32 %v769, %v773
    %v775 = vadd.f32 %v768, %v774
    %v776 = vmul.f32 %v437, %v733
    %s777 = sadd.s32 0, 336
    %s778 = scalar_lea.vmem [#allocation9], %s777
    %v779 = vld [vmem:[%s778] sm:$0xff]
    %v780 = vmul.f32 %v442, %v779
    %v781 = vadd.f32 %v776, %v780
    %v782 = vadd.f32 %v775, %v781
    %v783 = vmul.f32 %v449, %v740
    %s784 = sadd.s32 0, 472
    %s785 = scalar_lea.vmem [#allocation9], %s784
    %v786 = vld [vmem:[%s785] sm:$0xff]
    %v787 = vmul.f32 %v454, %v786
    %v788 = vadd.f32 %v783, %v787
    %v789 = vadd.f32 %v782, %v788
    %v790 = vadd.f32 %v789, %v458
    %v791 = vmax.f32 %v790, 0.0
    %v792 = vmul.f32 %v461, %v720
    %v793 = vmul.f32 %v463, %v766
    %v794 = vadd.f32 %v792, %v793
    %v795 = vmul.f32 %v466, %v726
    %v796 = vmul.f32 %v468, %v772
    %v797 = vadd.f32 %v795, %v796
    %v798 = vadd.f32 %v794, %v797
    %v799 = vmul.f32 %v472, %v733
    %v800 = vmul.f32 %v474, %v779
    %v801 = vadd.f32 %v799, %v800
    %v802 = vadd.f32 %v798, %v801
    %v803 = vmul.f32 %v478, %v740
    %v804 = vmul.f32 %v480, %v786
    %v805 = vadd.f32 %v803, %v804
    %v806 = vadd.f32 %v802, %v805
    %v807 = vadd.f32 %v806, %v484
    %v808 = vmax.f32 %v807, 0.0
    %v809 = vmul.f32 %v414, %v766
    %s810 = sadd.s32 0, 72
    %s811 = scalar_lea.vmem [#allocation9], %s810
    %v812 = vld [vmem:[%s811] sm:$0xff]
    %v813 = vmul.f32 %v419, %v812
    %v814 = vadd.f32 %v809, %v813
    %v815 = vmul.f32 %v425, %v772
    %s816 = sadd.s32 0, 208
    %s817 = scalar_lea.vmem [#allocation9], %s816
    %v818 = vld [vmem:[%s817] sm:$0xff]
    %v819 = vmul.f32 %v430, %v818
    %v820 = vadd.f32 %v815, %v819
    %v821 = vadd.f32 %v814, %v820
    %v822 = vmul.f32 %v437, %v779
    %s823 = sadd.s32 0, 344
    %s824 = scalar_lea.vmem [#allocation9], %s823
    %v825 = vld [vmem:[%s824] sm:$0xff]
    %v826 = vmul.f32 %v442, %v825
    %v827 = vadd.f32 %v822, %v826
    %v828 = vadd.f32 %v821, %v827
    %v829 = vmul.f32 %v449, %v786
    %s830 = sadd.s32 0, 480
    %s831 = scalar_lea.vmem [#allocation9], %s830
    %v832 = vld [vmem:[%s831] sm:$0xff]
    %v833 = vmul.f32 %v454, %v832
    %v834 = vadd.f32 %v829, %v833
    %v835 = vadd.f32 %v828, %v834
    %v836 = vadd.f32 %v835, %v458
    %v837 = vmax.f32 %v836, 0.0
    %v838 = vmul.f32 %v461, %v766
    %v839 = vmul.f32 %v463, %v812
    %v840 = vadd.f32 %v838, %v839
    %v841 = vmul.f32 %v466, %v772
    %v842 = vmul.f32 %v468, %v818
    %v843 = vadd.f32 %v841, %v842
    %v844 = vadd.f32 %v840, %v843
    %v845 = vmul.f32 %v472, %v779
    %v846 = vmul.f32 %v474, %v825
    %v847 = vadd.f32 %v845, %v846
    %v848 = vadd.f32 %v844, %v847
    %v849 = vmul.f32 %v478, %v786
    %v850 = vmul.f32 %v480, %v832
    %v851 = vadd.f32 %v849, %v850
    %v852 = vadd.f32 %v848, %v851
    %v853 = vadd.f32 %v852, %v484
    %v854 = vmax.f32 %v853, 0.0
    %v855 = vmul.f32 %v414, %v812
    %s856 = sadd.s32 0, 80
    %s857 = scalar_lea.vmem [#allocation9], %s856
    %v858 = vld [vmem:[%s857] sm:$0xff]
    %v859 = vmul.f32 %v419, %v858
    %v860 = vadd.f32 %v855, %v859
    %v861 = vmul.f32 %v425, %v818
    %s862 = sadd.s32 0, 216
    %s863 = scalar_lea.vmem [#allocation9], %s862
    %v864 = vld [vmem:[%s863] sm:$0xff]
    %v865 = vmul.f32 %v430, %v864
    %v866 = vadd.f32 %v861, %v865
    %v867 = vadd.f32 %v860, %v866
    %v868 = vmul.f32 %v437, %v825
    %s869 = sadd.s32 0, 352
    %s870 = scalar_lea.vmem [#allocation9], %s869
    %v871 = vld [vmem:[%s870] sm:$0xff]
    %v872 = vmul.f32 %v442, %v871
    %v873 = vadd.f32 %v868, %v872
    %v874 = vadd.f32 %v867, %v873
    %v875 = vmul.f32 %v449, %v832
    %s876 = sadd.s32 0, 488
    %s877 = scalar_lea.vmem [#allocation9], %s876
    %v878 = vld [vmem:[%s877] sm:$0xff]
    %v879 = vmul.f32 %v454, %v878
    %v880 = vadd.f32 %v875, %v879
    %v881 = vadd.f32 %v874, %v880
    %v882 = vadd.f32 %v881, %v458
    %v883 = vmax.f32 %v882, 0.0
    %v884 = vmul.f32 %v461, %v812
    %v885 = vmul.f32 %v463, %v858
    %v886 = vadd.f32 %v884, %v885
    %v887 = vmul.f32 %v466, %v818
    %v888 = vmul.f32 %v468, %v864
    %v889 = vadd.f32 %v887, %v888
    %v890 = vadd.f32 %v886, %v889
    %v891 = vmul.f32 %v472, %v825
    %v892 = vmul.f32 %v474, %v871
    %v893 = vadd.f32 %v891, %v892
    %v894 = vadd.f32 %v890, %v893
    %v895 = vmul.f32 %v478, %v832
    %v896 = vmul.f32 %v480, %v878
    %v897 = vadd.f32 %v895, %v896
    %v898 = vadd.f32 %v894, %v897
    %v899 = vadd.f32 %v898, %v484
    %v900 = vmax.f32 %v899, 0.0
    %v901 = vmul.f32 %v414, %v858
    %s902 = sadd.s32 0, 88
    %s903 = scalar_lea.vmem [#allocation9], %s902
    %v904 = vld [vmem:[%s903] sm:$0xff]
    %v905 = vmul.f32 %v419, %v904
    %v906 = vadd.f32 %v901, %v905
    %v907 = vmul.f32 %v425, %v864
    %s908 = sadd.s32 0, 224
    %s909 = scalar_lea.vmem [#allocation9], %s908
    %v910 = vld [vmem:[%s909] sm:$0xff]
    %v911 = vmul.f32 %v430, %v910
    %v912 = vadd.f32 %v907, %v911
    %v913 = vadd.f32 %v906, %v912
    %v914 = vmul.f32 %v437, %v871
    %s915 = sadd.s32 0, 360
    %s916 = scalar_lea.vmem [#allocation9], %s915
    %v917 = vld [vmem:[%s916] sm:$0xff]
    %v918 = vmul.f32 %v442, %v917
    %v919 = vadd.f32 %v914, %v918
    %v920 = vadd.f32 %v913, %v919
    %v921 = vmul.f32 %v449, %v878
    %s922 = sadd.s32 0, 496
    %s923 = scalar_lea.vmem [#allocation9], %s922
    %v924 = vld [vmem:[%s923] sm:$0xff]
    %v925 = vmul.f32 %v454, %v924
    %v926 = vadd.f32 %v921, %v925
    %v927 = vadd.f32 %v920, %v926
    %v928 = vadd.f32 %v927, %v458
    %v929 = vmax.f32 %v928, 0.0
    %v930 = vmul.f32 %v461, %v858
    %v931 = vmul.f32 %v463, %v904
    %v932 = vadd.f32 %v930, %v931
    %v933 = vmul.f32 %v466, %v864
    %v934 = vmul.f32 %v468, %v910
    %v935 = vadd.f32 %v933, %v934
    %v936 = vadd.f32 %v932, %v935
    %v937 = vmul.f32 %v472, %v871
    %v938 = vmul.f32 %v474, %v917
    %v939 = vadd.f32 %v937, %v938
    %v940 = vadd.f32 %v936, %v939
    %v941 = vmul.f32 %v478, %v878
    %v942 = vmul.f32 %v480, %v924
    %v943 = vadd.f32 %v941, %v942
    %v944 = vadd.f32 %v940, %v943
    %v945 = vadd.f32 %v944, %v484
    %v946 = vmax.f32 %v945, 0.0
    %v947 = vmul.f32 %v414, %v904
    %s948 = sadd.s32 0, 96
    %s949 = scalar_lea.vmem [#allocation9], %s948
    %v950 = vld [vmem:[%s949] sm:$0xff]
    %v951 = vmul.f32 %v419, %v950
    %v952 = vadd.f32 %v947, %v951
    %v953 = vmul.f32 %v425, %v910
    %s954 = sadd.s32 0, 232
    %s955 = scalar_lea.vmem [#allocation9], %s954
    %v956 = vld [vmem:[%s955] sm:$0xff]
    %v957 = vmul.f32 %v430, %v956
    %v958 = vadd.f32 %v953, %v957
    %v959 = vadd.f32 %v952, %v958
    %v960 = vmul.f32 %v437, %v917
    %s961 = sadd.s32 0, 368
    %s962 = scalar_lea.vmem [#allocation9], %s961
    %v963 = vld [vmem:[%s962] sm:$0xff]
    %v964 = vmul.f32 %v442, %v963
    %v965 = vadd.f32 %v960, %v964
    %v966 = vadd.f32 %v959, %v965
    %v967 = vmul.f32 %v449, %v924
    %s968 = sadd.s32 0, 504
    %s969 = scalar_lea.vmem [#allocation9], %s968
    %v970 = vld [vmem:[%s969] sm:$0xff]
    %v971 = vmul.f32 %v454, %v970
    %v972 = vadd.f32 %v967, %v971
    %v973 = vadd.f32 %v966, %v972
    %v974 = vadd.f32 %v973, %v458
    %v975 = vmax.f32 %v974, 0.0
    %v976 = vmul.f32 %v461, %v904
    %v977 = vmul.f32 %v463, %v950
    %v978 = vadd.f32 %v976, %v977
    %v979 = vmul.f32 %v466, %v910
    %v980 = vmul.f32 %v468, %v956
    %v981 = vadd.f32 %v979, %v980
    %v982 = vadd.f32 %v978, %v981
    %v983 = vmul.f32 %v472, %v917
    %v984 = vmul.f32 %v474, %v963
    %v985 = vadd.f32 %v983, %v984
    %v986 = vadd.f32 %v982, %v985
    %v987 = vmul.f32 %v478, %v924
    %v988 = vmul.f32 %v480, %v970
    %v989 = vadd.f32 %v987, %v988
    %v990 = vadd.f32 %v986, %v989
    %v991 = vadd.f32 %v990, %v484
    %v992 = vmax.f32 %v991, 0.0
    %v993 = vmul.f32 %v414, %v950
    %s994 = sadd.s32 0, 104
    %s995 = scalar_lea.vmem [#allocation9], %s994
    %v996 = vld [vmem:[%s995] sm:$0xff]
    %v997 = vmul.f32 %v419, %v996
    %v998 = vadd.f32 %v993, %v997
    %v999 = vmul.f32 %v425, %v956
    %s1000 = sadd.s32 0, 240
    %s1001 = scalar_lea.vmem [#allocation9], %s1000
    %v1002 = vld [vmem:[%s1001] sm:$0xff]
    %v1003 = vmul.f32 %v430, %v1002
    %v1004 = vadd.f32 %v999, %v1003
    %v1005 = vadd.f32 %v998, %v1004
    %v1006 = vmul.f32 %v437, %v963
    %s1007 = sadd.s32 0, 376
    %s1008 = scalar_lea.vmem [#allocation9], %s1007
    %v1009 = vld [vmem:[%s1008] sm:$0xff]
    %v1010 = vmul.f32 %v442, %v1009
    %v1011 = vadd.f32 %v1006, %v1010
    %v1012 = vadd.f32 %v1005, %v1011
    %v1013 = vmul.f32 %v449, %v970
    %s1014 = sadd.s32 0, 512
    %s1015 = scalar_lea.vmem [#allocation9], %s1014
    %v1016 = vld [vmem:[%s1015] sm:$0xff]
    %v1017 = vmul.f32 %v454, %v1016
    %v1018 = vadd.f32 %v1013, %v1017
    %v1019 = vadd.f32 %v1012, %v1018
    %v1020 = vadd.f32 %v1019, %v458
    %v1021 = vmax.f32 %v1020, 0.0
    %v1022 = vmul.f32 %v461, %v950
    %v1023 = vmul.f32 %v463, %v996
    %v1024 = vadd.f32 %v1022, %v1023
    %v1025 = vmul.f32 %v466, %v956
    %v1026 = vmul.f32 %v468, %v1002
    %v1027 = vadd.f32 %v1025, %v1026
    %v1028 = vadd.f32 %v1024, %v1027
    %v1029 = vmul.f32 %v472, %v963
    %v1030 = vmul.f32 %v474, %v1009
    %v1031 = vadd.f32 %v1029, %v1030
    %v1032 = vadd.f32 %v1028, %v1031
    %v1033 = vmul.f32 %v478, %v970
    %v1034 = vmul.f32 %v480, %v1016
    %v1035 = vadd.f32 %v1033, %v1034
    %v1036 = vadd.f32 %v1032, %v1035
    %v1037 = vadd.f32 %v1036, %v484
    %v1038 = vmax.f32 %v1037, 0.0
    %v1039 = vmul.f32 %v414, %v996
    %s1040 = sadd.s32 0, 112
    %s1041 = scalar_lea.vmem [#allocation9], %s1040
    %v1042 = vld [vmem:[%s1041] sm:$0xff]
    %v1043 = vmul.f32 %v419, %v1042
    %v1044 = vadd.f32 %v1039, %v1043
    %v1045 = vmul.f32 %v425, %v1002
    %s1046 = sadd.s32 0, 248
    %s1047 = scalar_lea.vmem [#allocation9], %s1046
    %v1048 = vld [vmem:[%s1047] sm:$0xff]
    %v1049 = vmul.f32 %v430, %v1048
    %v1050 = vadd.f32 %v1045, %v1049
    %v1051 = vadd.f32 %v1044, %v1050
    %v1052 = vmul.f32 %v437, %v1009
    %s1053 = sadd.s32 0, 384
    %s1054 = scalar_lea.vmem [#allocation9], %s1053
    %v1055 = vld [vmem:[%s1054] sm:$0xff]
    %v1056 = vmul.f32 %v442, %v1055
    %v1057 = vadd.f32 %v1052, %v1056
    %v1058 = vadd.f32 %v1051, %v1057
    %v1059 = vmul.f32 %v449, %v1016
    %s1060 = sadd.s32 0, 520
    %s1061 = scalar_lea.vmem [#allocation9], %s1060
    %v1062 = vld [vmem:[%s1061] sm:$0xff]
    %v1063 = vmul.f32 %v454, %v1062
    %v1064 = vadd.f32 %v1059, %v1063
    %v1065 = vadd.f32 %v1058, %v1064
    %v1066 = vadd.f32 %v1065, %v458
    %v1067 = vmax.f32 %v1066, 0.0
    %v1068 = vmul.f32 %v461, %v996
    %v1069 = vmul.f32 %v463, %v1042
    %v1070 = vadd.f32 %v1068, %v1069
    %v1071 = vmul.f32 %v466, %v1002
    %v1072 = vmul.f32 %v468, %v1048
    %v1073 = vadd.f32 %v1071, %v1072
    %v1074 = vadd.f32 %v1070, %v1073
    %v1075 = vmul.f32 %v472, %v1009
    %v1076 = vmul.f32 %v474, %v1055
    %v1077 = vadd.f32 %v1075, %v1076
    %v1078 = vadd.f32 %v1074, %v1077
    %v1079 = vmul.f32 %v478, %v1016
    %v1080 = vmul.f32 %v480, %v1062
    %v1081 = vadd.f32 %v1079, %v1080
    %v1082 = vadd.f32 %v1078, %v1081
    %v1083 = vadd.f32 %v1082, %v484
    %v1084 = vmax.f32 %v1083, 0.0
    %v1085 = vmul.f32 %v414, %v1042
    %s1086 = sadd.s32 0, 120
    %s1087 = scalar_lea.vmem [#allocation9], %s1086
    %v1088 = vld [vmem:[%s1087] sm:$0xff]
    %v1089 = vmul.f32 %v419, %v1088
    %v1090 = vadd.f32 %v1085, %v1089
    %v1091 = vmul.f32 %v425, %v1048
    %s1092 = sadd.s32 0, 256
    %s1093 = scalar_lea.vmem [#allocation9], %s1092
    %v1094 = vld [vmem:[%s1093] sm:$0xff]
    %v1095 = vmul.f32 %v430, %v1094
    %v1096 = vadd.f32 %v1091, %v1095
    %v1097 = vadd.f32 %v1090, %v1096
    %v1098 = vmul.f32 %v437, %v1055
    %s1099 = sadd.s32 0, 392
    %s1100 = scalar_lea.vmem [#allocation9], %s1099
    %v1101 = vld [vmem:[%s1100] sm:$0xff]
    %v1102 = vmul.f32 %v442, %v1101
    %v1103 = vadd.f32 %v1098, %v1102
    %v1104 = vadd.f32 %v1097, %v1103
    %v1105 = vmul.f32 %v449, %v1062
    %s1106 = sadd.s32 0, 528
    %s1107 = scalar_lea.vmem [#allocation9], %s1106
    %v1108 = vld [vmem:[%s1107] sm:$0xff]
    %v1109 = vmul.f32 %v454, %v1108
    %v1110 = vadd.f32 %v1105, %v1109
    %v1111 = vadd.f32 %v1104, %v1110
    %v1112 = vadd.f32 %v1111, %v458
    %v1113 = vmax.f32 %v1112, 0.0
    %v1114 = vmul.f32 %v461, %v1042
    %v1115 = vmul.f32 %v463, %v1088
    %v1116 = vadd.f32 %v1114, %v1115
    %v1117 = vmul.f32 %v466, %v1048
    %v1118 = vmul.f32 %v468, %v1094
    %v1119 = vadd.f32 %v1117, %v1118
    %v1120 = vadd.f32 %v1116, %v1119
    %v1121 = vmul.f32 %v472, %v1055
    %v1122 = vmul.f32 %v474, %v1101
    %v1123 = vadd.f32 %v1121, %v1122
    %v1124 = vadd.f32 %v1120, %v1123
    %v1125 = vmul.f32 %v478, %v1062
    %v1126 = vmul.f32 %v480, %v1108
    %v1127 = vadd.f32 %v1125, %v1126
    %v1128 = vadd.f32 %v1124, %v1127
    %v1129 = vadd.f32 %v1128, %v484
    %v1130 = vmax.f32 %v1129, 0.0
    %v1131 = vmul.f32 %v414, %v1088
    %s1132 = sadd.s32 0, 128
    %s1133 = scalar_lea.vmem [#allocation9], %s1132
    %v1134 = vld [vmem:[%s1133] sm:$0xff]
    %v1135 = vmul.f32 %v419, %v1134
    %v1136 = vadd.f32 %v1131, %v1135
    %v1137 = vmul.f32 %v425, %v1094
    %s1138 = sadd.s32 0, 264
    %s1139 = scalar_lea.vmem [#allocation9], %s1138
    %v1140 = vld [vmem:[%s1139] sm:$0xff]
    %v1141 = vmul.f32 %v430, %v1140
    %v1142 = vadd.f32 %v1137, %v1141
    %v1143 = vadd.f32 %v1136, %v1142
    %v1144 = vmul.f32 %v437, %v1101
    %s1145 = sadd.s32 0, 400
    %s1146 = scalar_lea.vmem [#allocation9], %s1145
    %v1147 = vld [vmem:[%s1146] sm:$0xff]
    %v1148 = vmul.f32 %v442, %v1147
    %v1149 = vadd.f32 %v1144, %v1148
    %v1150 = vadd.f32 %v1143, %v1149
    %v1151 = vmul.f32 %v449, %v1108
    %s1152 = sadd.s32 0, 536
    %s1153 = scalar_lea.vmem [#allocation9], %s1152
    %v1154 = vld [vmem:[%s1153] sm:$0xff]
    %v1155 = vmul.f32 %v454, %v1154
    %v1156 = vadd.f32 %v1151, %v1155
    %v1157 = vadd.f32 %v1150, %v1156
    %v1158 = vadd.f32 %v1157, %v458
    %v1159 = vmax.f32 %v1158, 0.0
    %v1160 = vmul.f32 %v461, %v1088
    %v1161 = vmul.f32 %v463, %v1134
    %v1162 = vadd.f32 %v1160, %v1161
    %v1163 = vmul.f32 %v466, %v1094
    %v1164 = vmul.f32 %v468, %v1140
    %v1165 = vadd.f32 %v1163, %v1164
    %v1166 = vadd.f32 %v1162, %v1165
    %v1167 = vmul.f32 %v472, %v1101
    %v1168 = vmul.f32 %v474, %v1147
    %v1169 = vadd.f32 %v1167, %v1168
    %v1170 = vadd.f32 %v1166, %v1169
    %v1171 = vmul.f32 %v478, %v1108
    %v1172 = vmul.f32 %v480, %v1154
    %v1173 = vadd.f32 %v1171, %v1172
    %v1174 = vadd.f32 %v1170, %v1173
    %v1175 = vadd.f32 %v1174, %v484
    %v1176 = vmax.f32 %v1175, 0.0
    %v1177 = vstv %s371
    %v1178 = vmul.f32 %v1177, %v460
    %v1179 = vstv %s372
    %v1180 = vmul.f32 %v1179, %v515
    %v1181 = vadd.f32 %v1178, %v1180
    %v1182 = vstv %s373
    %v1183 = vmul.f32 %v1182, %v486
    %v1184 = vstv %s374
    %v1185 = vmul.f32 %v1184, %v532
    %v1186 = vadd.f32 %v1183, %v1185
    %v1187 = vadd.f32 %v1181, %v1186
    %v1188 = vstv %s379
    %v1189 = vadd.f32 %v1187, %v1188
    %v1190 = vmax.f32 %v1189, 0.0
    %v1191 = vstv %s375
    %v1192 = vmul.f32 %v1191, %v460
    %v1193 = vstv %s376
    %v1194 = vmul.f32 %v1193, %v515
    %v1195 = vadd.f32 %v1192, %v1194
    %v1196 = vstv %s377
    %v1197 = vmul.f32 %v1196, %v486
    %v1198 = vstv %s378
    %v1199 = vmul.f32 %v1198, %v532
    %v1200 = vadd.f32 %v1197, %v1199
    %v1201 = vadd.f32 %v1195, %v1200
    %v1202 = vstv %s380
    %v1203 = vadd.f32 %v1201, %v1202
    %v1204 = vmax.f32 %v1203, 0.0
    %v1205 = vmul.f32 %v1177, %v561
    %v1206 = vmul.f32 %v1179, %v607
    %v1207 = vadd.f32 %v1205, %v1206
    %v1208 = vmul.f32 %v1182, %v578
    %v1209 = vmul.f32 %v1184, %v624
    %v1210 = vadd.f32 %v1208, %v1209
    %v1211 = vadd.f32 %v1207, %v1210
    %v1212 = vadd.f32 %v1211, %v1188
    %v1213 = vmax.f32 %v1212, 0.0
    %v1214 = vmul.f32 %v1191, %v561
    %v1215 = vmul.f32 %v1193, %v607
    %v1216 = vadd.f32 %v1214, %v1215
    %v1217 = vmul.f32 %v1196, %v578
    %v1218 = vmul.f32 %v1198, %v624
    %v1219 = vadd.f32 %v1217, %v1218
    %v1220 = vadd.f32 %v1216, %v1219
    %v1221 = vadd.f32 %v1220, %v1202
    %v1222 = vmax.f32 %v1221, 0.0
    %v1223 = vmul.f32 %v1177, %v653
    %v1224 = vmul.f32 %v1179, %v699
    %v1225 = vadd.f32 %v1223, %v1224
    %v1226 = vmul.f32 %v1182, %v670
    %v1227 = vmul.f32 %v1184, %v716
    %v1228 = vadd.f32 %v1226, %v1227
    %v1229 = vadd.f32 %v1225, %v1228
    %v1230 = vadd.f32 %v1229, %v1188
    %v1231 = vmax.f32 %v1230, 0.0
    %v1232 = vmul.f32 %v1191, %v653
    %v1233 = vmul.f32 %v1193, %v699
    %v1234 = vadd.f32 %v1232, %v1233
    %v1235 = vmul.f32 %v1196, %v670
    %v1236 = vmul.f32 %v1198, %v716
    %v1237 = vadd.f32 %v1235, %v1236
    %v1238 = vadd.f32 %v1234, %v1237
    %v1239 = vadd.f32 %v1238, %v1202
    %v1240 = vmax.f32 %v1239, 0.0
    %v1241 = vmul.f32 %v1177, %v745
    %v1242 = vmul.f32 %v1179, %v791
    %v1243 = vadd.f32 %v1241, %v1242
    %v1244 = vmul.f32 %v1182, %v762
    %v1245 = vmul.f32 %v1184, %v808
    %v1246 = vadd.f32 %v1244, %v1245
    %v1247 = vadd.f32 %v1243, %v1246
    %v1248 = vadd.f32 %v1247, %v1188
    %v1249 = vmax.f32 %v1248, 0.0
    %v1250 = vmul.f32 %v1191, %v745
    %v1251 = vmul.f32 %v1193, %v791
    %v1252 = vadd.f32 %v1250, %v1251
    %v1253 = vmul.f32 %v1196, %v762
    %v1254 = vmul.f32 %v1198, %v808
    %v1255 = vadd.f32 %v1253, %v1254
    %v1256 = vadd.f32 %v1252, %v1255
    %v1257 = vadd.f32 %v1256, %v1202
    %v1258 = vmax.f32 %v1257, 0.0
    %v1259 = vmul.f32 %v1177, %v837
    %v1260 = vmul.f32 %v1179, %v883
    %v1261 = vadd.f32 %v1259, %v1260
    %v1262 = vmul.f32 %v1182, %v854
    %v1263 = vmul.f32 %v1184, %v900
    %v1264 = vadd.f32 %v1262, %v1263
    %v1265 = vadd.f32 %v1261, %v1264
    %v1266 = vadd.f32 %v1265, %v1188
    %v1267 = vmax.f32 %v1266, 0.0
    %v1268 = vmul.f32 %v1191, %v837
    %v1269 = vmul.f32 %v1193, %v883
    %v1270 = vadd.f32 %v1268, %v1269
    %v1271 = vmul.f32 %v1196, %v854
    %v1272 = vmul.f32 %v1198, %v900
    %v1273 = vadd.f32 %v1271, %v1272
    %v1274 = vadd.f32 %v1270, %v1273
    %v1275 = vadd.f32 %v1274, %v1202
    %v1276 = vmax.f32 %v1275, 0.0
    %v1277 = vmul.f32 %v1177, %v929
    %v1278 = vmul.f32 %v1179, %v975
    %v1279 = vadd.f32 %v1277, %v1278
    %v1280 = vmul.f32 %v1182, %v946
    %v1281 = vmul.f32 %v1184, %v992
    %v1282 = vadd.f32 %v1280, %v1281
    %v1283 = vadd.f32 %v1279, %v1282
    %v1284 = vadd.f32 %v1283, %v1188
    %v1285 = vmax.f32 %v1284, 0.0
    %v1286 = vmul.f32 %v1191, %v929
    %v1287 = vmul.f32 %v1193, %v975
    %v1288 = vadd.f32 %v1286, %v1287
    %v1289 = vmul.f32 %v1196, %v946
    %v1290 = vmul.f32 %v1198, %v992
    %v1291 = vadd.f32 %v1289, %v1290
    %v1292 = vadd.f32 %v1288, %v1291
    %v1293 = vadd.f32 %v1292, %v1202
    %v1294 = vmax.f32 %v1293, 0.0
    %v1295 = vmul.f32 %v1177, %v1021
    %v1296 = vmul.f32 %v1179, %v1067
    %v1297 = vadd.f32 %v1295, %v1296
    %v1298 = vmul.f32 %v1182, %v1038
    %v1299 = vmul.f32 %v1184, %v1084
    %v1300 = vadd.f32 %v1298, %v1299
    %v1301 = vadd.f32 %v1297, %v1300
    %v1302 = vadd.f32 %v1301, %v1188
    %v1303 = vmax.f32 %v1302, 0.0
    %v1304 = vmul.f32 %v1191, %v1021
    %v1305 = vmul.f32 %v1193, %v1067
    %v1306 = vadd.f32 %v1304, %v1305
    %v1307 = vmul.f32 %v1196, %v1038
    %v1308 = vmul.f32 %v1198, %v1084
    %v1309 = vadd.f32 %v1307, %v1308
    %v1310 = vadd.f32 %v1306, %v1309
    %v1311 = vadd.f32 %v1310, %v1202
    %v1312 = vmax.f32 %v1311, 0.0
    %v1313 = vmul.f32 %v1177, %v1113
    %v1314 = vmul.f32 %v1179, %v1159
    %v1315 = vadd.f32 %v1313, %v1314
    %v1316 = vmul.f32 %v1182, %v1130
    %v1317 = vmul.f32 %v1184, %v1176
    %v1318 = vadd.f32 %v1316, %v1317
    %v1319 = vadd.f32 %v1315, %v1318
    %v1320 = vadd.f32 %v1319, %v1188
    %v1321 = vmax.f32 %v1320, 0.0
    %v1322 = vmul.f32 %v1191, %v1113
    %v1323 = vmul.f32 %v1193, %v1159
    %v1324 = vadd.f32 %v1322, %v1323
    %v1325 = vmul.f32 %v1196, %v1130
    %v1326 = vmul.f32 %v1198, %v1176
    %v1327 = vadd.f32 %v1325, %v1326
    %v1328 = vadd.f32 %v1324, %v1327
    %v1329 = vadd.f32 %v1328, %v1202
    %v1330 = vmax.f32 %v1329, 0.0
    %v1331 = vstv %s381
    %v1332 = vmul.f32 %v1331, %v1190
    %v1333 = vstv %s382
    %v1334 = vmul.f32 %v1333, %v1213
    %v1335 = vadd.f32 %v1332, %v1334
    %v1336 = vstv %s383
    %v1337 = vmul.f32 %v1336, %v1204
    %v1338 = vstv %s384
    %v1339 = vmul.f32 %v1338, %v1222
    %v1340 = vadd.f32 %v1337, %v1339
    %v1341 = vadd.f32 %v1335, %v1340
    %v1342 = vstv %s389
    %v1343 = vadd.f32 %v1341, %v1342
    %v1344 = vmax.f32 %v1343, 0.0
    %v1345 = vstv %s385
    %v1346 = vmul.f32 %v1345, %v1190
    %v1347 = vstv %s386
    %v1348 = vmul.f32 %v1347, %v1213
    %v1349 = vadd.f32 %v1346, %v1348
    %v1350 = vstv %s387
    %v1351 = vmul.f32 %v1350, %v1204
    %v1352 = vstv %s388
    %v1353 = vmul.f32 %v1352, %v1222
    %v1354 = vadd.f32 %v1351, %v1353
    %v1355 = vadd.f32 %v1349, %v1354
    %v1356 = vstv %s390
    %v1357 = vadd.f32 %v1355, %v1356
    %v1358 = vmax.f32 %v1357, 0.0
    %v1359 = vmul.f32 %v1331, %v1231
    %v1360 = vmul.f32 %v1333, %v1249
    %v1361 = vadd.f32 %v1359, %v1360
    %v1362 = vmul.f32 %v1336, %v1240
    %v1363 = vmul.f32 %v1338, %v1258
    %v1364 = vadd.f32 %v1362, %v1363
    %v1365 = vadd.f32 %v1361, %v1364
    %v1366 = vadd.f32 %v1365, %v1342
    %v1367 = vmax.f32 %v1366, 0.0
    %v1368 = vmul.f32 %v1345, %v1231
    %v1369 = vmul.f32 %v1347, %v1249
    %v1370 = vadd.f32 %v1368, %v1369
    %v1371 = vmul.f32 %v1350, %v1240
    %v1372 = vmul.f32 %v1352, %v1258
    %v1373 = vadd.f32 %v1371, %v1372
    %v1374 = vadd.f32 %v1370, %v1373
    %v1375 = vadd.f32 %v1374, %v1356
    %v1376 = vmax.f32 %v1375, 0.0
    %v1377 = vmul.f32 %v1331, %v1267
    %v1378 = vmul.f32 %v1333, %v1285
    %v1379 = vadd.f32 %v1377, %v1378
    %v1380 = vmul.f32 %v1336, %v1276
    %v1381 = vmul.f32 %v1338, %v1294
    %v1382 = vadd.f32 %v1380, %v1381
    %v1383 = vadd.f32 %v1379, %v1382
    %v1384 = vadd.f32 %v1383, %v1342
    %v1385 = vmax.f32 %v1384, 0.0
    %v1386 = vmul.f32 %v1345, %v1267
    %v1387 = vmul.f32 %v1347, %v1285
    %v1388 = vadd.f32 %v1386, %v1387
    %v1389 = vmul.f32 %v1350, %v1276
    %v1390 = vmul.f32 %v1352, %v1294
    %v1391 = vadd.f32 %v1389, %v1390
    %v1392 = vadd.f32 %v1388, %v1391
    %v1393 = vadd.f32 %v1392, %v1356
    %v1394 = vmax.f32 %v1393, 0.0
    %v1395 = vmul.f32 %v1331, %v1303
    %v1396 = vmul.f32 %v1333, %v1321
    %v1397 = vadd.f32 %v1395, %v1396
    %v1398 = vmul.f32 %v1336, %v1312
    %v1399 = vmul.f32 %v1338, %v1330
    %v1400 = vadd.f32 %v1398, %v1399
    %v1401 = vadd.f32 %v1397, %v1400
    %v1402 = vadd.f32 %v1401, %v1342
    %v1403 = vmax.f32 %v1402, 0.0
    %v1404 = vmul.f32 %v1345, %v1303
    %v1405 = vmul.f32 %v1347, %v1321
    %v1406 = vadd.f32 %v1404, %v1405
    %v1407 = vmul.f32 %v1350, %v1312
    %v1408 = vmul.f32 %v1352, %v1330
    %v1409 = vadd.f32 %v1407, %v1408
    %v1410 = vadd.f32 %v1406, %v1409
    %v1411 = vadd.f32 %v1410, %v1356
    %v1412 = vmax.f32 %v1411, 0.0
    %v1413 = vstv %s391
    %v1414 = vmul.f32 %v1413, %v1344
    %v1415 = vstv %s392
    %v1416 = vmul.f32 %v1415, %v1367
    %v1417 = vadd.f32 %v1414, %v1416
    %v1418 = vstv %s393
    %v1419 = vmul.f32 %v1418, %v1358
    %v1420 = vstv %s394
    %v1421 = vmul.f32 %v1420, %v1376
    %v1422 = vadd.f32 %v1419, %v1421
    %v1423 = vadd.f32 %v1417, %v1422
    %v1424 = vstv %s403
    %v1425 = vadd.f32 %v1423, %v1424
    %v1426 = vmax.f32 %v1425, 0.0
    %v1427 = vstv %s395
    %v1428 = vmul.f32 %v1427, %v1344
    %v1429 = vstv %s396
    %v1430 = vmul.f32 %v1429, %v1367
    %v1431 = vadd.f32 %v1428, %v1430
    %v1432 = vstv %s397
    %v1433 = vmul.f32 %v1432, %v1358
    %v1434 = vstv %s398
    %v1435 = vmul.f32 %v1434, %v1376
    %v1436 = vadd.f32 %v1433, %v1435
    %v1437 = vadd.f32 %v1431, %v1436
    %v1438 = vstv %s404
    %v1439 = vadd.f32 %v1437, %v1438
    %v1440 = vmax.f32 %v1439, 0.0
    %v1441 = vstv %s399
    %v1442 = vmul.f32 %v1441, %v1344
    %v1443 = vstv %s400
    %v1444 = vmul.f32 %v1443, %v1367
    %v1445 = vadd.f32 %v1442, %v1444
    %v1446 = vstv %s401
    %v1447 = vmul.f32 %v1446, %v1358
    %v1448 = vstv %s402
    %v1449 = vmul.f32 %v1448, %v1376
    %v1450 = vadd.f32 %v1447, %v1449
    %v1451 = vadd.f32 %v1445, %v1450
    %v1452 = vstv %s405
    %v1453 = vadd.f32 %v1451, %v1452
    %v1454 = vmax.f32 %v1453, 0.0
    %v1455 = vmul.f32 %v1413, %v1385
    %v1456 = vmul.f32 %v1415, %v1403
    %v1457 = vadd.f32 %v1455, %v1456
    %v1458 = vmul.f32 %v1418, %v1394
    %v1459 = vmul.f32 %v1420, %v1412
    %v1460 = vadd.f32 %v1458, %v1459
    %v1461 = vadd.f32 %v1457, %v1460
    %v1462 = vadd.f32 %v1461, %v1424
    %v1463 = vmax.f32 %v1462, 0.0
    %v1464 = vmul.f32 %v1427, %v1385
    %v1465 = vmul.f32 %v1429, %v1403
    %v1466 = vadd.f32 %v1464, %v1465
    %v1467 = vmul.f32 %v1432, %v1394
    %v1468 = vmul.f32 %v1434, %v1412
    %v1469 = vadd.f32 %v1467, %v1468
    %v1470 = vadd.f32 %v1466, %v1469
    %v1471 = vadd.f32 %v1470, %v1438
    %v1472 = vmax.f32 %v1471, 0.0
    %v1473 = vmul.f32 %v1441, %v1385
    %v1474 = vmul.f32 %v1443, %v1403
    %v1475 = vadd.f32 %v1473, %v1474
    %v1476 = vmul.f32 %v1446, %v1394
    %v1477 = vmul.f32 %v1448, %v1412
    %v1478 = vadd.f32 %v1476, %v1477
    %v1479 = vadd.f32 %v1475, %v1478
    %v1480 = vadd.f32 %v1479, %v1452
    %v1481 = vmax.f32 %v1480, 0.0
    %v1482 = vstv %s406
    %v1483 = vmul.f32 %v1482, %v1426
    %v1484 = vstv %s407
    %v1485 = vmul.f32 %v1484, %v1463
    %v1486 = vadd.f32 %v1483, %v1485
    %v1487 = vstv %s408
    %v1488 = vmul.f32 %v1487, %v1440
    %v1489 = vstv %s409
    %v1490 = vmul.f32 %v1489, %v1472
    %v1491 = vadd.f32 %v1488, %v1490
    %v1492 = vadd.f32 %v1486, %v1491
    %v1493 = vstv %s410
    %v1494 = vmul.f32 %v1493, %v1454
    %v1495 = vstv %s411
    %v1496 = vmul.f32 %v1495, %v1481
    %v1497 = vadd.f32 %v1494, %v1496
    %v1498 = vadd.f32 %v1492, %v1497
    %v1499 = vstv %s412
    %v1500 = vadd.f32 %v1498, %v1499
    %1501 = vst [vmem:[%s2] sm:$0xff] %v1500
    // Predicated region
    $region6: #{dilated_net_forward.2} parent=1 // pred_check
      _
    $region7: #{dilated_net_forward.2} parent=1 // pred_check_branch
      %1503 = sbr.rel (0) target = $region9
    $region8: #{dilated_net_forward.2} parent=1 // pred_region
      _
    $region9: #{dilated_net_forward.2} parent=1 // pred_fallthru
      _
    // Predicated region
    $region10: #{dilated_net_forward.2} parent=1 // pred_check
      _
    $region11: #{dilated_net_forward.2} parent=1 // pred_check_branch
      %1505 = sbr.rel (0) target = $region13
    $region12: #{dilated_net_forward.2} parent=1 // pred_region
      _
    $region13: #{dilated_net_forward.2} parent=1 // pred_fallthru
      _

</llo_original>
